<compile_context>
chip_gen: v5e
topology: v5e:2x2
jax: 0.10.0
libtpu: 0.0.40
codegen_flags: <defaults>
</compile_context>

<pallas_src>
import functools
import math

import jax
import jax.numpy as jnp
import numpy as np
from jax.experimental import pallas as pl
from jax.experimental.pallas import tpu as pltpu


_RGB_MEAN = (0.4488, 0.4371, 0.4040)  # MeanShift default mean (std = 1)


# ----------------------------- fused Pallas kernel --------------------------

def _mpan_kernel(x_ref, wh_ref, bh_ref, wb_ref, bb_ref, wt_ref, bt_ref,
                 o_ref, a1_ref, a2_ref, *, th, w2, wp, colors, cm):
    r = pl.program_id(1)
    last = pl.num_programs(1) - 1
    m1 = (th + 4) * w2          # head output pixels (strip + 2-row halo/side)
    m2 = (th + 2) * w2          # body output pixels (strip + 1-row halo/side)
    m3 = th * w2                # tail output pixels (the strip itself)
    act_dt = a1_ref.dtype

    def conv9(src_ref, w_ref, b_ref, m, cin):
        """3x3 'same' conv as 9 accumulated channel-major MXU dots.

        src_ref: (cin, ROWS*w2) flattened buffer, zero 1-px halo column per
                 row, >=1 guard row on each side so slices stay in bounds.
        w_ref:   (cout, 9*cin), columns ordered (dh*3+dw)*cin + ci.
        The output range starts one row below the top guard row; its halo
        columns hold junk that the caller masks to zero.
        """
        acc = None
        for dh in range(3):
            for dw in range(3):
                tap = dh * 3 + dw
                start = (dh + 1) * w2 + dw - 1
                p = jnp.dot(w_ref[:, tap * cin:(tap + 1) * cin],
                            src_ref[:, pl.ds(start, m)],
                            preferred_element_type=jnp.float32)
                acc = p if acc is None else acc + p
        return acc + b_ref[...]

    def interior_mask(m):
        col = jax.lax.broadcasted_iota(jnp.int32, (1, m), 1) % w2
        return jnp.logical_and(col != 0, col != wp + 1)

    # Guard rows are never written by the stores below; keep them zero so the
    # tap slices only ever read finite (and for valid outputs: correct) data.
    zrow = jnp.zeros((cm, w2), act_dt)
    a1_ref[:, pl.ds(0, w2)] = zrow
    a1_ref[:, pl.ds((th + 5) * w2, w2)] = zrow
    a2_ref[:, pl.ds(0, w2)] = zrow
    a2_ref[:, pl.ds((th + 3) * w2, w2)] = zrow

    # ---- head: Conv2d(colors, c_mpan, 3, 1, 1) ------------------------------
    h = conv9(x_ref, wh_ref, bh_ref, m1, colors)
    h = jnp.where(interior_mask(m1), h, 0.0)
    a1_ref[:, pl.ds(w2, m1)] = h.astype(act_dt)

    # head-output rows outside the image must read as zero for the next conv
    # (Conv2d zero-padding at the top / bottom of the image)
    @pl.when(r == 0)
    def _():
        a1_ref[:, pl.ds(w2, 2 * w2)] = jnp.zeros((cm, 2 * w2), act_dt)

    @pl.when(r == last)
    def _():
        a1_ref[:, pl.ds((th + 3) * w2, 2 * w2)] = jnp.zeros((cm, 2 * w2), act_dt)

    # TODO(synk): the MPAB body blocks are not defined in the reference source;
    # the body ModuleList is treated as identity (res == head output).

    # ---- conv_after_body + residual add -------------------------------------
    bd = conv9(a1_ref, wb_ref, bb_ref, m2, cm)
    resid = a1_ref[:, pl.ds(2 * w2, m2)].astype(jnp.float32)
    bd = jnp.where(interior_mask(m2), bd + resid, 0.0)
    a2_ref[:, pl.ds(w2, m2)] = bd.astype(act_dt)

    @pl.when(r == 0)
    def _():
        a2_ref[:, pl.ds(w2, w2)] = zrow

    @pl.when(r == last)
    def _():
        a2_ref[:, pl.ds((th + 2) * w2, w2)] = zrow

    # ---- tail conv: Conv2d(c_mpan, colors*scale^2, 3, 1, 1) ------------------
    tl = conv9(a2_ref, wt_ref, bt_ref, m3, cm)
    o_ref[...] = tl.astype(o_ref.dtype)


# --------------------------- strip-size selection ----------------------------

def _ceil_to(x, m):
    return -(-x // m) * m


def _vmem_bytes(th, wp, colors, cm, cout_t):
    """Per-strip VMEM working set, modelling Mosaic sublane/lane padding."""
    w2 = wp + 2
    bf, f4 = 2, 4
    est = 0
    est += 2 * _ceil_to(colors, 16) * _ceil_to((th + 8) * w2, 128) * bf   # input block x2
    est += 2 * _ceil_to(cout_t, 8) * _ceil_to(th * w2, 128) * f4          # output block x2
    est += _ceil_to(cm, 16) * _ceil_to((th + 6) * w2, 128) * bf           # a1 scratch
    est += _ceil_to(cm, 16) * _ceil_to((th + 4) * w2, 128) * bf           # a2 scratch
    est += 6 * _ceil_to(cm, 8) * _ceil_to((th + 4) * w2, 128) * f4        # f32 matmul temps
    est += 2 * _ceil_to(cm, 16) * (_ceil_to(9 * colors, 128)
                                   + _ceil_to(9 * cm, 128)) * bf          # head/body weights
    est += 2 * _ceil_to(cout_t, 16) * _ceil_to(9 * cm, 128) * bf          # tail weights
    est += 2 * 1024 * 1024                                                # biases + slack
    return est


def _pick_strip_rows(batch, hp, wp, colors, cm, cout_t, budget):
    divisors = [d for d in range(1, hp + 1) if hp % d == 0]
    fits = [d for d in divisors
            if _vmem_bytes(d, wp, colors, cm, cout_t) <= budget]
    if not fits:
        # TODO(synk): add a W-tile grid axis for very wide images instead of
        # degenerating to 1-row strips.
        return 1
    # keep >= 4 grid steps when possible so both v7x TensorCores get work
    deep = [d for d in fits if batch * (hp // d) >= 4]
    return max(deep) if deep else max(fits)


# ------------------------------- wrapper ------------------------------------

def mpan_forward(x_nchw, params, *, scale, colors, window_sizes,
                 rgb_range=255.0):
    N, _, H, W = x_nchw.shape

    # check_image_size: reflect-pad H/W up to a multiple of lcm(window_sizes)
    wsize = window_sizes[0]
    for i in range(1, len(window_sizes)):
        wsize = wsize * window_sizes[i] // math.gcd(wsize, window_sizes[i])
    mod_pad_h = (wsize - H % wsize) % wsize
    mod_pad_w = (wsize - W % wsize) % wsize
    x = jnp.pad(x_nchw, ((0, 0), (0, 0), (0, mod_pad_h), (0, mod_pad_w)),
                mode="reflect")
    Hp, Wp = H + mod_pad_h, W + mod_pad_w
    W2 = Wp + 2

    # sub_mean (MeanShift sign=-1), then zero halo: 3 rows of stacked-conv halo
    # + 1 guard row top/bottom, 1 column left/right.
    mean = jnp.asarray(_RGB_MEAN, jnp.float32) * rgb_range
    x = x.astype(jnp.float32) - mean[None, :, None, None]
    xpad = jnp.pad(x, ((0, 0), (0, 0), (4, 4), (1, 1))).astype(jnp.bfloat16)

    cm = params["head_w"].shape[-1]
    cout_t = params["tail_w"].shape[-1]

    try:
        cap = int(pltpu.get_tpu_info().vmem_capacity_bytes)
    except Exception:
        cap = 64 * 1024 * 1024          # conservative (v7x-sized) fallback
    vmem_limit = max(32 * 1024 * 1024,
                     min(int(cap * 0.75), 100 * 1024 * 1024))
    budget = int(vmem_limit * 0.6)

    th = _pick_strip_rows(N, Hp, Wp, colors, cm, cout_t, budget)
    n_strips = Hp // th

    # overlapping halo strips -> one contiguous, auto-double-buffered DMA/step
    xs = jnp.stack([xpad[:, :, r * th:r * th + th + 8, :]
                    for r in range(n_strips)], axis=1)
    xs = xs.reshape(N, n_strips, colors, (th + 8) * W2)

    def _mat(w):   # (3,3,cin,cout) HWIO -> (cout, 9*cin), tap-major columns
        cin, cout = w.shape[2], w.shape[3]
        return jnp.transpose(w, (3, 0, 1, 2)).reshape(cout, 9 * cin).astype(
            jnp.bfloat16)

    wh, wb, wt = _mat(params["head_w"]), _mat(params["body_w"]), _mat(params["tail_w"])
    bh = params["head_b"].reshape(cm, 1).astype(jnp.float32)
    bb = params["body_b"].reshape(cm, 1).astype(jnp.float32)
    bt = params["tail_b"].reshape(cout_t, 1).astype(jnp.float32)

    kernel = functools.partial(_mpan_kernel, th=th, w2=W2, wp=Wp,
                               colors=colors, cm=cm)

    def cspec(shape):
        return pl.BlockSpec(shape, lambda n, r: (0, 0))

    out = pl.pallas_call(
        kernel,
        out_shape=jax.ShapeDtypeStruct((N, n_strips, cout_t, th * W2),
                                       jnp.float32),
        grid=(N, n_strips),
        in_specs=[
            pl.BlockSpec((None, None, colors, (th + 8) * W2),
                         lambda n, r: (n, r, 0, 0)),
            cspec((cm, 9 * colors)), cspec((cm, 1)),
            cspec((cm, 9 * cm)), cspec((cm, 1)),
            cspec((cout_t, 9 * cm)), cspec((cout_t, 1)),
        ],
        out_specs=pl.BlockSpec((None, None, cout_t, th * W2),
                               lambda n, r: (n, r, 0, 0)),
        scratch_shapes=[
            pltpu.VMEM((cm, (th + 6) * W2), jnp.bfloat16),   # head output
            pltpu.VMEM((cm, (th + 4) * W2), jnp.bfloat16),   # body(+res) output
        ],
        compiler_params=pltpu.CompilerParams(
            dimension_semantics=("parallel", "parallel"),
            vmem_limit_bytes=vmem_limit),
    )(xs, wh, bh, wb, bb, wt, bt)

    # crop halo columns, merge strips, PixelShuffle, add_mean, final crop.
    s = scale
    t = out.reshape(N, n_strips, cout_t, th, W2)[..., 1:Wp + 1]
    t = jnp.transpose(t, (0, 2, 1, 3, 4)).reshape(N, cout_t, Hp, Wp)
    t = t.reshape(N, colors, s, s, Hp, Wp)
    t = jnp.transpose(t, (0, 1, 4, 2, 5, 3)).reshape(N, colors, Hp * s, Wp * s)
    t = t + mean[None, :, None, None]
    return t[:, :, 0:H * s, 0:W * s]


# -------------------------- pure-JAX reference ------------------------------

def _reference_forward(x_nchw, params, *, scale, colors, window_sizes,
                       rgb_range=255.0):
    N, _, H, W = x_nchw.shape
    wsize = window_sizes[0]
    for i in range(1, len(window_sizes)):
        wsize = wsize * window_sizes[i] // math.gcd(wsize, window_sizes[i])
    mod_pad_h = (wsize - H % wsize) % wsize
    mod_pad_w = (wsize - W % wsize) % wsize
    x = jnp.pad(x_nchw, ((0, 0), (0, 0), (0, mod_pad_h), (0, mod_pad_w)),
                mode="reflect")
    x = jnp.transpose(x, (0, 2, 3, 1)).astype(jnp.float32)
    mean = jnp.asarray(_RGB_MEAN, jnp.float32) * rgb_range
    x = x - mean

    def conv(v, w, b):
        out = jax.lax.conv_general_dilated(
            v, w, window_strides=(1, 1), padding="SAME",
            dimension_numbers=("NHWC", "HWIO", "NHWC"))
        return out + b

    h = conv(x, params["head_w"], params["head_b"])
    res = conv(h, params["body_w"], params["body_b"]) + h
    t = conv(res, params["tail_w"], params["tail_b"])
    s = scale
    Nn, Hh, Ww, _ = t.shape
    t = t.reshape(Nn, Hh, Ww, colors, s, s)
    t = jnp.transpose(t, (0, 1, 4, 2, 5, 3)).reshape(Nn, Hh * s, Ww * s, colors)
    t = t + mean
    t = jnp.transpose(t, (0, 3, 1, 2))
    return t[:, :, 0:H * s, 0:W * s]


# --------------------------------- driver ------------------------------------

if __name__ == "__main__":
    key = jax.random.PRNGKey(0)
    N, colors, H, W = 2, 3, 16, 16
    c_mpan, scale = 32, 2
    window_sizes = [4, 8, 16]      # lcm = 16

    keys = jax.random.split(key, 7)

    def init(k, shape, std):
        return jax.random.normal(k, shape, jnp.float32) * std

    params = {
        "head_w": init(keys[0], (3, 3, colors, c_mpan), 0.05),
        "head_b": init(keys[1], (c_mpan,), 5.0),
        "body_w": init(keys[2], (3, 3, c_mpan, c_mpan), 0.05),
        "body_b": init(keys[3], (c_mpan,), 5.0),
        "tail_w": init(keys[4], (3, 3, c_mpan, colors * scale * scale), 0.05),
        "tail_b": init(keys[5], (colors * scale * scale,), 5.0),
    }

    x = jax.random.uniform(keys[6], (N, colors, H, W), jnp.float32) * 255.0

    out = mpan_forward(x, params, scale=scale, colors=colors,
                       window_sizes=window_sizes, rgb_range=255.0)
    out = jax.block_until_ready(out)
    assert out.shape == (N, colors, H * scale, W * scale), out.shape

    ref = _reference_forward(x, params, scale=scale, colors=colors,
                             window_sizes=window_sizes, rgb_range=255.0)
    np.testing.assert_allclose(np.asarray(out), np.asarray(ref),
                               rtol=2e-2, atol=2.0)

    # second case: exercises check_image_size reflect padding + output crop
    x2 = jax.random.uniform(jax.random.PRNGKey(1), (1, colors, 12, 20),
                            jnp.float32) * 255.0
    out2 = mpan_forward(x2, params, scale=scale, colors=colors,
                        window_sizes=window_sizes, rgb_range=255.0)
    out2 = jax.block_until_ready(out2)
    ref2 = _reference_forward(x2, params, scale=scale, colors=colors,
                              window_sizes=window_sizes, rgb_range=255.0)
    np.testing.assert_allclose(np.asarray(out2), np.asarray(ref2),
                               rtol=2e-2, atol=2.0)

    print("KERNEL_OK")
</pallas_src>

<mosaic_0001>
module attributes {stable_mosaic.version = 11 : i64} {
  func.func @_mpan_kernel(%arg0: i32, %arg1: i32, %arg2: memref<1x1x3x288xbf16, #tpu.memory_space<vmem>>, %arg3: memref<32x27xbf16, #tpu.memory_space<vmem>>, %arg4: memref<32x1xf32, #tpu.memory_space<vmem>>, %arg5: memref<32x288xbf16, #tpu.memory_space<vmem>>, %arg6: memref<32x1xf32, #tpu.memory_space<vmem>>, %arg7: memref<12x288xbf16, #tpu.memory_space<vmem>>, %arg8: memref<12x1xf32, #tpu.memory_space<vmem>>, %arg9: memref<1x1x12x144xf32, #tpu.memory_space<vmem>>, %arg10: memref<32x252xbf16, #tpu.memory_space<vmem>>, %arg11: memref<32x216xbf16, #tpu.memory_space<vmem>>) attributes {dimension_semantics = [#tpu.dimension_semantics<parallel>, #tpu.dimension_semantics<parallel>], iteration_bounds = array<i64: 2, 2>, scalar_prefetch = 0 : i64, scratch_operands = 2 : i64, tpu.core_type = #tpu.core_type<tc>, window_params = [{transform_indices = @transform_0, window_bounds = array<i64: 1, 1, 3, 288>}, {pipeline_mode = #tpu.pipeline_mode<synchronous>, transform_indices = @transform_1, window_bounds = array<i64: 32, 27>}, {pipeline_mode = #tpu.pipeline_mode<synchronous>, transform_indices = @transform_2, window_bounds = array<i64: 32, 1>}, {pipeline_mode = #tpu.pipeline_mode<synchronous>, transform_indices = @transform_3, window_bounds = array<i64: 32, 288>}, {pipeline_mode = #tpu.pipeline_mode<synchronous>, transform_indices = @transform_4, window_bounds = array<i64: 32, 1>}, {pipeline_mode = #tpu.pipeline_mode<synchronous>, transform_indices = @transform_5, window_bounds = array<i64: 12, 288>}, {pipeline_mode = #tpu.pipeline_mode<synchronous>, transform_indices = @transform_6, window_bounds = array<i64: 12, 1>}, {transform_indices = @transform_7, window_bounds = array<i64: 1, 1, 12, 144>}]} {
    %cst = arith.constant 0.000000e+00 : bf16
    %0 = vector.broadcast %cst : bf16 to vector<32x18xbf16>
    %c0 = arith.constant 0 : index
    %c0_0 = arith.constant 0 : index
    %1 = vector.load %arg10[%c0, %c0_0] : memref<32x252xbf16, #tpu.memory_space<vmem>>, vector<32x18xbf16>
    tpu.vector_store %arg10[%c0, %c0_0], %0 {strides = array<i32>} : memref<32x252xbf16, #tpu.memory_space<vmem>>, vector<32x18xbf16>,
    %c0_1 = arith.constant 0 : index
    %c234 = arith.constant 234 : index
    %2 = vector.load %arg10[%c0_1, %c234] : memref<32x252xbf16, #tpu.memory_space<vmem>>, vector<32x18xbf16>
    tpu.vector_store %arg10[%c0_1, %c234], %0 {strides = array<i32>} : memref<32x252xbf16, #tpu.memory_space<vmem>>, vector<32x18xbf16>,
    %c0_2 = arith.constant 0 : index
    %c0_3 = arith.constant 0 : index
    %3 = vector.load %arg11[%c0_2, %c0_3] : memref<32x216xbf16, #tpu.memory_space<vmem>>, vector<32x18xbf16>
    tpu.vector_store %arg11[%c0_2, %c0_3], %0 {strides = array<i32>} : memref<32x216xbf16, #tpu.memory_space<vmem>>, vector<32x18xbf16>,
    %c0_4 = arith.constant 0 : index
    %c198 = arith.constant 198 : index
    %4 = vector.load %arg11[%c0_4, %c198] : memref<32x216xbf16, #tpu.memory_space<vmem>>, vector<32x18xbf16>
    tpu.vector_store %arg11[%c0_4, %c198], %0 {strides = array<i32>} : memref<32x216xbf16, #tpu.memory_space<vmem>>, vector<32x18xbf16>,
    %c0_5 = arith.constant 0 : index
    %c0_6 = arith.constant 0 : index
    %5 = vector.load %arg3[%c0_5, %c0_6] : memref<32x27xbf16, #tpu.memory_space<vmem>>, vector<32x3xbf16>
    %c0_7 = arith.constant 0 : index
    %c0_8 = arith.constant 0 : index
    %c0_9 = arith.constant 0 : index
    %c17 = arith.constant 17 : index
    %6 = vector.load %arg2[%c0_7, %c0_8, %c0_9, %c17] : memref<1x1x3x288xbf16, #tpu.memory_space<vmem>>, vector<1x1x3x216xbf16>
    %7 = vector.shape_cast %6 : vector<1x1x3x216xbf16> to vector<3x216xbf16>
    %cst_10 = arith.constant dense<0.000000e+00> : vector<32x216xf32>
    %8 = tpu.matmul %5, %7, %cst_10 {dimension_numbers = #tpu.dot_dimension_numbers<[1], [0], [0], [1], [0, 0, 1, 1], [], []>} : vector<32x3xbf16>, vector<3x216xbf16>, vector<32x216xf32> -> vector<32x216xf32>
    %c0_11 = arith.constant 0 : index
    %c3 = arith.constant 3 : index
    %9 = vector.load %arg3[%c0_11, %c3] : memref<32x27xbf16, #tpu.memory_space<vmem>>, vector<32x3xbf16>
    %c0_12 = arith.constant 0 : index
    %c0_13 = arith.constant 0 : index
    %c0_14 = arith.constant 0 : index
    %c18 = arith.constant 18 : index
    %10 = vector.load %arg2[%c0_12, %c0_13, %c0_14, %c18] : memref<1x1x3x288xbf16, #tpu.memory_space<vmem>>, vector<1x1x3x216xbf16>
    %11 = vector.shape_cast %10 : vector<1x1x3x216xbf16> to vector<3x216xbf16>
    %cst_15 = arith.constant dense<0.000000e+00> : vector<32x216xf32>
    %12 = tpu.matmul %9, %11, %cst_15 {dimension_numbers = #tpu.dot_dimension_numbers<[1], [0], [0], [1], [0, 0, 1, 1], [], []>} : vector<32x3xbf16>, vector<3x216xbf16>, vector<32x216xf32> -> vector<32x216xf32>
    %13 = arith.addf %8, %12 : vector<32x216xf32>
    %c0_16 = arith.constant 0 : index
    %c6 = arith.constant 6 : index
    %14 = vector.load %arg3[%c0_16, %c6] : memref<32x27xbf16, #tpu.memory_space<vmem>>, vector<32x3xbf16>
    %c0_17 = arith.constant 0 : index
    %c0_18 = arith.constant 0 : index
    %c0_19 = arith.constant 0 : index
    %c19 = arith.constant 19 : index
    %15 = vector.load %arg2[%c0_17, %c0_18, %c0_19, %c19] : memref<1x1x3x288xbf16, #tpu.memory_space<vmem>>, vector<1x1x3x216xbf16>
    %16 = vector.shape_cast %15 : vector<1x1x3x216xbf16> to vector<3x216xbf16>
    %cst_20 = arith.constant dense<0.000000e+00> : vector<32x216xf32>
    %17 = tpu.matmul %14, %16, %cst_20 {dimension_numbers = #tpu.dot_dimension_numbers<[1], [0], [0], [1], [0, 0, 1, 1], [], []>} : vector<32x3xbf16>, vector<3x216xbf16>, vector<32x216xf32> -> vector<32x216xf32>
    %18 = arith.addf %13, %17 : vector<32x216xf32>
    %c0_21 = arith.constant 0 : index
    %c9 = arith.constant 9 : index
    %19 = vector.load %arg3[%c0_21, %c9] : memref<32x27xbf16, #tpu.memory_space<vmem>>, vector<32x3xbf16>
    %c0_22 = arith.constant 0 : index
    %c0_23 = arith.constant 0 : index
    %c0_24 = arith.constant 0 : index
    %c35 = arith.constant 35 : index
    %20 = vector.load %arg2[%c0_22, %c0_23, %c0_24, %c35] : memref<1x1x3x288xbf16, #tpu.memory_space<vmem>>, vector<1x1x3x216xbf16>
    %21 = vector.shape_cast %20 : vector<1x1x3x216xbf16> to vector<3x216xbf16>
    %cst_25 = arith.constant dense<0.000000e+00> : vector<32x216xf32>
    %22 = tpu.matmul %19, %21, %cst_25 {dimension_numbers = #tpu.dot_dimension_numbers<[1], [0], [0], [1], [0, 0, 1, 1], [], []>} : vector<32x3xbf16>, vector<3x216xbf16>, vector<32x216xf32> -> vector<32x216xf32>
    %23 = arith.addf %18, %22 : vector<32x216xf32>
    %c0_26 = arith.constant 0 : index
    %c12 = arith.constant 12 : index
    %24 = vector.load %arg3[%c0_26, %c12] : memref<32x27xbf16, #tpu.memory_space<vmem>>, vector<32x3xbf16>
    %c0_27 = arith.constant 0 : index
    %c0_28 = arith.constant 0 : index
    %c0_29 = arith.constant 0 : index
    %c36 = arith.constant 36 : index
    %25 = vector.load %arg2[%c0_27, %c0_28, %c0_29, %c36] : memref<1x1x3x288xbf16, #tpu.memory_space<vmem>>, vector<1x1x3x216xbf16>
    %26 = vector.shape_cast %25 : vector<1x1x3x216xbf16> to vector<3x216xbf16>
    %cst_30 = arith.constant dense<0.000000e+00> : vector<32x216xf32>
    %27 = tpu.matmul %24, %26, %cst_30 {dimension_numbers = #tpu.dot_dimension_numbers<[1], [0], [0], [1], [0, 0, 1, 1], [], []>} : vector<32x3xbf16>, vector<3x216xbf16>, vector<32x216xf32> -> vector<32x216xf32>
    %28 = arith.addf %23, %27 : vector<32x216xf32>
    %c0_31 = arith.constant 0 : index
    %c15 = arith.constant 15 : index
    %29 = vector.load %arg3[%c0_31, %c15] : memref<32x27xbf16, #tpu.memory_space<vmem>>, vector<32x3xbf16>
    %c0_32 = arith.constant 0 : index
    %c0_33 = arith.constant 0 : index
    %c0_34 = arith.constant 0 : index
    %c37 = arith.constant 37 : index
    %30 = vector.load %arg2[%c0_32, %c0_33, %c0_34, %c37] : memref<1x1x3x288xbf16, #tpu.memory_space<vmem>>, vector<1x1x3x216xbf16>
    %31 = vector.shape_cast %30 : vector<1x1x3x216xbf16> to vector<3x216xbf16>
    %cst_35 = arith.constant dense<0.000000e+00> : vector<32x216xf32>
    %32 = tpu.matmul %29, %31, %cst_35 {dimension_numbers = #tpu.dot_dimension_numbers<[1], [0], [0], [1], [0, 0, 1, 1], [], []>} : vector<32x3xbf16>, vector<3x216xbf16>, vector<32x216xf32> -> vector<32x216xf32>
    %33 = arith.addf %28, %32 : vector<32x216xf32>
    %c0_36 = arith.constant 0 : index
    %c18_37 = arith.constant 18 : index
    %34 = vector.load %arg3[%c0_36, %c18_37] : memref<32x27xbf16, #tpu.memory_space<vmem>>, vector<32x3xbf16>
    %c0_38 = arith.constant 0 : index
    %c0_39 = arith.constant 0 : index
    %c0_40 = arith.constant 0 : index
    %c53 = arith.constant 53 : index
    %35 = vector.load %arg2[%c0_38, %c0_39, %c0_40, %c53] : memref<1x1x3x288xbf16, #tpu.memory_space<vmem>>, vector<1x1x3x216xbf16>
    %36 = vector.shape_cast %35 : vector<1x1x3x216xbf16> to vector<3x216xbf16>
    %cst_41 = arith.constant dense<0.000000e+00> : vector<32x216xf32>
    %37 = tpu.matmul %34, %36, %cst_41 {dimension_numbers = #tpu.dot_dimension_numbers<[1], [0], [0], [1], [0, 0, 1, 1], [], []>} : vector<32x3xbf16>, vector<3x216xbf16>, vector<32x216xf32> -> vector<32x216xf32>
    %38 = arith.addf %33, %37 : vector<32x216xf32>
    %c0_42 = arith.constant 0 : index
    %c21 = arith.constant 21 : index
    %39 = vector.load %arg3[%c0_42, %c21] : memref<32x27xbf16, #tpu.memory_space<vmem>>, vector<32x3xbf16>
    %c0_43 = arith.constant 0 : index
    %c0_44 = arith.constant 0 : index
    %c0_45 = arith.constant 0 : index
    %c54 = arith.constant 54 : index
    %40 = vector.load %arg2[%c0_43, %c0_44, %c0_45, %c54] : memref<1x1x3x288xbf16, #tpu.memory_space<vmem>>, vector<1x1x3x216xbf16>
    %41 = vector.shape_cast %40 : vector<1x1x3x216xbf16> to vector<3x216xbf16>
    %cst_46 = arith.constant dense<0.000000e+00> : vector<32x216xf32>
    %42 = tpu.matmul %39, %41, %cst_46 {dimension_numbers = #tpu.dot_dimension_numbers<[1], [0], [0], [1], [0, 0, 1, 1], [], []>} : vector<32x3xbf16>, vector<3x216xbf16>, vector<32x216xf32> -> vector<32x216xf32>
    %43 = arith.addf %38, %42 : vector<32x216xf32>
    %c0_47 = arith.constant 0 : index
    %c24 = arith.constant 24 : index
    %44 = vector.load %arg3[%c0_47, %c24] : memref<32x27xbf16, #tpu.memory_space<vmem>>, vector<32x3xbf16>
    %c0_48 = arith.constant 0 : index
    %c0_49 = arith.constant 0 : index
    %c0_50 = arith.constant 0 : index
    %c55 = arith.constant 55 : index
    %45 = vector.load %arg2[%c0_48, %c0_49, %c0_50, %c55] : memref<1x1x3x288xbf16, #tpu.memory_space<vmem>>, vector<1x1x3x216xbf16>
    %46 = vector.shape_cast %45 : vector<1x1x3x216xbf16> to vector<3x216xbf16>
    %cst_51 = arith.constant dense<0.000000e+00> : vector<32x216xf32>
    %47 = tpu.matmul %44, %46, %cst_51 {dimension_numbers = #tpu.dot_dimension_numbers<[1], [0], [0], [1], [0, 0, 1, 1], [], []>} : vector<32x3xbf16>, vector<3x216xbf16>, vector<32x216xf32> -> vector<32x216xf32>
    %48 = arith.addf %43, %47 : vector<32x216xf32>
    %c0_52 = arith.constant 0 : index
    %c0_53 = arith.constant 0 : index
    %49 = vector.load %arg4[%c0_52, %c0_53] : memref<32x1xf32, #tpu.memory_space<vmem>>, vector<32x1xf32>
    %50 = vector.broadcast %49 : vector<32x1xf32> to vector<32x216xf32>
    %51 = arith.addf %48, %50 : vector<32x216xf32>
    %52 = tpu.iota {dimensions = array<i32: 1>} : vector<1x216xi32>
    %c18_i32 = arith.constant 18 : i32
    %c0_i32 = arith.constant 0 : i32
    %53 = arith.cmpi eq, %c18_i32, %c0_i32 : i32
    %c1_i32 = arith.constant 1 : i32
    %54 = arith.select %53, %c1_i32, %c18_i32 : i32
    %55 = vector.broadcast %54 : i32 to vector<1x216xi32>
    %56 = arith.remsi %52, %55 : vector<1x216xi32>
    %c0_i32_54 = arith.constant 0 : i32
    %57 = vector.broadcast %c0_i32_54 : i32 to vector<1x216xi32>
    %58 = arith.cmpi ne, %56, %57 : vector<1x216xi32>
    %c0_i32_55 = arith.constant 0 : i32
    %59 = vector.broadcast %c0_i32_55 : i32 to vector<1x216xi32>
    %60 = arith.cmpi slt, %56, %59 : vector<1x216xi32>
    %c0_i32_56 = arith.constant 0 : i32
    %61 = arith.cmpi slt, %54, %c0_i32_56 : i32
    %62 = vector.broadcast %61 : i1 to vector<1x216xi1>
    %63 = vector.broadcast %62 : vector<1x216xi1> to vector<1x216xi1>
    %64 = arith.xori %60, %63 : vector<1x216xi1>
    %65 = arith.andi %64, %58 : vector<1x216xi1>
    %66 = vector.broadcast %54 : i32 to vector<1x216xi32>
    %67 = arith.addi %56, %66 : vector<1x216xi32>
    %68 = arith.select %65, %67, %56 : vector<1x216xi1>, vector<1x216xi32>
    %c0_i32_57 = arith.constant 0 : i32
    %69 = vector.broadcast %c0_i32_57 : i32 to vector<1x216xi32>
    %70 = arith.cmpi ne, %68, %69 : vector<1x216xi32>
    %c17_i32 = arith.constant 17 : i32
    %71 = vector.broadcast %c17_i32 : i32 to vector<1x216xi32>
    %72 = arith.cmpi ne, %68, %71 : vector<1x216xi32>
    %73 = arith.andi %70, %72 : vector<1x216xi1>
    %cst_58 = arith.constant 0.000000e+00 : f32
    %74 = vector.shape_cast %73 : vector<1x216xi1> to vector<1x216xi1>
    %75 = vector.broadcast %74 : vector<1x216xi1> to vector<32x216xi1>
    %76 = vector.broadcast %cst_58 : f32 to vector<32x216xf32>
    %77 = arith.select %75, %51, %76 : vector<32x216xi1>, vector<32x216xf32>
    %78 = arith.truncf %77 : vector<32x216xf32> to vector<32x216xbf16>
    %c0_59 = arith.constant 0 : index
    %c18_60 = arith.constant 18 : index
    %79 = vector.load %arg10[%c0_59, %c18_60] : memref<32x252xbf16, #tpu.memory_space<vmem>>, vector<32x216xbf16>
    tpu.vector_store %arg10[%c0_59, %c18_60], %78 {strides = array<i32>} : memref<32x252xbf16, #tpu.memory_space<vmem>>, vector<32x216xbf16>,
    %c0_i32_61 = arith.constant 0 : i32
    %80 = arith.cmpi eq, %arg1, %c0_i32_61 : i32
    %81 = arith.extui %80 : i1 to i32
    %c0_i32_62 = arith.constant 0 : i32
    %82 = arith.cmpi ne, %81, %c0_i32_62 : i32
    scf.if %82 {
      %cst_172 = arith.constant 0.000000e+00 : bf16
      %202 = vector.broadcast %cst_172 : bf16 to vector<32x36xbf16>
      %c0_173 = arith.constant 0 : index
      %c18_174 = arith.constant 18 : index
      %203 = vector.load %arg10[%c0_173, %c18_174] : memref<32x252xbf16, #tpu.memory_space<vmem>>, vector<32x36xbf16>
      tpu.vector_store %arg10[%c0_173, %c18_174], %202 {strides = array<i32>} : memref<32x252xbf16, #tpu.memory_space<vmem>>, vector<32x36xbf16>,
    } else {
    }
    %c1_i32_63 = arith.constant 1 : i32
    %83 = arith.cmpi eq, %arg1, %c1_i32_63 : i32
    %84 = arith.extui %83 : i1 to i32
    %c0_i32_64 = arith.constant 0 : i32
    %85 = arith.cmpi ne, %84, %c0_i32_64 : i32
    scf.if %85 {
      %cst_172 = arith.constant 0.000000e+00 : bf16
      %202 = vector.broadcast %cst_172 : bf16 to vector<32x36xbf16>
      %c0_173 = arith.constant 0 : index
      %c198_174 = arith.constant 198 : index
      %203 = vector.load %arg10[%c0_173, %c198_174] : memref<32x252xbf16, #tpu.memory_space<vmem>>, vector<32x36xbf16>
      tpu.vector_store %arg10[%c0_173, %c198_174], %202 {strides = array<i32>} : memref<32x252xbf16, #tpu.memory_space<vmem>>, vector<32x36xbf16>,
    } else {
    }
    %c0_65 = arith.constant 0 : index
    %c0_66 = arith.constant 0 : index
    %86 = vector.load %arg5[%c0_65, %c0_66] : memref<32x288xbf16, #tpu.memory_space<vmem>>, vector<32x32xbf16>
    %c0_67 = arith.constant 0 : index
    %c17_68 = arith.constant 17 : index
    %87 = vector.load %arg10[%c0_67, %c17_68] : memref<32x252xbf16, #tpu.memory_space<vmem>>, vector<32x180xbf16>
    %cst_69 = arith.constant dense<0.000000e+00> : vector<32x180xf32>
    %88 = tpu.matmul %86, %87, %cst_69 {dimension_numbers = #tpu.dot_dimension_numbers<[1], [0], [0], [1], [0, 0, 1, 1], [], []>} : vector<32x32xbf16>, vector<32x180xbf16>, vector<32x180xf32> -> vector<32x180xf32>
    %c0_70 = arith.constant 0 : index
    %c32 = arith.constant 32 : index
    %89 = vector.load %arg5[%c0_70, %c32] : memref<32x288xbf16, #tpu.memory_space<vmem>>, vector<32x32xbf16>
    %c0_71 = arith.constant 0 : index
    %c18_72 = arith.constant 18 : index
    %90 = vector.load %arg10[%c0_71, %c18_72] : memref<32x252xbf16, #tpu.memory_space<vmem>>, vector<32x180xbf16>
    %cst_73 = arith.constant dense<0.000000e+00> : vector<32x180xf32>
    %91 = tpu.matmul %89, %90, %cst_73 {dimension_numbers = #tpu.dot_dimension_numbers<[1], [0], [0], [1], [0, 0, 1, 1], [], []>} : vector<32x32xbf16>, vector<32x180xbf16>, vector<32x180xf32> -> vector<32x180xf32>
    %92 = arith.addf %88, %91 : vector<32x180xf32>
    %c0_74 = arith.constant 0 : index
    %c64 = arith.constant 64 : index
    %93 = vector.load %arg5[%c0_74, %c64] : memref<32x288xbf16, #tpu.memory_space<vmem>>, vector<32x32xbf16>
    %c0_75 = arith.constant 0 : index
    %c19_76 = arith.constant 19 : index
    %94 = vector.load %arg10[%c0_75, %c19_76] : memref<32x252xbf16, #tpu.memory_space<vmem>>, vector<32x180xbf16>
    %cst_77 = arith.constant dense<0.000000e+00> : vector<32x180xf32>
    %95 = tpu.matmul %93, %94, %cst_77 {dimension_numbers = #tpu.dot_dimension_numbers<[1], [0], [0], [1], [0, 0, 1, 1], [], []>} : vector<32x32xbf16>, vector<32x180xbf16>, vector<32x180xf32> -> vector<32x180xf32>
    %96 = arith.addf %92, %95 : vector<32x180xf32>
    %c0_78 = arith.constant 0 : index
    %c96 = arith.constant 96 : index
    %97 = vector.load %arg5[%c0_78, %c96] : memref<32x288xbf16, #tpu.memory_space<vmem>>, vector<32x32xbf16>
    %c0_79 = arith.constant 0 : index
    %c35_80 = arith.constant 35 : index
    %98 = vector.load %arg10[%c0_79, %c35_80] : memref<32x252xbf16, #tpu.memory_space<vmem>>, vector<32x180xbf16>
    %cst_81 = arith.constant dense<0.000000e+00> : vector<32x180xf32>
    %99 = tpu.matmul %97, %98, %cst_81 {dimension_numbers = #tpu.dot_dimension_numbers<[1], [0], [0], [1], [0, 0, 1, 1], [], []>} : vector<32x32xbf16>, vector<32x180xbf16>, vector<32x180xf32> -> vector<32x180xf32>
    %100 = arith.addf %96, %99 : vector<32x180xf32>
    %c0_82 = arith.constant 0 : index
    %c128 = arith.constant 128 : index
    %101 = vector.load %arg5[%c0_82, %c128] : memref<32x288xbf16, #tpu.memory_space<vmem>>, vector<32x32xbf16>
    %c0_83 = arith.constant 0 : index
    %c36_84 = arith.constant 36 : index
    %102 = vector.load %arg10[%c0_83, %c36_84] : memref<32x252xbf16, #tpu.memory_space<vmem>>, vector<32x180xbf16>
    %cst_85 = arith.constant dense<0.000000e+00> : vector<32x180xf32>
    %103 = tpu.matmul %101, %102, %cst_85 {dimension_numbers = #tpu.dot_dimension_numbers<[1], [0], [0], [1], [0, 0, 1, 1], [], []>} : vector<32x32xbf16>, vector<32x180xbf16>, vector<32x180xf32> -> vector<32x180xf32>
    %104 = arith.addf %100, %103 : vector<32x180xf32>
    %c0_86 = arith.constant 0 : index
    %c160 = arith.constant 160 : index
    %105 = vector.load %arg5[%c0_86, %c160] : memref<32x288xbf16, #tpu.memory_space<vmem>>, vector<32x32xbf16>
    %c0_87 = arith.constant 0 : index
    %c37_88 = arith.constant 37 : index
    %106 = vector.load %arg10[%c0_87, %c37_88] : memref<32x252xbf16, #tpu.memory_space<vmem>>, vector<32x180xbf16>
    %cst_89 = arith.constant dense<0.000000e+00> : vector<32x180xf32>
    %107 = tpu.matmul %105, %106, %cst_89 {dimension_numbers = #tpu.dot_dimension_numbers<[1], [0], [0], [1], [0, 0, 1, 1], [], []>} : vector<32x32xbf16>, vector<32x180xbf16>, vector<32x180xf32> -> vector<32x180xf32>
    %108 = arith.addf %104, %107 : vector<32x180xf32>
    %c0_90 = arith.constant 0 : index
    %c192 = arith.constant 192 : index
    %109 = vector.load %arg5[%c0_90, %c192] : memref<32x288xbf16, #tpu.memory_space<vmem>>, vector<32x32xbf16>
    %c0_91 = arith.constant 0 : index
    %c53_92 = arith.constant 53 : index
    %110 = vector.load %arg10[%c0_91, %c53_92] : memref<32x252xbf16, #tpu.memory_space<vmem>>, vector<32x180xbf16>
    %cst_93 = arith.constant dense<0.000000e+00> : vector<32x180xf32>
    %111 = tpu.matmul %109, %110, %cst_93 {dimension_numbers = #tpu.dot_dimension_numbers<[1], [0], [0], [1], [0, 0, 1, 1], [], []>} : vector<32x32xbf16>, vector<32x180xbf16>, vector<32x180xf32> -> vector<32x180xf32>
    %112 = arith.addf %108, %111 : vector<32x180xf32>
    %c0_94 = arith.constant 0 : index
    %c224 = arith.constant 224 : index
    %113 = vector.load %arg5[%c0_94, %c224] : memref<32x288xbf16, #tpu.memory_space<vmem>>, vector<32x32xbf16>
    %c0_95 = arith.constant 0 : index
    %c54_96 = arith.constant 54 : index
    %114 = vector.load %arg10[%c0_95, %c54_96] : memref<32x252xbf16, #tpu.memory_space<vmem>>, vector<32x180xbf16>
    %cst_97 = arith.constant dense<0.000000e+00> : vector<32x180xf32>
    %115 = tpu.matmul %113, %114, %cst_97 {dimension_numbers = #tpu.dot_dimension_numbers<[1], [0], [0], [1], [0, 0, 1, 1], [], []>} : vector<32x32xbf16>, vector<32x180xbf16>, vector<32x180xf32> -> vector<32x180xf32>
    %116 = arith.addf %112, %115 : vector<32x180xf32>
    %c0_98 = arith.constant 0 : index
    %c256 = arith.constant 256 : index
    %117 = vector.load %arg5[%c0_98, %c256] : memref<32x288xbf16, #tpu.memory_space<vmem>>, vector<32x32xbf16>
    %c0_99 = arith.constant 0 : index
    %c55_100 = arith.constant 55 : index
    %118 = vector.load %arg10[%c0_99, %c55_100] : memref<32x252xbf16, #tpu.memory_space<vmem>>, vector<32x180xbf16>
    %cst_101 = arith.constant dense<0.000000e+00> : vector<32x180xf32>
    %119 = tpu.matmul %117, %118, %cst_101 {dimension_numbers = #tpu.dot_dimension_numbers<[1], [0], [0], [1], [0, 0, 1, 1], [], []>} : vector<32x32xbf16>, vector<32x180xbf16>, vector<32x180xf32> -> vector<32x180xf32>
    %120 = arith.addf %116, %119 : vector<32x180xf32>
    %c0_102 = arith.constant 0 : index
    %c0_103 = arith.constant 0 : index
    %121 = vector.load %arg6[%c0_102, %c0_103] : memref<32x1xf32, #tpu.memory_space<vmem>>, vector<32x1xf32>
    %122 = vector.broadcast %121 : vector<32x1xf32> to vector<32x180xf32>
    %123 = arith.addf %120, %122 : vector<32x180xf32>
    %c0_104 = arith.constant 0 : index
    %c36_105 = arith.constant 36 : index
    %124 = vector.load %arg10[%c0_104, %c36_105] : memref<32x252xbf16, #tpu.memory_space<vmem>>, vector<32x180xbf16>
    %125 = arith.extf %124 : vector<32x180xbf16> to vector<32x180xf32>
    %126 = tpu.iota {dimensions = array<i32: 1>} : vector<1x180xi32>
    %c18_i32_106 = arith.constant 18 : i32
    %c0_i32_107 = arith.constant 0 : i32
    %127 = arith.cmpi eq, %c18_i32_106, %c0_i32_107 : i32
    %c1_i32_108 = arith.constant 1 : i32
    %128 = arith.select %127, %c1_i32_108, %c18_i32_106 : i32
    %129 = vector.broadcast %128 : i32 to vector<1x180xi32>
    %130 = arith.remsi %126, %129 : vector<1x180xi32>
    %c0_i32_109 = arith.constant 0 : i32
    %131 = vector.broadcast %c0_i32_109 : i32 to vector<1x180xi32>
    %132 = arith.cmpi ne, %130, %131 : vector<1x180xi32>
    %c0_i32_110 = arith.constant 0 : i32
    %133 = vector.broadcast %c0_i32_110 : i32 to vector<1x180xi32>
    %134 = arith.cmpi slt, %130, %133 : vector<1x180xi32>
    %c0_i32_111 = arith.constant 0 : i32
    %135 = arith.cmpi slt, %128, %c0_i32_111 : i32
    %136 = vector.broadcast %135 : i1 to vector<1x180xi1>
    %137 = vector.broadcast %136 : vector<1x180xi1> to vector<1x180xi1>
    %138 = arith.xori %134, %137 : vector<1x180xi1>
    %139 = arith.andi %138, %132 : vector<1x180xi1>
    %140 = vector.broadcast %128 : i32 to vector<1x180xi32>
    %141 = arith.addi %130, %140 : vector<1x180xi32>
    %142 = arith.select %139, %141, %130 : vector<1x180xi1>, vector<1x180xi32>
    %c0_i32_112 = arith.constant 0 : i32
    %143 = vector.broadcast %c0_i32_112 : i32 to vector<1x180xi32>
    %144 = arith.cmpi ne, %142, %143 : vector<1x180xi32>
    %c17_i32_113 = arith.constant 17 : i32
    %145 = vector.broadcast %c17_i32_113 : i32 to vector<1x180xi32>
    %146 = arith.cmpi ne, %142, %145 : vector<1x180xi32>
    %147 = arith.andi %144, %146 : vector<1x180xi1>
    %148 = arith.addf %123, %125 : vector<32x180xf32>
    %cst_114 = arith.constant 0.000000e+00 : f32
    %149 = vector.shape_cast %147 : vector<1x180xi1> to vector<1x180xi1>
    %150 = vector.broadcast %149 : vector<1x180xi1> to vector<32x180xi1>
    %151 = vector.broadcast %cst_114 : f32 to vector<32x180xf32>
    %152 = arith.select %150, %148, %151 : vector<32x180xi1>, vector<32x180xf32>
    %153 = arith.truncf %152 : vector<32x180xf32> to vector<32x180xbf16>
    %c0_115 = arith.constant 0 : index
    %c18_116 = arith.constant 18 : index
    %154 = vector.load %arg11[%c0_115, %c18_116] : memref<32x216xbf16, #tpu.memory_space<vmem>>, vector<32x180xbf16>
    tpu.vector_store %arg11[%c0_115, %c18_116], %153 {strides = array<i32>} : memref<32x216xbf16, #tpu.memory_space<vmem>>, vector<32x180xbf16>,
    %c0_i32_117 = arith.constant 0 : i32
    %155 = arith.cmpi eq, %arg1, %c0_i32_117 : i32
    %156 = arith.extui %155 : i1 to i32
    %c0_i32_118 = arith.constant 0 : i32
    %157 = arith.cmpi ne, %156, %c0_i32_118 : i32
    scf.if %157 {
      %c0_172 = arith.constant 0 : index
      %c18_173 = arith.constant 18 : index
      %202 = vector.load %arg11[%c0_172, %c18_173] : memref<32x216xbf16, #tpu.memory_space<vmem>>, vector<32x18xbf16>
      tpu.vector_store %arg11[%c0_172, %c18_173], %0 {strides = array<i32>} : memref<32x216xbf16, #tpu.memory_space<vmem>>, vector<32x18xbf16>,
    } else {
    }
    %c1_i32_119 = arith.constant 1 : i32
    %158 = arith.cmpi eq, %arg1, %c1_i32_119 : i32
    %159 = arith.extui %158 : i1 to i32
    %c0_i32_120 = arith.constant 0 : i32
    %160 = arith.cmpi ne, %159, %c0_i32_120 : i32
    scf.if %160 {
      %c0_172 = arith.constant 0 : index
      %c180 = arith.constant 180 : index
      %202 = vector.load %arg11[%c0_172, %c180] : memref<32x216xbf16, #tpu.memory_space<vmem>>, vector<32x18xbf16>
      tpu.vector_store %arg11[%c0_172, %c180], %0 {strides = array<i32>} : memref<32x216xbf16, #tpu.memory_space<vmem>>, vector<32x18xbf16>,
    } else {
    }
    %c0_121 = arith.constant 0 : index
    %c0_122 = arith.constant 0 : index
    %161 = vector.load %arg7[%c0_121, %c0_122] : memref<12x288xbf16, #tpu.memory_space<vmem>>, vector<12x32xbf16>
    %c0_123 = arith.constant 0 : index
    %c17_124 = arith.constant 17 : index
    %162 = vector.load %arg11[%c0_123, %c17_124] : memref<32x216xbf16, #tpu.memory_space<vmem>>, vector<32x144xbf16>
    %cst_125 = arith.constant dense<0.000000e+00> : vector<12x144xf32>
    %163 = tpu.matmul %161, %162, %cst_125 {dimension_numbers = #tpu.dot_dimension_numbers<[1], [0], [0], [1], [0, 0, 1, 1], [], []>} : vector<12x32xbf16>, vector<32x144xbf16>, vector<12x144xf32> -> vector<12x144xf32>
    %c0_126 = arith.constant 0 : index
    %c32_127 = arith.constant 32 : index
    %164 = vector.load %arg7[%c0_126, %c32_127] : memref<12x288xbf16, #tpu.memory_space<vmem>>, vector<12x32xbf16>
    %c0_128 = arith.constant 0 : index
    %c18_129 = arith.constant 18 : index
    %165 = vector.load %arg11[%c0_128, %c18_129] : memref<32x216xbf16, #tpu.memory_space<vmem>>, vector<32x144xbf16>
    %cst_130 = arith.constant dense<0.000000e+00> : vector<12x144xf32>
    %166 = tpu.matmul %164, %165, %cst_130 {dimension_numbers = #tpu.dot_dimension_numbers<[1], [0], [0], [1], [0, 0, 1, 1], [], []>} : vector<12x32xbf16>, vector<32x144xbf16>, vector<12x144xf32> -> vector<12x144xf32>
    %167 = arith.addf %163, %166 : vector<12x144xf32>
    %c0_131 = arith.constant 0 : index
    %c64_132 = arith.constant 64 : index
    %168 = vector.load %arg7[%c0_131, %c64_132] : memref<12x288xbf16, #tpu.memory_space<vmem>>, vector<12x32xbf16>
    %c0_133 = arith.constant 0 : index
    %c19_134 = arith.constant 19 : index
    %169 = vector.load %arg11[%c0_133, %c19_134] : memref<32x216xbf16, #tpu.memory_space<vmem>>, vector<32x144xbf16>
    %cst_135 = arith.constant dense<0.000000e+00> : vector<12x144xf32>
    %170 = tpu.matmul %168, %169, %cst_135 {dimension_numbers = #tpu.dot_dimension_numbers<[1], [0], [0], [1], [0, 0, 1, 1], [], []>} : vector<12x32xbf16>, vector<32x144xbf16>, vector<12x144xf32> -> vector<12x144xf32>
    %171 = arith.addf %167, %170 : vector<12x144xf32>
    %c0_136 = arith.constant 0 : index
    %c96_137 = arith.constant 96 : index
    %172 = vector.load %arg7[%c0_136, %c96_137] : memref<12x288xbf16, #tpu.memory_space<vmem>>, vector<12x32xbf16>
    %c0_138 = arith.constant 0 : index
    %c35_139 = arith.constant 35 : index
    %173 = vector.load %arg11[%c0_138, %c35_139] : memref<32x216xbf16, #tpu.memory_space<vmem>>, vector<32x144xbf16>
    %cst_140 = arith.constant dense<0.000000e+00> : vector<12x144xf32>
    %174 = tpu.matmul %172, %173, %cst_140 {dimension_numbers = #tpu.dot_dimension_numbers<[1], [0], [0], [1], [0, 0, 1, 1], [], []>} : vector<12x32xbf16>, vector<32x144xbf16>, vector<12x144xf32> -> vector<12x144xf32>
    %175 = arith.addf %171, %174 : vector<12x144xf32>
    %c0_141 = arith.constant 0 : index
    %c128_142 = arith.constant 128 : index
    %176 = vector.load %arg7[%c0_141, %c128_142] : memref<12x288xbf16, #tpu.memory_space<vmem>>, vector<12x32xbf16>
    %c0_143 = arith.constant 0 : index
    %c36_144 = arith.constant 36 : index
    %177 = vector.load %arg11[%c0_143, %c36_144] : memref<32x216xbf16, #tpu.memory_space<vmem>>, vector<32x144xbf16>
    %cst_145 = arith.constant dense<0.000000e+00> : vector<12x144xf32>
    %178 = tpu.matmul %176, %177, %cst_145 {dimension_numbers = #tpu.dot_dimension_numbers<[1], [0], [0], [1], [0, 0, 1, 1], [], []>} : vector<12x32xbf16>, vector<32x144xbf16>, vector<12x144xf32> -> vector<12x144xf32>
    %179 = arith.addf %175, %178 : vector<12x144xf32>
    %c0_146 = arith.constant 0 : index
    %c160_147 = arith.constant 160 : index
    %180 = vector.load %arg7[%c0_146, %c160_147] : memref<12x288xbf16, #tpu.memory_space<vmem>>, vector<12x32xbf16>
    %c0_148 = arith.constant 0 : index
    %c37_149 = arith.constant 37 : index
    %181 = vector.load %arg11[%c0_148, %c37_149] : memref<32x216xbf16, #tpu.memory_space<vmem>>, vector<32x144xbf16>
    %cst_150 = arith.constant dense<0.000000e+00> : vector<12x144xf32>
    %182 = tpu.matmul %180, %181, %cst_150 {dimension_numbers = #tpu.dot_dimension_numbers<[1], [0], [0], [1], [0, 0, 1, 1], [], []>} : vector<12x32xbf16>, vector<32x144xbf16>, vector<12x144xf32> -> vector<12x144xf32>
    %183 = arith.addf %179, %182 : vector<12x144xf32>
    %c0_151 = arith.constant 0 : index
    %c192_152 = arith.constant 192 : index
    %184 = vector.load %arg7[%c0_151, %c192_152] : memref<12x288xbf16, #tpu.memory_space<vmem>>, vector<12x32xbf16>
    %c0_153 = arith.constant 0 : index
    %c53_154 = arith.constant 53 : index
    %185 = vector.load %arg11[%c0_153, %c53_154] : memref<32x216xbf16, #tpu.memory_space<vmem>>, vector<32x144xbf16>
    %cst_155 = arith.constant dense<0.000000e+00> : vector<12x144xf32>
    %186 = tpu.matmul %184, %185, %cst_155 {dimension_numbers = #tpu.dot_dimension_numbers<[1], [0], [0], [1], [0, 0, 1, 1], [], []>} : vector<12x32xbf16>, vector<32x144xbf16>, vector<12x144xf32> -> vector<12x144xf32>
    %187 = arith.addf %183, %186 : vector<12x144xf32>
    %c0_156 = arith.constant 0 : index
    %c224_157 = arith.constant 224 : index
    %188 = vector.load %arg7[%c0_156, %c224_157] : memref<12x288xbf16, #tpu.memory_space<vmem>>, vector<12x32xbf16>
    %c0_158 = arith.constant 0 : index
    %c54_159 = arith.constant 54 : index
    %189 = vector.load %arg11[%c0_158, %c54_159] : memref<32x216xbf16, #tpu.memory_space<vmem>>, vector<32x144xbf16>
    %cst_160 = arith.constant dense<0.000000e+00> : vector<12x144xf32>
    %190 = tpu.matmul %188, %189, %cst_160 {dimension_numbers = #tpu.dot_dimension_numbers<[1], [0], [0], [1], [0, 0, 1, 1], [], []>} : vector<12x32xbf16>, vector<32x144xbf16>, vector<12x144xf32> -> vector<12x144xf32>
    %191 = arith.addf %187, %190 : vector<12x144xf32>
    %c0_161 = arith.constant 0 : index
    %c256_162 = arith.constant 256 : index
    %192 = vector.load %arg7[%c0_161, %c256_162] : memref<12x288xbf16, #tpu.memory_space<vmem>>, vector<12x32xbf16>
    %c0_163 = arith.constant 0 : index
    %c55_164 = arith.constant 55 : index
    %193 = vector.load %arg11[%c0_163, %c55_164] : memref<32x216xbf16, #tpu.memory_space<vmem>>, vector<32x144xbf16>
    %cst_165 = arith.constant dense<0.000000e+00> : vector<12x144xf32>
    %194 = tpu.matmul %192, %193, %cst_165 {dimension_numbers = #tpu.dot_dimension_numbers<[1], [0], [0], [1], [0, 0, 1, 1], [], []>} : vector<12x32xbf16>, vector<32x144xbf16>, vector<12x144xf32> -> vector<12x144xf32>
    %195 = arith.addf %191, %194 : vector<12x144xf32>
    %c0_166 = arith.constant 0 : index
    %c0_167 = arith.constant 0 : index
    %196 = vector.load %arg8[%c0_166, %c0_167] : memref<12x1xf32, #tpu.memory_space<vmem>>, vector<12x1xf32>
    %197 = vector.broadcast %196 : vector<12x1xf32> to vector<12x144xf32>
    %198 = arith.addf %195, %197 : vector<12x144xf32>
    %c0_168 = arith.constant 0 : index
    %c0_169 = arith.constant 0 : index
    %c0_170 = arith.constant 0 : index
    %c0_171 = arith.constant 0 : index
    %199 = vector.load %arg9[%c0_168, %c0_169, %c0_170, %c0_171] : memref<1x1x12x144xf32, #tpu.memory_space<vmem>>, vector<1x1x12x144xf32>
    %200 = vector.shape_cast %199 : vector<1x1x12x144xf32> to vector<12x144xf32>
    %201 = vector.shape_cast %198 : vector<12x144xf32> to vector<1x1x12x144xf32>
    tpu.vector_store %arg9[%c0_168, %c0_169, %c0_170, %c0_171], %201 {strides = array<i32>} : memref<1x1x12x144xf32, #tpu.memory_space<vmem>>, vector<1x1x12x144xf32>,
    return
  }
  func.func @transform_0(%arg0: i32, %arg1: i32) -> (i32, i32, i32, i32) {
    %c0_i32 = arith.constant 0 : i32
    %c0_i32_0 = arith.constant 0 : i32
    %c0_i32_1 = arith.constant 0 : i32
    return %arg0, %arg1, %c0_i32, %c0_i32_0 : i32, i32, i32, i32
  }
  func.func @transform_1(%arg0: i32, %arg1: i32) -> (i32, i32) {
    %c0_i32 = arith.constant 0 : i32
    %c0_i32_0 = arith.constant 0 : i32
    %c0_i32_1 = arith.constant 0 : i32
    return %c0_i32, %c0_i32_0 : i32, i32
  }
  func.func @transform_2(%arg0: i32, %arg1: i32) -> (i32, i32) {
    %c0_i32 = arith.constant 0 : i32
    %c0_i32_0 = arith.constant 0 : i32
    %c0_i32_1 = arith.constant 0 : i32
    return %c0_i32, %c0_i32_0 : i32, i32
  }
  func.func @transform_3(%arg0: i32, %arg1: i32) -> (i32, i32) {
    %c0_i32 = arith.constant 0 : i32
    %c0_i32_0 = arith.constant 0 : i32
    %c0_i32_1 = arith.constant 0 : i32
    return %c0_i32, %c0_i32_0 : i32, i32
  }
  func.func @transform_4(%arg0: i32, %arg1: i32) -> (i32, i32) {
    %c0_i32 = arith.constant 0 : i32
    %c0_i32_0 = arith.constant 0 : i32
    %c0_i32_1 = arith.constant 0 : i32
    return %c0_i32, %c0_i32_0 : i32, i32
  }
  func.func @transform_5(%arg0: i32, %arg1: i32) -> (i32, i32) {
    %c0_i32 = arith.constant 0 : i32
    %c0_i32_0 = arith.constant 0 : i32
    %c0_i32_1 = arith.constant 0 : i32
    return %c0_i32, %c0_i32_0 : i32, i32
  }
  func.func @transform_6(%arg0: i32, %arg1: i32) -> (i32, i32) {
    %c0_i32 = arith.constant 0 : i32
    %c0_i32_0 = arith.constant 0 : i32
    %c0_i32_1 = arith.constant 0 : i32
    return %c0_i32, %c0_i32_0 : i32, i32
  }
  func.func @transform_7(%arg0: i32, %arg1: i32) -> (i32, i32, i32, i32) {
    %c0_i32 = arith.constant 0 : i32
    %c0_i32_0 = arith.constant 0 : i32
    %c0_i32_1 = arith.constant 0 : i32
    return %arg0, %arg1, %c0_i32, %c0_i32_0 : i32, i32, i32, i32
  }
}

</mosaic_0001>

<llo_original>
// kernel: tpu_custom_call.1
$region0: #{tpu_custom_call.1}
  #allocation0 [shape = 'u32[]', space=smem, size = 0x4, offset = 0x4, fixed_abs, tag = 'smem constant byte address 0x4 - core index']
  #allocation1 [shape = 'u32[72,128]{1,0:T(1,128)}', space=vmem, size = 0x9000, scoped, tag = 'internal scratch']
  #allocation2 [shape = 'bf16[32,252]{1,0:T(8,128)(2,1)}', space=vmem, size = 0x4000, scoped, tag = 'scratch operand']
  #allocation3 [shape = 'bf16[32,216]{1,0:T(8,128)(2,1)}', space=vmem, size = 0x4000, scoped, tag = 'scratch operand']
  %s0 = inlined_call_operand.vmem [shape: bf16[2,2,3,288], index: 0, kind: input, shape index: {}]
  %s1 = inlined_call_operand.vmem [shape: bf16[32,27], index: 1, kind: input, shape index: {}]
  %s2 = inlined_call_operand.vmem [shape: f32[32,1], index: 2, kind: input, shape index: {}]
  %s3 = inlined_call_operand.vmem [shape: bf16[32,288], index: 3, kind: input, shape index: {}]
  %s4 = inlined_call_operand.vmem [shape: f32[32,1], index: 4, kind: input, shape index: {}]
  %s5 = inlined_call_operand.vmem [shape: bf16[12,288], index: 5, kind: input, shape index: {}]
  %s6 = inlined_call_operand.vmem [shape: f32[12,1], index: 6, kind: input, shape index: {}]
  %s7 = inlined_call_operand.vmem [shape: f32[2,2,12,144], index: 7, kind: output, shape index: {}]
  %s8 = sld [smem:[#allocation0]]
  $region77: #{tpu_custom_call.1} parent=0
    _
  %s10 = ssub.s32 1, %s8
  %s11 = scalar_select 0, %s10, %s8
  loop: start=0, step=1, limit=6
  $region2: #{tpu_custom_call.1} parent=0 // loop_pre_header
    _
  $region3: #{tpu_custom_call.1} parent=0 // loop_header
    %s13 = sphi 0, %s17
    %p14 = scmp.ge.s32.totalorder %s13, 6
    %s20 = sphi 0, %s32
    %s21 = sphi 0, %s28
    %s22 = sphi 0, %s20
    %s23 = sphi 0, %s21
    %s24 = sphi 0, %s22
    %s25 = sphi 0, %s23
    %s37 = sphi 0, %s39
    %s40 = sphi 0, %s37
    %s41 = sphi 0, %s40
    %s57 = sphi 0, %s41
    %s61 = sphi 0, %s61
    %s63 = sphi 0, %s61
    %s64 = sphi 0, %s63
    %s78 = sphi 0, %s64
    %s82 = sphi 0, %s82
    %s84 = sphi 0, %s82
    %s85 = sphi 0, %s84
    %s99 = sphi 0, %s85
    %s103 = sphi 0, %s103
    %s105 = sphi 0, %s103
    %s106 = sphi 0, %s105
    %s120 = sphi 0, %s106
    %s124 = sphi 0, %s124
    %s126 = sphi 0, %s124
    %s127 = sphi 0, %s126
    %s141 = sphi 0, %s127
    %s145 = sphi 0, %s145
    %s147 = sphi 0, %s145
    %s148 = sphi 0, %s147
    %s162 = sphi 0, %s148
    %s166 = sphi 0, %s166
    %s168 = sphi 0, %s166
    %s169 = sphi 0, %s168
    %s183 = sphi 0, %s169
    %s191 = sphi 0, %s193
    %s194 = sphi 0, %s191
    %s195 = sphi 0, %s194
    %s211 = sphi 0, %s195
  $region4: #{tpu_custom_call.1} parent=0 // loop_header_branch
    %16 = sbr.rel (%p14) target = $region8
  $region5: #{tpu_custom_call.1} parent=0 // loop_body
    %s18 = ssub.s32 %s13, 1
    %s19 = ssub.s32 %s13, 2
    %s26 = sadd.s32 1, %s21
    %p27 = scmp.ge.s32.totalorder %s26, 2
    %s28 = scalar_select %p27, 0, %s26
    %s29 = sadd.s32 1, %s20
    %s30 = scalar_select %p27, %s29, %s20
    %p31 = scmp.ge.s32.totalorder %s30, 2
    %s32 = scalar_select %p31, 0, %s30
    %s33 = ssub.s32 %s20, %s32
    %s34 = ssub.s32 %s21, %s28
    %s35 = sor.u32 %s33, %s34
    %p36 = scmp.eq.s32.totalorder %s35, 0
    %s38 = sadd.s32 %s37, 1
    %s39 = scalar_select %p36, %s37, %s38
    %p42 = pneg %p36
    %p43 = scmp.eq.s32.totalorder %s13, 3
    %p44 = por %p42, %p43
    %p45 = scmp.ne.s32.totalorder %s37, %s40
    %p46 = scmp.eq.s32.totalorder %s13, 0
    %p47 = por %p45, %p46
    %p48 = scmp.ne.s32.totalorder %s37, %s40
    %p49 = scmp.eq.s32.totalorder %s18, 3
    %p50 = por %p48, %p49
    %p51 = scmp.ne.s32.totalorder %s40, %s41
    %p52 = scmp.eq.s32.totalorder %s18, 0
    %p53 = por %p51, %p52
    %p54 = scmp.ne.s32.totalorder %s40, %s41
    %p55 = scmp.eq.s32.totalorder %s19, 3
    %p56 = por %p54, %p55
    %p58 = scmp.ne.s32.totalorder %s41, %s57
    %p59 = scmp.eq.s32.totalorder %s19, 0
    %p60 = por %p58, %p59
    %s62 = sadd.s32 %s61, 1
    %p65 = scmp.eq.s32.totalorder %s13, 3
    %p66 = scmp.ne.s32.totalorder %s61, %s63
    %p67 = scmp.eq.s32.totalorder %s13, 0
    %p68 = por %p66, %p67
    %p69 = scmp.ne.s32.totalorder %s61, %s63
    %p70 = scmp.eq.s32.totalorder %s18, 3
    %p71 = por %p69, %p70
    %p72 = scmp.ne.s32.totalorder %s63, %s64
    %p73 = scmp.eq.s32.totalorder %s18, 0
    %p74 = por %p72, %p73
    %p75 = scmp.ne.s32.totalorder %s63, %s64
    %p76 = scmp.eq.s32.totalorder %s19, 3
    %p77 = por %p75, %p76
    %p79 = scmp.ne.s32.totalorder %s64, %s78
    %p80 = scmp.eq.s32.totalorder %s19, 0
    %p81 = por %p79, %p80
    %s83 = sadd.s32 %s82, 1
    %p86 = scmp.eq.s32.totalorder %s13, 3
    %p87 = scmp.ne.s32.totalorder %s82, %s84
    %p88 = scmp.eq.s32.totalorder %s13, 0
    %p89 = por %p87, %p88
    %p90 = scmp.ne.s32.totalorder %s82, %s84
    %p91 = scmp.eq.s32.totalorder %s18, 3
    %p92 = por %p90, %p91
    %p93 = scmp.ne.s32.totalorder %s84, %s85
    %p94 = scmp.eq.s32.totalorder %s18, 0
    %p95 = por %p93, %p94
    %p96 = scmp.ne.s32.totalorder %s84, %s85
    %p97 = scmp.eq.s32.totalorder %s19, 3
    %p98 = por %p96, %p97
    %p100 = scmp.ne.s32.totalorder %s85, %s99
    %p101 = scmp.eq.s32.totalorder %s19, 0
    %p102 = por %p100, %p101
    %s104 = sadd.s32 %s103, 1
    %p107 = scmp.eq.s32.totalorder %s13, 3
    %p108 = scmp.ne.s32.totalorder %s103, %s105
    %p109 = scmp.eq.s32.totalorder %s13, 0
    %p110 = por %p108, %p109
    %p111 = scmp.ne.s32.totalorder %s103, %s105
    %p112 = scmp.eq.s32.totalorder %s18, 3
    %p113 = por %p111, %p112
    %p114 = scmp.ne.s32.totalorder %s105, %s106
    %p115 = scmp.eq.s32.totalorder %s18, 0
    %p116 = por %p114, %p115
    %p117 = scmp.ne.s32.totalorder %s105, %s106
    %p118 = scmp.eq.s32.totalorder %s19, 3
    %p119 = por %p117, %p118
    %p121 = scmp.ne.s32.totalorder %s106, %s120
    %p122 = scmp.eq.s32.totalorder %s19, 0
    %p123 = por %p121, %p122
    %s125 = sadd.s32 %s124, 1
    %p128 = scmp.eq.s32.totalorder %s13, 3
    %p129 = scmp.ne.s32.totalorder %s124, %s126
    %p130 = scmp.eq.s32.totalorder %s13, 0
    %p131 = por %p129, %p130
    %p132 = scmp.ne.s32.totalorder %s124, %s126
    %p133 = scmp.eq.s32.totalorder %s18, 3
    %p134 = por %p132, %p133
    %p135 = scmp.ne.s32.totalorder %s126, %s127
    %p136 = scmp.eq.s32.totalorder %s18, 0
    %p137 = por %p135, %p136
    %p138 = scmp.ne.s32.totalorder %s126, %s127
    %p139 = scmp.eq.s32.totalorder %s19, 3
    %p140 = por %p138, %p139
    %p142 = scmp.ne.s32.totalorder %s127, %s141
    %p143 = scmp.eq.s32.totalorder %s19, 0
    %p144 = por %p142, %p143
    %s146 = sadd.s32 %s145, 1
    %p149 = scmp.eq.s32.totalorder %s13, 3
    %p150 = scmp.ne.s32.totalorder %s145, %s147
    %p151 = scmp.eq.s32.totalorder %s13, 0
    %p152 = por %p150, %p151
    %p153 = scmp.ne.s32.totalorder %s145, %s147
    %p154 = scmp.eq.s32.totalorder %s18, 3
    %p155 = por %p153, %p154
    %p156 = scmp.ne.s32.totalorder %s147, %s148
    %p157 = scmp.eq.s32.totalorder %s18, 0
    %p158 = por %p156, %p157
    %p159 = scmp.ne.s32.totalorder %s147, %s148
    %p160 = scmp.eq.s32.totalorder %s19, 3
    %p161 = por %p159, %p160
    %p163 = scmp.ne.s32.totalorder %s148, %s162
    %p164 = scmp.eq.s32.totalorder %s19, 0
    %p165 = por %p163, %p164
    %s167 = sadd.s32 %s166, 1
    %p170 = scmp.eq.s32.totalorder %s13, 3
    %p171 = scmp.ne.s32.totalorder %s166, %s168
    %p172 = scmp.eq.s32.totalorder %s13, 0
    %p173 = por %p171, %p172
    %p174 = scmp.ne.s32.totalorder %s166, %s168
    %p175 = scmp.eq.s32.totalorder %s18, 3
    %p176 = por %p174, %p175
    %p177 = scmp.ne.s32.totalorder %s168, %s169
    %p178 = scmp.eq.s32.totalorder %s18, 0
    %p179 = por %p177, %p178
    %p180 = scmp.ne.s32.totalorder %s168, %s169
    %p181 = scmp.eq.s32.totalorder %s19, 3
    %p182 = por %p180, %p181
    %p184 = scmp.ne.s32.totalorder %s169, %s183
    %p185 = scmp.eq.s32.totalorder %s19, 0
    %p186 = por %p184, %p185
    %s187 = ssub.s32 %s20, %s32
    %s188 = ssub.s32 %s21, %s28
    %s189 = sor.u32 %s187, %s188
    %p190 = scmp.eq.s32.totalorder %s189, 0
    %s192 = sadd.s32 %s191, 1
    %s193 = scalar_select %p190, %s191, %s192
    %p196 = pneg %p190
    %p197 = scmp.eq.s32.totalorder %s13, 3
    %p198 = por %p196, %p197
    %p199 = scmp.ne.s32.totalorder %s191, %s194
    %p200 = scmp.eq.s32.totalorder %s13, 0
    %p201 = por %p199, %p200
    %p202 = scmp.ne.s32.totalorder %s191, %s194
    %p203 = scmp.eq.s32.totalorder %s18, 3
    %p204 = por %p202, %p203
    %p205 = scmp.ne.s32.totalorder %s194, %s195
    %p206 = scmp.eq.s32.totalorder %s18, 0
    %p207 = por %p205, %p206
    %p208 = scmp.ne.s32.totalorder %s194, %s195
    %p209 = scmp.eq.s32.totalorder %s19, 3
    %p210 = por %p208, %p209
    %p212 = scmp.ne.s32.totalorder %s195, %s211
    %p213 = scmp.eq.s32.totalorder %s19, 0
    %p214 = por %p212, %p213
    %p215 = scmp.le.s32.totalorder 1, %s13
    %p216 = scmp.lt.s32.totalorder %s13, 5
    %p217 = pnand %p215, %p216
    %p218 = pneg %p217
    // Predicated region
    $region9: #{tpu_custom_call.1} parent=5 // pred_check
      _
    $region10: #{tpu_custom_call.1} parent=5 // pred_check_branch
      %220 = sbr.rel (%p217) target = $region12
    $region11: #{tpu_custom_call.1} parent=5 // pred_region
      %s221 = ssub.s32 %s13, 1
      // Predicated region
      $region13: #{tpu_custom_call.1} parent=11 // pred_check
        %p222 = pneg %p74
      $region14: #{tpu_custom_call.1} parent=11 // pred_check_branch
        %224 = sbr.rel (%p222) target = $region16
      $region15: #{tpu_custom_call.1} parent=11 // pred_region
        _
      $region16: #{tpu_custom_call.1} parent=11 // pred_fallthru
        _
      // Predicated region
      $region17: #{tpu_custom_call.1} parent=11 // pred_check
        %p225 = pneg %p95
      $region18: #{tpu_custom_call.1} parent=11 // pred_check_branch
        %227 = sbr.rel (%p225) target = $region20
      $region19: #{tpu_custom_call.1} parent=11 // pred_region
        _
      $region20: #{tpu_custom_call.1} parent=11 // pred_fallthru
        _
      // Predicated region
      $region21: #{tpu_custom_call.1} parent=11 // pred_check
        %p228 = pneg %p116
      $region22: #{tpu_custom_call.1} parent=11 // pred_check_branch
        %230 = sbr.rel (%p228) target = $region24
      $region23: #{tpu_custom_call.1} parent=11 // pred_region
        _
      $region24: #{tpu_custom_call.1} parent=11 // pred_fallthru
        _
      // Predicated region
      $region25: #{tpu_custom_call.1} parent=11 // pred_check
        %p231 = pneg %p137
      $region26: #{tpu_custom_call.1} parent=11 // pred_check_branch
        %233 = sbr.rel (%p231) target = $region28
      $region27: #{tpu_custom_call.1} parent=11 // pred_region
        _
      $region28: #{tpu_custom_call.1} parent=11 // pred_fallthru
        _
      // Predicated region
      $region29: #{tpu_custom_call.1} parent=11 // pred_check
        %p234 = pneg %p158
      $region30: #{tpu_custom_call.1} parent=11 // pred_check_branch
        %236 = sbr.rel (%p234) target = $region32
      $region31: #{tpu_custom_call.1} parent=11 // pred_region
        _
      $region32: #{tpu_custom_call.1} parent=11 // pred_fallthru
        _
      // Predicated region
      $region33: #{tpu_custom_call.1} parent=11 // pred_check
        %p237 = pneg %p179
      $region34: #{tpu_custom_call.1} parent=11 // pred_check_branch
        %239 = sbr.rel (%p237) target = $region36
      $region35: #{tpu_custom_call.1} parent=11 // pred_region
        _
      $region36: #{tpu_custom_call.1} parent=11 // pred_fallthru
        _
    $region12: #{tpu_custom_call.1} parent=5 // pred_fallthru
      _
    %p240 = scmp.lt.s32.totalorder %s13, 4
    // Predicated region
    $region37: #{tpu_custom_call.1} parent=5 // pred_check
      %p241 = pneg %p240
    $region38: #{tpu_custom_call.1} parent=5 // pred_check_branch
      %243 = sbr.rel (%p241) target = $region40
    $region39: #{tpu_custom_call.1} parent=5 // pred_region
      // Predicated region
      $region41: #{tpu_custom_call.1} parent=39 // pred_check
        %p244 = pneg %p47
      $region42: #{tpu_custom_call.1} parent=39 // pred_check_branch
        %246 = sbr.rel (%p244) target = $region44
      $region43: #{tpu_custom_call.1} parent=39 // pred_region
        %p247 = scmp.lt.s32.totalorder %s20, 1
        %s248 = scalar_select %p247, %s20, 1
        %p249 = scmp.lt.s32.totalorder %s21, 1
        %s250 = scalar_select %p249, %s21, 1
        %s251 = smul.addr %s250, 3
        %s252 = smul.addr %s248, 6
        %s253 = sadd.s32 %s251, %s252
        %s254 = smul.addr %s253, 2
        %s255 = scalar_lea.vmem %s0, %s254
      $region44: #{tpu_custom_call.1} parent=39 // pred_fallthru
        _
    $region40: #{tpu_custom_call.1} parent=5 // pred_fallthru
      _
    %p256 = scmp.le.s32.totalorder 1, %s13
    %p257 = scmp.lt.s32.totalorder %s13, 5
    %p258 = pnand %p256, %p257
    %p259 = pneg %p258
    // Predicated region
    $region45: #{tpu_custom_call.1} parent=5 // pred_check
      _
    $region46: #{tpu_custom_call.1} parent=5 // pred_check_branch
      %261 = sbr.rel (%p258) target = $region48
    $region47: #{tpu_custom_call.1} parent=5 // pred_region
      %s262 = ssub.s32 %s13, 1
      %p263 = scmp.lt.s32.totalorder %s22, 1
      %s264 = scalar_select %p263, %s22, 1
      %p265 = scmp.lt.s32.totalorder %s23, 1
      %s266 = scalar_select %p265, %s23, 1
      %s267 = smul.addr %s266, 3
      %s268 = smul.addr %s264, 6
      %s269 = sadd.s32 %s267, %s268
      %s270 = smul.addr %s269, 2
      %s271 = scalar_lea.vmem %s0, %s270
      %p272 = pneg %p53
      %p273 = pneg %p50
      %p274 = pneg %p74
      %p275 = pneg %p71
      %p276 = pneg %p95
      %p277 = pneg %p92
      %p278 = pneg %p116
      %p279 = pneg %p113
      %p280 = pneg %p137
      %p281 = pneg %p134
      %p282 = pneg %p158
      %p283 = pneg %p155
      %p284 = pneg %p179
      %p285 = pneg %p176
      %p286 = pneg %p207
      %p287 = pneg %p204
      %p288 = scmp.lt.s32.totalorder %s22, 1
      %s289 = scalar_select %p288, %s22, 1
      %p290 = scmp.lt.s32.totalorder %s23, 1
      %s291 = scalar_select %p290, %s23, 1
      %s292 = smul.addr %s291, 4
      %s293 = smul.addr %s289, 8
      %s294 = sadd.s32 %s292, %s293
      %s295 = smul.addr %s294, 8
      %s296 = scalar_lea.vmem %s7, %s295
      %p297 = scmp.lt.s32.totalorder %s22, 1
      %s298 = scalar_select %p297, %s22, 1
      %p299 = scmp.lt.s32.totalorder %s23, 1
      %s300 = scalar_select %p299, %s23, 1
      %s301 = smul.addr %s300, 3
      %s302 = smul.addr %s298, 6
      %s303 = sadd.s32 %s301, %s302
      %s304 = smul.addr %s303, 2
      %s305 = scalar_lea.vmem %s0, %s304
      %p306 = scmp.lt.s32.totalorder %s22, 1
      %s307 = scalar_select %p306, %s22, 1
      %p308 = scmp.lt.s32.totalorder %s23, 1
      %s309 = scalar_select %p308, %s23, 1
      %s310 = smul.addr %s309, 4
      %s311 = smul.addr %s307, 8
      %s312 = sadd.s32 %s310, %s311
      %s313 = smul.addr %s312, 8
      %s314 = scalar_lea.vmem %s7, %s313
      %vm316 = vcmask 142336
      %317 = vst.msk [vmem:[#allocation2] sm:$0xf] %vm316, 0
      %318 = vst.msk [vmem:[#allocation2 + $0x8] sm:$0xf] %vm316, 0
      %319 = vst.msk [vmem:[#allocation2 + $0x10] sm:$0xf] %vm316, 0
      %320 = vst.msk [vmem:[#allocation2 + $0x18] sm:$0xf] %vm316, 0
      %vm321 = vcmask 1011536
      %322 = vst.msk [vmem:[#allocation2 + $0x4] sm:$0xf] %vm321, 0
      %323 = vst.msk [vmem:[#allocation2 + $0xc] sm:$0xf] %vm321, 0
      %324 = vst.msk [vmem:[#allocation2 + $0x14] sm:$0xf] %vm321, 0
      %325 = vst.msk [vmem:[#allocation2 + $0x1c] sm:$0xf] %vm321, 0
      %326 = vst.msk [vmem:[#allocation3] sm:$0xf] %vm316, 0
      %327 = vst.msk [vmem:[#allocation3 + $0x8] sm:$0xf] %vm316, 0
      %328 = vst.msk [vmem:[#allocation3 + $0x10] sm:$0xf] %vm316, 0
      %329 = vst.msk [vmem:[#allocation3 + $0x18] sm:$0xf] %vm316, 0
      %vm330 = vcmask 716336
      %331 = vst.msk [vmem:[#allocation3 + $0x4] sm:$0xf] %vm330, 0
      %332 = vst.msk [vmem:[#allocation3 + $0xc] sm:$0xf] %vm330, 0
      %333 = vst.msk [vmem:[#allocation3 + $0x14] sm:$0xf] %vm330, 0
      %334 = vst.msk [vmem:[#allocation3 + $0x1c] sm:$0xf] %vm330, 0
      %v335 = vld [vmem:[%s1] sm:$0xf]
      %v336 = vld [vmem:[%s1 + $0x4] sm:$0xf]
      %v337 = vld [vmem:[%s1 + $0x8] sm:$0xf]
      %v338 = vld [vmem:[%s1 + $0xc] sm:$0xf]
      %v339 = vld [vmem:[%s305] sm:$0xf]
      %v344 = vunpack.c.l.b16 %v335
      %v345 = vunpack.c.l.b16 %v336
      %v346 = vunpack.c.l.b16 %v337
      %v347 = vunpack.c.l.b16 %v338
      %v348 = vpack.c.b16 %v345, %v344
      %v349 = vpack.c.b16 %v347, %v346
      %350 = vrot.lane.b32.xlu0 %v348, 125
      %v351 = vpop.permute.xlu0 %350
      %352 = vrot.lane.b32.xlu0 %v349, 125
      %v353 = vpop.permute.xlu0 %352
      %355 = vst [vmem:[#allocation1] ss:$4 sm:$0xff] %v339
      %v356 = vld.sshfl [vmem:[#allocation1] sm:$0xff pattern:$0x73625140]
      %v358 = vld.sshfl [vmem:[#allocation1 + $0x8] sm:$0xff pattern:$0x73625140]
      %360 = vrot.lane.b32.xlu0 %v356, 110
      %v361 = vpop.permute.xlu0 %360
      %362 = vrot.lane.b32.xlu0 %v358, 110
      %v363 = vpop.permute.xlu0 %362
      %vm364 = vcmask 900096
      %v365 = vsel %vm364, %v361, %v363
      %vm366 = vcmask 23552
      %v368 = vsel %vm366, %v351, 0
      %v371 = vsel %vm366, %v353, 0
      %vm373 = vcmask 1040384
      %vm374 = vcmask 1041408
      %v375 = vsel %vm373, 4294967295, 65535
      %v376 = vsel %vm374, %v375, 0
      %v378 = vand.u32 %v365, %v376
      %v381 = vand.u32 %v363, %v376
      %383 = vmatpush.bf16.msra.mxu0 0
      %384 = vmatpush.bf16.msra.mxu0 0
      %385 = vmatpush.bf16.msra.mxu0 0
      %386 = vmatpush.bf16.msra.mxu0 0
      %387 = vmatpush.bf16.msra.mxu0 0
      %388 = vmatpush.bf16.msra.mxu0 0
      %389 = vmatpush.bf16.msra.mxu0 0
      %390 = vmatpush.bf16.msra.mxu0 %v378
      %391 = vmatmul.bf16.gmra.mxu0 %v368
      %v392 = vpop.f32.mrf.mxu0
      %v393 = vadd.f32 0.0, %v392
      %v394 = vpop.f32.mrf.mxu0
      %v395 = vadd.f32 0.0, %v394
      %396 = vmatmul.bf16.gmra.mxu0 %v371
      %v397 = vpop.f32.mrf.mxu0
      %v398 = vadd.f32 0.0, %v397
      %v399 = vpop.f32.mrf.mxu0
      %v400 = vadd.f32 0.0, %v399
      %401 = vdwg.mxu0
      %402 = vmatpush.bf16.msra.mxu0 0
      %403 = vmatpush.bf16.msra.mxu0 0
      %404 = vmatpush.bf16.msra.mxu0 0
      %405 = vmatpush.bf16.msra.mxu0 0
      %406 = vmatpush.bf16.msra.mxu0 0
      %407 = vmatpush.bf16.msra.mxu0 0
      %408 = vmatpush.bf16.msra.mxu0 0
      %409 = vmatpush.bf16.msra.mxu0 %v381
      %410 = vmatmul.bf16.gmra.mxu0 %v368
      %v411 = vpop.f32.mrf.mxu0
      %v412 = vadd.f32 0.0, %v411
      %v413 = vpop.f32.mrf.mxu0
      %v414 = vadd.f32 0.0, %v413
      %415 = vmatmul.bf16.gmra.mxu0 %v371
      %v416 = vpop.f32.mrf.mxu0
      %v417 = vadd.f32 0.0, %v416
      %v418 = vpop.f32.mrf.mxu0
      %v419 = vadd.f32 0.0, %v418
      %420 = vdwg.mxu0
      %421 = vst [vmem:[#allocation1] ss:$4 sm:$0xff] %v339
      %v422 = vld.sshfl [vmem:[#allocation1] sm:$0xff pattern:$0x73625140]
      %v424 = vld.sshfl [vmem:[#allocation1 + $0x8] sm:$0xff pattern:$0x73625140]
      %426 = vrot.lane.b32.xlu0 %v422, 111
      %v427 = vpop.permute.xlu0 %426
      %428 = vrot.lane.b32.xlu0 %v424, 111
      %v429 = vpop.permute.xlu0 %428
      %vm430 = vcmask 908288
      %v431 = vsel %vm430, %v427, %v429
      %v433 = vsel %vm366, %v348, 0
      %v436 = vsel %vm366, %v349, 0
      %v439 = vand.u32 %v431, %v376
      %v442 = vand.u32 %v429, %v376
      %444 = vmatpush.bf16.msra.mxu0 0
      %445 = vmatpush.bf16.msra.mxu0 0
      %446 = vmatpush.bf16.msra.mxu0 0
      %447 = vmatpush.bf16.msra.mxu0 0
      %448 = vmatpush.bf16.msra.mxu0 0
      %449 = vmatpush.bf16.msra.mxu0 0
      %450 = vmatpush.bf16.msra.mxu0 0
      %451 = vmatpush.bf16.msra.mxu0 %v439
      %452 = vmatmul.bf16.gmra.mxu0 %v433
      %v453 = vpop.f32.mrf.mxu0
      %v454 = vadd.f32 %v393, %v453
      %v455 = vpop.f32.mrf.mxu0
      %v456 = vadd.f32 %v395, %v455
      %457 = vmatmul.bf16.gmra.mxu0 %v436
      %v458 = vpop.f32.mrf.mxu0
      %v459 = vadd.f32 %v398, %v458
      %v460 = vpop.f32.mrf.mxu0
      %v461 = vadd.f32 %v400, %v460
      %462 = vdwg.mxu0
      %463 = vmatpush.bf16.msra.mxu0 0
      %464 = vmatpush.bf16.msra.mxu0 0
      %465 = vmatpush.bf16.msra.mxu0 0
      %466 = vmatpush.bf16.msra.mxu0 0
      %467 = vmatpush.bf16.msra.mxu0 0
      %468 = vmatpush.bf16.msra.mxu0 0
      %469 = vmatpush.bf16.msra.mxu0 0
      %470 = vmatpush.bf16.msra.mxu0 %v442
      %471 = vmatmul.bf16.gmra.mxu0 %v433
      %v472 = vpop.f32.mrf.mxu0
      %v473 = vadd.f32 %v412, %v472
      %v474 = vpop.f32.mrf.mxu0
      %v475 = vadd.f32 %v414, %v474
      %476 = vmatmul.bf16.gmra.mxu0 %v436
      %v477 = vpop.f32.mrf.mxu0
      %v478 = vadd.f32 %v417, %v477
      %v479 = vpop.f32.mrf.mxu0
      %v480 = vadd.f32 %v419, %v479
      %481 = vdwg.mxu0
      %v482 = vld [vmem:[%s1] sm:$0xf]
      %v483 = vld [vmem:[%s1 + $0x4] sm:$0xf]
      %v484 = vld [vmem:[%s1 + $0x8] sm:$0xf]
      %v485 = vld [vmem:[%s1 + $0xc] sm:$0xf]
      %v486 = vld [vmem:[%s305] sm:$0xf]
      %v491 = vunpack.c.l.b16 %v482
      %v492 = vunpack.c.l.b16 %v483
      %v493 = vunpack.c.l.b16 %v484
      %v494 = vunpack.c.l.b16 %v485
      %v495 = vpack.c.b16 %v492, %v491
      %v496 = vpack.c.b16 %v494, %v493
      %497 = vrot.lane.b32.xlu0 %v495, 122
      %v498 = vpop.permute.xlu0 %497
      %499 = vrot.lane.b32.xlu0 %v496, 122
      %v500 = vpop.permute.xlu0 %499
      %502 = vst [vmem:[#allocation1] ss:$4 sm:$0xff] %v486
      %v503 = vld.sshfl [vmem:[#allocation1] sm:$0xff pattern:$0x73625140]
      %v505 = vld.sshfl [vmem:[#allocation1 + $0x8] sm:$0xff pattern:$0x73625140]
      %507 = vrot.lane.b32.xlu0 %v503, 109
      %v508 = vpop.permute.xlu0 %507
      %509 = vrot.lane.b32.xlu0 %v505, 109
      %v510 = vpop.permute.xlu0 %509
      %vm511 = vcmask 891904
      %v512 = vsel %vm511, %v508, %v510
      %v514 = vsel %vm366, %v498, 0
      %v517 = vsel %vm366, %v500, 0
      %v520 = vand.u32 %v512, %v376
      %v523 = vand.u32 %v510, %v376
      %525 = vmatpush.bf16.msra.mxu0 0
      %526 = vmatpush.bf16.msra.mxu0 0
      %527 = vmatpush.bf16.msra.mxu0 0
      %528 = vmatpush.bf16.msra.mxu0 0
      %529 = vmatpush.bf16.msra.mxu0 0
      %530 = vmatpush.bf16.msra.mxu0 0
      %531 = vmatpush.bf16.msra.mxu0 0
      %532 = vmatpush.bf16.msra.mxu0 %v520
      %533 = vmatmul.bf16.gmra.mxu0 %v514
      %v534 = vpop.f32.mrf.mxu0
      %v535 = vadd.f32 0.0, %v534
      %v536 = vpop.f32.mrf.mxu0
      %v537 = vadd.f32 0.0, %v536
      %538 = vmatmul.bf16.gmra.mxu0 %v517
      %v539 = vpop.f32.mrf.mxu0
      %v540 = vadd.f32 0.0, %v539
      %v541 = vpop.f32.mrf.mxu0
      %v542 = vadd.f32 0.0, %v541
      %543 = vdwg.mxu0
      %544 = vmatpush.bf16.msra.mxu0 0
      %545 = vmatpush.bf16.msra.mxu0 0
      %546 = vmatpush.bf16.msra.mxu0 0
      %547 = vmatpush.bf16.msra.mxu0 0
      %548 = vmatpush.bf16.msra.mxu0 0
      %549 = vmatpush.bf16.msra.mxu0 0
      %550 = vmatpush.bf16.msra.mxu0 0
      %551 = vmatpush.bf16.msra.mxu0 %v523
      %552 = vmatmul.bf16.gmra.mxu0 %v514
      %v553 = vpop.f32.mrf.mxu0
      %v554 = vadd.f32 0.0, %v553
      %v555 = vpop.f32.mrf.mxu0
      %v556 = vadd.f32 0.0, %v555
      %557 = vmatmul.bf16.gmra.mxu0 %v517
      %v558 = vpop.f32.mrf.mxu0
      %v559 = vadd.f32 0.0, %v558
      %v560 = vpop.f32.mrf.mxu0
      %v561 = vadd.f32 0.0, %v560
      %562 = vdwg.mxu0
      %v563 = vadd.f32 %v454, %v535
      %v564 = vadd.f32 %v473, %v554
      %v565 = vadd.f32 %v456, %v537
      %v566 = vadd.f32 %v475, %v556
      %v567 = vadd.f32 %v459, %v540
      %v568 = vadd.f32 %v478, %v559
      %v569 = vadd.f32 %v461, %v542
      %v570 = vadd.f32 %v480, %v561
      %v571 = vld [vmem:[%s1] sm:$0xf]
      %v572 = vld [vmem:[%s1 + $0x4] sm:$0xf]
      %v573 = vld [vmem:[%s1 + $0x8] sm:$0xf]
      %v574 = vld [vmem:[%s1 + $0xc] sm:$0xf]
      %v575 = vld [vmem:[%s305] sm:$0xf]
      %v580 = vunpack.c.l.b16 %v571
      %v581 = vunpack.c.l.b16 %v572
      %v582 = vunpack.c.l.b16 %v573
      %v583 = vunpack.c.l.b16 %v574
      %v584 = vpack.c.b16 %v581, %v580
      %v585 = vpack.c.b16 %v583, %v582
      %586 = vrot.lane.b32.xlu0 %v584, 119
      %v587 = vpop.permute.xlu0 %586
      %588 = vrot.lane.b32.xlu0 %v585, 119
      %v589 = vpop.permute.xlu0 %588
      %591 = vst [vmem:[#allocation1] ss:$4 sm:$0xff] %v575
      %v592 = vld.sshfl [vmem:[#allocation1] sm:$0xff pattern:$0x73625140]
      %v594 = vld.sshfl [vmem:[#allocation1 + $0x8] sm:$0xff pattern:$0x73625140]
      %596 = vrot.lane.b32.xlu0 %v592, 93
      %v597 = vpop.permute.xlu0 %596
      %598 = vrot.lane.b32.xlu0 %v594, 93
      %v599 = vpop.permute.xlu0 %598
      %vm600 = vcmask 760832
      %v601 = vsel %vm600, %v597, %v599
      %v603 = vsel %vm366, %v587, 0
      %v606 = vsel %vm366, %v589, 0
      %v609 = vand.u32 %v601, %v376
      %v612 = vand.u32 %v599, %v376
      %614 = vmatpush.bf16.msra.mxu0 0
      %615 = vmatpush.bf16.msra.mxu0 0
      %616 = vmatpush.bf16.msra.mxu0 0
      %617 = vmatpush.bf16.msra.mxu0 0
      %618 = vmatpush.bf16.msra.mxu0 0
      %619 = vmatpush.bf16.msra.mxu0 0
      %620 = vmatpush.bf16.msra.mxu0 0
      %621 = vmatpush.bf16.msra.mxu0 %v609
      %622 = vmatmul.bf16.gmra.mxu0 %v603
      %v623 = vpop.f32.mrf.mxu0
      %v624 = vadd.f32 0.0, %v623
      %v625 = vpop.f32.mrf.mxu0
      %v626 = vadd.f32 0.0, %v625
      %627 = vmatmul.bf16.gmra.mxu0 %v606
      %v628 = vpop.f32.mrf.mxu0
      %v629 = vadd.f32 0.0, %v628
      %v630 = vpop.f32.mrf.mxu0
      %v631 = vadd.f32 0.0, %v630
      %632 = vdwg.mxu0
      %633 = vmatpush.bf16.msra.mxu0 0
      %634 = vmatpush.bf16.msra.mxu0 0
      %635 = vmatpush.bf16.msra.mxu0 0
      %636 = vmatpush.bf16.msra.mxu0 0
      %637 = vmatpush.bf16.msra.mxu0 0
      %638 = vmatpush.bf16.msra.mxu0 0
      %639 = vmatpush.bf16.msra.mxu0 0
      %640 = vmatpush.bf16.msra.mxu0 %v612
      %641 = vmatmul.bf16.gmra.mxu0 %v603
      %v642 = vpop.f32.mrf.mxu0
      %v643 = vadd.f32 0.0, %v642
      %v644 = vpop.f32.mrf.mxu0
      %v645 = vadd.f32 0.0, %v644
      %646 = vmatmul.bf16.gmra.mxu0 %v606
      %v647 = vpop.f32.mrf.mxu0
      %v648 = vadd.f32 0.0, %v647
      %v649 = vpop.f32.mrf.mxu0
      %v650 = vadd.f32 0.0, %v649
      %651 = vdwg.mxu0
      %v652 = vadd.f32 %v563, %v624
      %v653 = vadd.f32 %v564, %v643
      %v654 = vadd.f32 %v565, %v626
      %v655 = vadd.f32 %v566, %v645
      %v656 = vadd.f32 %v567, %v629
      %v657 = vadd.f32 %v568, %v648
      %v658 = vadd.f32 %v569, %v631
      %v659 = vadd.f32 %v570, %v650
      %v660 = vld [vmem:[%s1] sm:$0xf]
      %v661 = vld [vmem:[%s1 + $0x4] sm:$0xf]
      %v662 = vld [vmem:[%s1 + $0x8] sm:$0xf]
      %v663 = vld [vmem:[%s1 + $0xc] sm:$0xf]
      %v664 = vld [vmem:[%s305] sm:$0xf]
      %v669 = vunpack.c.l.b16 %v660
      %v670 = vunpack.c.l.b16 %v661
      %v671 = vunpack.c.l.b16 %v662
      %v672 = vunpack.c.l.b16 %v663
      %v673 = vpack.c.b16 %v670, %v669
      %v674 = vpack.c.b16 %v672, %v671
      %675 = vrot.lane.b32.xlu0 %v673, 116
      %v676 = vpop.permute.xlu0 %675
      %677 = vrot.lane.b32.xlu0 %v674, 116
      %v678 = vpop.permute.xlu0 %677
      %680 = vst [vmem:[#allocation1] ss:$4 sm:$0xff] %v664
      %v681 = vld.sshfl [vmem:[#allocation1] sm:$0xff pattern:$0x73625140]
      %v683 = vld.sshfl [vmem:[#allocation1 + $0x8] sm:$0xff pattern:$0x73625140]
      %685 = vrot.lane.b32.xlu0 %v681, 92
      %v686 = vpop.permute.xlu0 %685
      %687 = vrot.lane.b32.xlu0 %v683, 92
      %v688 = vpop.permute.xlu0 %687
      %vm689 = vcmask 752640
      %v690 = vsel %vm689, %v686, %v688
      %v692 = vsel %vm366, %v676, 0
      %v695 = vsel %vm366, %v678, 0
      %v698 = vand.u32 %v690, %v376
      %v701 = vand.u32 %v688, %v376
      %703 = vmatpush.bf16.msra.mxu0 0
      %704 = vmatpush.bf16.msra.mxu0 0
      %705 = vmatpush.bf16.msra.mxu0 0
      %706 = vmatpush.bf16.msra.mxu0 0
      %707 = vmatpush.bf16.msra.mxu0 0
      %708 = vmatpush.bf16.msra.mxu0 0
      %709 = vmatpush.bf16.msra.mxu0 0
      %710 = vmatpush.bf16.msra.mxu0 %v698
      %711 = vmatmul.bf16.gmra.mxu0 %v692
      %v712 = vpop.f32.mrf.mxu0
      %v713 = vadd.f32 0.0, %v712
      %v714 = vpop.f32.mrf.mxu0
      %v715 = vadd.f32 0.0, %v714
      %716 = vmatmul.bf16.gmra.mxu0 %v695
      %v717 = vpop.f32.mrf.mxu0
      %v718 = vadd.f32 0.0, %v717
      %v719 = vpop.f32.mrf.mxu0
      %v720 = vadd.f32 0.0, %v719
      %721 = vdwg.mxu0
      %722 = vmatpush.bf16.msra.mxu0 0
      %723 = vmatpush.bf16.msra.mxu0 0
      %724 = vmatpush.bf16.msra.mxu0 0
      %725 = vmatpush.bf16.msra.mxu0 0
      %726 = vmatpush.bf16.msra.mxu0 0
      %727 = vmatpush.bf16.msra.mxu0 0
      %728 = vmatpush.bf16.msra.mxu0 0
      %729 = vmatpush.bf16.msra.mxu0 %v701
      %730 = vmatmul.bf16.gmra.mxu0 %v692
      %v731 = vpop.f32.mrf.mxu0
      %v732 = vadd.f32 0.0, %v731
      %v733 = vpop.f32.mrf.mxu0
      %v734 = vadd.f32 0.0, %v733
      %735 = vmatmul.bf16.gmra.mxu0 %v695
      %v736 = vpop.f32.mrf.mxu0
      %v737 = vadd.f32 0.0, %v736
      %v738 = vpop.f32.mrf.mxu0
      %v739 = vadd.f32 0.0, %v738
      %740 = vdwg.mxu0
      %v741 = vadd.f32 %v652, %v713
      %v742 = vadd.f32 %v653, %v732
      %v743 = vadd.f32 %v654, %v715
      %v744 = vadd.f32 %v655, %v734
      %v745 = vadd.f32 %v656, %v718
      %v746 = vadd.f32 %v657, %v737
      %v747 = vadd.f32 %v658, %v720
      %v748 = vadd.f32 %v659, %v739
      %v749 = vld [vmem:[%s1] sm:$0xf]
      %v750 = vld [vmem:[%s1 + $0x4] sm:$0xf]
      %v751 = vld [vmem:[%s1 + $0x8] sm:$0xf]
      %v752 = vld [vmem:[%s1 + $0xc] sm:$0xf]
      %v753 = vld [vmem:[%s305] sm:$0xf]
      %v758 = vunpack.c.l.b16 %v749
      %v759 = vunpack.c.l.b16 %v750
      %v760 = vunpack.c.l.b16 %v751
      %v761 = vunpack.c.l.b16 %v752
      %v762 = vpack.c.b16 %v759, %v758
      %v763 = vpack.c.b16 %v761, %v760
      %764 = vrot.lane.b32.xlu0 %v762, 113
      %v765 = vpop.permute.xlu0 %764
      %766 = vrot.lane.b32.xlu0 %v763, 113
      %v767 = vpop.permute.xlu0 %766
      %769 = vst [vmem:[#allocation1] ss:$4 sm:$0xff] %v753
      %v770 = vld.sshfl [vmem:[#allocation1] sm:$0xff pattern:$0x73625140]
      %v772 = vld.sshfl [vmem:[#allocation1 + $0x8] sm:$0xff pattern:$0x73625140]
      %774 = vrot.lane.b32.xlu0 %v770, 91
      %v775 = vpop.permute.xlu0 %774
      %776 = vrot.lane.b32.xlu0 %v772, 91
      %v777 = vpop.permute.xlu0 %776
      %vm778 = vcmask 744448
      %v779 = vsel %vm778, %v775, %v777
      %v781 = vsel %vm366, %v765, 0
      %v784 = vsel %vm366, %v767, 0
      %v787 = vand.u32 %v779, %v376
      %v790 = vand.u32 %v777, %v376
      %792 = vmatpush.bf16.msra.mxu0 0
      %793 = vmatpush.bf16.msra.mxu0 0
      %794 = vmatpush.bf16.msra.mxu0 0
      %795 = vmatpush.bf16.msra.mxu0 0
      %796 = vmatpush.bf16.msra.mxu0 0
      %797 = vmatpush.bf16.msra.mxu0 0
      %798 = vmatpush.bf16.msra.mxu0 0
      %799 = vmatpush.bf16.msra.mxu0 %v787
      %800 = vmatmul.bf16.gmra.mxu0 %v781
      %v801 = vpop.f32.mrf.mxu0
      %v802 = vadd.f32 0.0, %v801
      %v803 = vpop.f32.mrf.mxu0
      %v804 = vadd.f32 0.0, %v803
      %805 = vmatmul.bf16.gmra.mxu0 %v784
      %v806 = vpop.f32.mrf.mxu0
      %v807 = vadd.f32 0.0, %v806
      %v808 = vpop.f32.mrf.mxu0
      %v809 = vadd.f32 0.0, %v808
      %810 = vdwg.mxu0
      %811 = vmatpush.bf16.msra.mxu0 0
      %812 = vmatpush.bf16.msra.mxu0 0
      %813 = vmatpush.bf16.msra.mxu0 0
      %814 = vmatpush.bf16.msra.mxu0 0
      %815 = vmatpush.bf16.msra.mxu0 0
      %816 = vmatpush.bf16.msra.mxu0 0
      %817 = vmatpush.bf16.msra.mxu0 0
      %818 = vmatpush.bf16.msra.mxu0 %v790
      %819 = vmatmul.bf16.gmra.mxu0 %v781
      %v820 = vpop.f32.mrf.mxu0
      %v821 = vadd.f32 0.0, %v820
      %v822 = vpop.f32.mrf.mxu0
      %v823 = vadd.f32 0.0, %v822
      %824 = vmatmul.bf16.gmra.mxu0 %v784
      %v825 = vpop.f32.mrf.mxu0
      %v826 = vadd.f32 0.0, %v825
      %v827 = vpop.f32.mrf.mxu0
      %v828 = vadd.f32 0.0, %v827
      %829 = vdwg.mxu0
      %v830 = vadd.f32 %v741, %v802
      %v831 = vadd.f32 %v742, %v821
      %v832 = vadd.f32 %v743, %v804
      %v833 = vadd.f32 %v744, %v823
      %v834 = vadd.f32 %v745, %v807
      %v835 = vadd.f32 %v746, %v826
      %v836 = vadd.f32 %v747, %v809
      %v837 = vadd.f32 %v748, %v828
      %v838 = vld [vmem:[%s1] sm:$0xf]
      %v839 = vld [vmem:[%s1 + $0x4] sm:$0xf]
      %v840 = vld [vmem:[%s1 + $0x8] sm:$0xf]
      %v841 = vld [vmem:[%s1 + $0xc] sm:$0xf]
      %v842 = vld [vmem:[%s305] sm:$0x3f]
      %v847 = vunpack.c.l.b16 %v838
      %v848 = vunpack.c.l.b16 %v839
      %v849 = vunpack.c.l.b16 %v840
      %v850 = vunpack.c.l.b16 %v841
      %v851 = vpack.c.b16 %v848, %v847
      %v852 = vpack.c.b16 %v850, %v849
      %853 = vrot.lane.b32.xlu0 %v851, 110
      %v854 = vpop.permute.xlu0 %853
      %855 = vrot.lane.b32.xlu0 %v852, 110
      %v856 = vpop.permute.xlu0 %855
      %858 = vst [vmem:[#allocation1] ss:$4 sm:$0xff] %v842
      %v859 = vld.sshfl [vmem:[#allocation1] sm:$0xff pattern:$0x73625140]
      %v861 = vld.sshfl [vmem:[#allocation1 + $0x8] sm:$0xff pattern:$0x73625140]
      %v863 = vld.sshfl [vmem:[#allocation1 + $0x10] sm:$0xff pattern:$0x73625140]
      %865 = vrot.lane.b32.xlu0 %v859, 75
      %v866 = vpop.permute.xlu0 %865
      %867 = vrot.lane.b32.xlu0 %v861, 75
      %v868 = vpop.permute.xlu0 %867
      %869 = vrot.lane.b32.xlu0 %v863, 75
      %v870 = vpop.permute.xlu0 %869
      %vm871 = vcmask 613376
      %v872 = vsel %vm871, %v866, %v868
      %v873 = vsel %vm871, %v868, %v870
      %v875 = vsel %vm366, %v854, 0
      %v878 = vsel %vm366, %v856, 0
      %v881 = vand.u32 %v872, %v376
      %v884 = vand.u32 %v873, %v376
      %886 = vmatpush.bf16.msra.mxu0 0
      %887 = vmatpush.bf16.msra.mxu0 0
      %888 = vmatpush.bf16.msra.mxu0 0
      %889 = vmatpush.bf16.msra.mxu0 0
      %890 = vmatpush.bf16.msra.mxu0 0
      %891 = vmatpush.bf16.msra.mxu0 0
      %892 = vmatpush.bf16.msra.mxu0 0
      %893 = vmatpush.bf16.msra.mxu0 %v881
      %894 = vmatmul.bf16.gmra.mxu0 %v875
      %v895 = vpop.f32.mrf.mxu0
      %v896 = vadd.f32 0.0, %v895
      %v897 = vpop.f32.mrf.mxu0
      %v898 = vadd.f32 0.0, %v897
      %899 = vmatmul.bf16.gmra.mxu0 %v878
      %v900 = vpop.f32.mrf.mxu0
      %v901 = vadd.f32 0.0, %v900
      %v902 = vpop.f32.mrf.mxu0
      %v903 = vadd.f32 0.0, %v902
      %904 = vdwg.mxu0
      %905 = vmatpush.bf16.msra.mxu0 0
      %906 = vmatpush.bf16.msra.mxu0 0
      %907 = vmatpush.bf16.msra.mxu0 0
      %908 = vmatpush.bf16.msra.mxu0 0
      %909 = vmatpush.bf16.msra.mxu0 0
      %910 = vmatpush.bf16.msra.mxu0 0
      %911 = vmatpush.bf16.msra.mxu0 0
      %912 = vmatpush.bf16.msra.mxu0 %v884
      %913 = vmatmul.bf16.gmra.mxu0 %v875
      %v914 = vpop.f32.mrf.mxu0
      %v915 = vadd.f32 0.0, %v914
      %v916 = vpop.f32.mrf.mxu0
      %v917 = vadd.f32 0.0, %v916
      %918 = vmatmul.bf16.gmra.mxu0 %v878
      %v919 = vpop.f32.mrf.mxu0
      %v920 = vadd.f32 0.0, %v919
      %v921 = vpop.f32.mrf.mxu0
      %v922 = vadd.f32 0.0, %v921
      %923 = vdwg.mxu0
      %v924 = vadd.f32 %v830, %v896
      %v925 = vadd.f32 %v831, %v915
      %v926 = vadd.f32 %v832, %v898
      %v927 = vadd.f32 %v833, %v917
      %v928 = vadd.f32 %v834, %v901
      %v929 = vadd.f32 %v835, %v920
      %v930 = vadd.f32 %v836, %v903
      %v931 = vadd.f32 %v837, %v922
      %v932 = vld [vmem:[%s1] sm:$0xf]
      %v933 = vld [vmem:[%s1 + $0x4] sm:$0xf]
      %v934 = vld [vmem:[%s1 + $0x8] sm:$0xf]
      %v935 = vld [vmem:[%s1 + $0xc] sm:$0xf]
      %v936 = vld [vmem:[%s305] sm:$0x3f]
      %v941 = vunpack.c.l.b16 %v932
      %v942 = vunpack.c.l.b16 %v933
      %v943 = vunpack.c.l.b16 %v934
      %v944 = vunpack.c.l.b16 %v935
      %v945 = vpack.c.b16 %v942, %v941
      %v946 = vpack.c.b16 %v944, %v943
      %947 = vrot.lane.b32.xlu0 %v945, 107
      %v948 = vpop.permute.xlu0 %947
      %949 = vrot.lane.b32.xlu0 %v946, 107
      %v950 = vpop.permute.xlu0 %949
      %952 = vst [vmem:[#allocation1] ss:$4 sm:$0xff] %v936
      %v953 = vld.sshfl [vmem:[#allocation1] sm:$0xff pattern:$0x73625140]
      %v955 = vld.sshfl [vmem:[#allocation1 + $0x8] sm:$0xff pattern:$0x73625140]
      %v957 = vld.sshfl [vmem:[#allocation1 + $0x10] sm:$0xff pattern:$0x73625140]
      %959 = vrot.lane.b32.xlu0 %v953, 74
      %v960 = vpop.permute.xlu0 %959
      %961 = vrot.lane.b32.xlu0 %v955, 74
      %v962 = vpop.permute.xlu0 %961
      %963 = vrot.lane.b32.xlu0 %v957, 74
      %v964 = vpop.permute.xlu0 %963
      %vm965 = vcmask 605184
      %v966 = vsel %vm965, %v960, %v962
      %v967 = vsel %vm965, %v962, %v964
      %v969 = vsel %vm366, %v948, 0
      %v972 = vsel %vm366, %v950, 0
      %v975 = vand.u32 %v966, %v376
      %v978 = vand.u32 %v967, %v376
      %980 = vmatpush.bf16.msra.mxu0 0
      %981 = vmatpush.bf16.msra.mxu0 0
      %982 = vmatpush.bf16.msra.mxu0 0
      %983 = vmatpush.bf16.msra.mxu0 0
      %984 = vmatpush.bf16.msra.mxu0 0
      %985 = vmatpush.bf16.msra.mxu0 0
      %986 = vmatpush.bf16.msra.mxu0 0
      %987 = vmatpush.bf16.msra.mxu0 %v975
      %988 = vmatmul.bf16.gmra.mxu0 %v969
      %v989 = vpop.f32.mrf.mxu0
      %v990 = vadd.f32 0.0, %v989
      %v991 = vpop.f32.mrf.mxu0
      %v992 = vadd.f32 0.0, %v991
      %993 = vmatmul.bf16.gmra.mxu0 %v972
      %v994 = vpop.f32.mrf.mxu0
      %v995 = vadd.f32 0.0, %v994
      %v996 = vpop.f32.mrf.mxu0
      %v997 = vadd.f32 0.0, %v996
      %998 = vdwg.mxu0
      %999 = vmatpush.bf16.msra.mxu0 0
      %1000 = vmatpush.bf16.msra.mxu0 0
      %1001 = vmatpush.bf16.msra.mxu0 0
      %1002 = vmatpush.bf16.msra.mxu0 0
      %1003 = vmatpush.bf16.msra.mxu0 0
      %1004 = vmatpush.bf16.msra.mxu0 0
      %1005 = vmatpush.bf16.msra.mxu0 0
      %1006 = vmatpush.bf16.msra.mxu0 %v978
      %1007 = vmatmul.bf16.gmra.mxu0 %v969
      %v1008 = vpop.f32.mrf.mxu0
      %v1009 = vadd.f32 0.0, %v1008
      %v1010 = vpop.f32.mrf.mxu0
      %v1011 = vadd.f32 0.0, %v1010
      %1012 = vmatmul.bf16.gmra.mxu0 %v972
      %v1013 = vpop.f32.mrf.mxu0
      %v1014 = vadd.f32 0.0, %v1013
      %v1015 = vpop.f32.mrf.mxu0
      %v1016 = vadd.f32 0.0, %v1015
      %1017 = vdwg.mxu0
      %v1018 = vadd.f32 %v924, %v990
      %v1019 = vadd.f32 %v925, %v1009
      %v1020 = vadd.f32 %v926, %v992
      %v1021 = vadd.f32 %v927, %v1011
      %v1022 = vadd.f32 %v928, %v995
      %v1023 = vadd.f32 %v929, %v1014
      %v1024 = vadd.f32 %v930, %v997
      %v1025 = vadd.f32 %v931, %v1016
      %v1026 = vld [vmem:[%s1] sm:$0xf]
      %v1027 = vld [vmem:[%s1 + $0x4] sm:$0xf]
      %v1028 = vld [vmem:[%s1 + $0x8] sm:$0xf]
      %v1029 = vld [vmem:[%s1 + $0xc] sm:$0xf]
      %v1030 = vld [vmem:[%s305] sm:$0x3f]
      %v1035 = vunpack.c.l.b16 %v1026
      %v1036 = vunpack.c.l.b16 %v1027
      %v1037 = vunpack.c.l.b16 %v1028
      %v1038 = vunpack.c.l.b16 %v1029
      %v1039 = vpack.c.b16 %v1036, %v1035
      %v1040 = vpack.c.b16 %v1038, %v1037
      %1041 = vrot.lane.b32.xlu0 %v1039, 104
      %v1042 = vpop.permute.xlu0 %1041
      %1043 = vrot.lane.b32.xlu0 %v1040, 104
      %v1044 = vpop.permute.xlu0 %1043
      %1046 = vst [vmem:[#allocation1] ss:$4 sm:$0xff] %v1030
      %v1047 = vld.sshfl [vmem:[#allocation1] sm:$0xff pattern:$0x73625140]
      %v1049 = vld.sshfl [vmem:[#allocation1 + $0x8] sm:$0xff pattern:$0x73625140]
      %v1051 = vld.sshfl [vmem:[#allocation1 + $0x10] sm:$0xff pattern:$0x73625140]
      %1053 = vrot.lane.b32.xlu0 %v1047, 73
      %v1054 = vpop.permute.xlu0 %1053
      %1055 = vrot.lane.b32.xlu0 %v1049, 73
      %v1056 = vpop.permute.xlu0 %1055
      %1057 = vrot.lane.b32.xlu0 %v1051, 73
      %v1058 = vpop.permute.xlu0 %1057
      %vm1059 = vcmask 596992
      %v1060 = vsel %vm1059, %v1054, %v1056
      %v1061 = vsel %vm1059, %v1056, %v1058
      %v1063 = vsel %vm366, %v1042, 0
      %v1066 = vsel %vm366, %v1044, 0
      %v1069 = vand.u32 %v1060, %v376
      %v1072 = vand.u32 %v1061, %v376
      %1074 = vmatpush.bf16.msra.mxu0 0
      %1075 = vmatpush.bf16.msra.mxu0 0
      %1076 = vmatpush.bf16.msra.mxu0 0
      %1077 = vmatpush.bf16.msra.mxu0 0
      %1078 = vmatpush.bf16.msra.mxu0 0
      %1079 = vmatpush.bf16.msra.mxu0 0
      %1080 = vmatpush.bf16.msra.mxu0 0
      %1081 = vmatpush.bf16.msra.mxu0 %v1069
      %1082 = vmatmul.bf16.gmra.mxu0 %v1063
      %v1083 = vpop.f32.mrf.mxu0
      %v1084 = vadd.f32 0.0, %v1083
      %v1085 = vpop.f32.mrf.mxu0
      %v1086 = vadd.f32 0.0, %v1085
      %1087 = vmatmul.bf16.gmra.mxu0 %v1066
      %v1088 = vpop.f32.mrf.mxu0
      %v1089 = vadd.f32 0.0, %v1088
      %v1090 = vpop.f32.mrf.mxu0
      %v1091 = vadd.f32 0.0, %v1090
      %1092 = vdwg.mxu0
      %1093 = vmatpush.bf16.msra.mxu0 0
      %1094 = vmatpush.bf16.msra.mxu0 0
      %1095 = vmatpush.bf16.msra.mxu0 0
      %1096 = vmatpush.bf16.msra.mxu0 0
      %1097 = vmatpush.bf16.msra.mxu0 0
      %1098 = vmatpush.bf16.msra.mxu0 0
      %1099 = vmatpush.bf16.msra.mxu0 0
      %1100 = vmatpush.bf16.msra.mxu0 %v1072
      %1101 = vmatmul.bf16.gmra.mxu0 %v1063
      %v1102 = vpop.f32.mrf.mxu0
      %v1103 = vadd.f32 0.0, %v1102
      %v1104 = vpop.f32.mrf.mxu0
      %v1105 = vadd.f32 0.0, %v1104
      %1106 = vmatmul.bf16.gmra.mxu0 %v1066
      %v1107 = vpop.f32.mrf.mxu0
      %v1108 = vadd.f32 0.0, %v1107
      %v1109 = vpop.f32.mrf.mxu0
      %v1110 = vadd.f32 0.0, %v1109
      %1111 = vdwg.mxu0
      %v1112 = vadd.f32 %v1018, %v1084
      %v1113 = vadd.f32 %v1019, %v1103
      %v1114 = vadd.f32 %v1020, %v1086
      %v1115 = vadd.f32 %v1021, %v1105
      %v1116 = vadd.f32 %v1022, %v1089
      %v1117 = vadd.f32 %v1023, %v1108
      %v1118 = vadd.f32 %v1024, %v1091
      %v1119 = vadd.f32 %v1025, %v1110
      %v1120 = vld [vmem:[%s2] sm:$0xff]
      %v1121 = vld [vmem:[%s2 + $0x8] sm:$0xff]
      %v1122 = vld [vmem:[%s2 + $0x10] sm:$0xff]
      %v1123 = vld [vmem:[%s2 + $0x18] sm:$0xff]
      %1125 = vset.pattern.permute.xlu0 0
      %1126 = vperm.xlu0 %1125, %v1120
      %v1127 = vpop.permute.xlu0 %1126
      %1130 = vset.pattern.permute.xlu0 0
      %1131 = vperm.xlu0 %1130, %v1121
      %v1132 = vpop.permute.xlu0 %1131
      %1135 = vset.pattern.permute.xlu0 0
      %1136 = vperm.xlu0 %1135, %v1122
      %v1137 = vpop.permute.xlu0 %1136
      %1140 = vset.pattern.permute.xlu0 0
      %1141 = vperm.xlu0 %1140, %v1123
      %v1142 = vpop.permute.xlu0 %1141
      %v1144 = vadd.f32 %v1112, %v1127
      %v1145 = vadd.f32 %v1113, %v1127
      %v1146 = vadd.f32 %v1114, %v1132
      %v1147 = vadd.f32 %v1115, %v1132
      %v1148 = vadd.f32 %v1116, %v1137
      %v1149 = vadd.f32 %v1117, %v1137
      %v1150 = vadd.f32 %v1118, %v1142
      %v1151 = vadd.f32 %v1119, %v1142
      %v1152 = vlaneseq
      %v1153 = vand.u32 %v1152, 127
      %v1154 = vadd.s32 %v1153, 128
      %vm1155 = vcmp.lt.s32.totalorder %v1153, 0
      %v1156 = vsub.s32 0, %v1153
      %v1157 = vsel %vm1155, %v1156, %v1153
      %v1158 = vand.u32 %v1157, 65535
      %v1159 = vshrl.u32 %v1157, 16
      %v1161 = vmul.u32 %v1158, 14564
      %v1162 = vmul.u32 %v1158, 58254
      %v1163 = vmul.u32 %v1159, 14564
      %v1164 = vmul.u32 %v1159, 58254
      %v1165 = vshll.u32 %v1162, 16
      %v1166 = vshrl.u32 %v1162, 16
      %v1167 = vshll.u32 %v1163, 16
      %v1168 = vshrl.u32 %v1163, 16
      %vm1169 = vc.u32 %v1161, %v1165
      %v1170 = vsel %vm1169, 1, 0
      %v1171 = vadd.s32 %v1161, %v1165
      %v1172 = vadd.s32 %v1164, %v1170
      %vm1173 = vc.u32 %v1171, %v1167
      %v1174 = vsel %vm1173, 1, 0
      %v1175 = vadd.s32 %v1171, %v1167
      %v1176 = vadd.s32 %v1172, %v1174
      %v1177 = vadd.s32 %v1176, %v1166
      %v1178 = vadd.s32 %v1177, %v1168
      %v1179 = vshrl.u32 %v1178, 4
      %v1180 = vmul.u32 %v1179, 18
      %v1181 = vsub.s32 %v1157, %v1180
      %v1182 = vsub.s32 0, %v1181
      %v1183 = vsel %vm1155, %v1182, %v1181
      %vm1184 = vcmp.lt.s32.totalorder %v1154, 0
      %v1185 = vsub.s32 0, %v1154
      %v1186 = vsel %vm1184, %v1185, %v1154
      %v1187 = vand.u32 %v1186, 65535
      %v1188 = vshrl.u32 %v1186, 16
      %v1190 = vmul.u32 %v1187, 14564
      %v1191 = vmul.u32 %v1187, 58254
      %v1192 = vmul.u32 %v1188, 14564
      %v1193 = vmul.u32 %v1188, 58254
      %v1194 = vshll.u32 %v1191, 16
      %v1195 = vshrl.u32 %v1191, 16
      %v1196 = vshll.u32 %v1192, 16
      %v1197 = vshrl.u32 %v1192, 16
      %vm1198 = vc.u32 %v1190, %v1194
      %v1199 = vsel %vm1198, 1, 0
      %v1200 = vadd.s32 %v1190, %v1194
      %v1201 = vadd.s32 %v1193, %v1199
      %vm1202 = vc.u32 %v1200, %v1196
      %v1203 = vsel %vm1202, 1, 0
      %v1204 = vadd.s32 %v1200, %v1196
      %v1205 = vadd.s32 %v1201, %v1203
      %v1206 = vadd.s32 %v1205, %v1195
      %v1207 = vadd.s32 %v1206, %v1197
      %v1208 = vshrl.u32 %v1207, 4
      %v1209 = vmul.u32 %v1208, 18
      %v1210 = vsub.s32 %v1186, %v1209
      %v1211 = vsub.s32 0, %v1210
      %v1212 = vsel %vm1184, %v1211, %v1210
      %vm1213 = vcmp.ne.s32.totalorder %v1183, 0
      %vm1214 = vcmp.ne.s32.totalorder %v1212, 0
      %vm1215 = vcmp.lt.s32.totalorder %v1183, 0
      %vm1216 = vcmp.lt.s32.totalorder %v1212, 0
      %vm1217 = vmand %vm1215, %vm1213
      %vm1218 = vmand %vm1216, %vm1214
      %v1219 = vadd.s32 %v1183, 18
      %v1220 = vadd.s32 %v1212, 18
      %v1221 = vsel %vm1217, %v1219, %v1183
      %v1222 = vsel %vm1218, %v1220, %v1212
      %vm1223 = vcmp.ne.s32.totalorder %v1221, 0
      %vm1224 = vcmp.ne.s32.totalorder %v1222, 0
      %vm1225 = vcmp.ne.s32.totalorder %v1221, 17
      %vm1226 = vcmp.ne.s32.totalorder %v1222, 17
      %vm1227 = vmand %vm1223, %vm1225
      %vm1228 = vmand %vm1224, %vm1226
      %v1229 = vsel %vm1227, 1, 0
      %v1230 = vsel %vm1228, 1, 0
      %vm1231 = vcmp.eq.s32.totalorder %v1229, 1
      %vm1232 = vcmp.eq.s32.totalorder %v1230, 1
      %v1233 = vsel %vm1231, %v1144, 0.0
      %v1234 = vsel %vm1232, %v1145, 0.0
      %v1235 = vsel %vm1231, %v1146, 0.0
      %v1236 = vsel %vm1232, %v1147, 0.0
      %v1237 = vsel %vm1231, %v1148, 0.0
      %v1238 = vsel %vm1232, %v1149, 0.0
      %v1239 = vsel %vm1231, %v1150, 0.0
      %v1240 = vsel %vm1232, %v1151, 0.0
      %v1241 = vpack.c.bf16 %v1234, %v1233
      %v1242 = vpack.c.bf16 %v1236, %v1235
      %v1243 = vpack.c.bf16 %v1238, %v1237
      %v1244 = vpack.c.bf16 %v1240, %v1239
      %1249 = vrot.lane.b32.xlu0 %v1241, 18
      %v1250 = vpop.permute.xlu0 %1249
      %1251 = vrot.lane.b32.xlu0 %v1242, 18
      %v1252 = vpop.permute.xlu0 %1251
      %1253 = vrot.lane.b32.xlu0 %v1243, 18
      %v1254 = vpop.permute.xlu0 %1253
      %1255 = vrot.lane.b32.xlu0 %v1244, 18
      %v1256 = vpop.permute.xlu0 %1255
      %v1257 = vrot.slane %v1250, 4
      %v1258 = vrot.slane %v1252, 4
      %v1259 = vrot.slane %v1254, 4
      %v1260 = vrot.slane %v1256, 4
      %vm1261 = vcmask 146432
      %v1262 = vsel %vm1261, %v1257, %v1250
      %v1263 = vsel %vm1261, %v1258, %v1252
      %v1264 = vsel %vm1261, %v1259, %v1254
      %v1265 = vsel %vm1261, %v1260, %v1256
      %vm1270 = vcmask 1043600
      %vm1271 = vcmask 867332
      %vm1272 = vmor %vm1271, %vm1270
      %1273 = vst.msk [vmem:[#allocation2] sm:$0xff] %vm1272, %v1262
      %1274 = vst.msk [vmem:[#allocation2 + $0x8] sm:$0xff] %vm1272, %v1263
      %1275 = vst.msk [vmem:[#allocation2 + $0x10] sm:$0xff] %vm1272, %v1264
      %1276 = vst.msk [vmem:[#allocation2 + $0x18] sm:$0xff] %vm1272, %v1265
      %p1277 = scmp.eq.s32.totalorder %s23, 0
      // Predicated region
      $region49: #{tpu_custom_call.1} parent=47 // pred_check
        %p1278 = pneg %p1277
      $region50: #{tpu_custom_call.1} parent=47 // pred_check_branch
        %1280 = sbr.rel (%p1278) target = $region52
      $region51: #{tpu_custom_call.1} parent=47 // pred_region
        %vm1281 = vcmask 437392
        %1282 = vst.msk [vmem:[#allocation2] sm:$0xf] %vm1281, 0
        %1283 = vst.msk [vmem:[#allocation2 + $0x8] sm:$0xf] %vm1281, 0
        %1284 = vst.msk [vmem:[#allocation2 + $0x10] sm:$0xf] %vm1281, 0
        %1285 = vst.msk [vmem:[#allocation2 + $0x18] sm:$0xf] %vm1281, 0
      $region52: #{tpu_custom_call.1} parent=47 // pred_fallthru
        _
      %p1286 = scmp.eq.s32.totalorder %s23, 1
      // Predicated region
      $region53: #{tpu_custom_call.1} parent=47 // pred_check
        %p1287 = pneg %p1286
      $region54: #{tpu_custom_call.1} parent=47 // pred_check_branch
        %1289 = sbr.rel (%p1287) target = $region56
      $region55: #{tpu_custom_call.1} parent=47 // pred_region
        %vm1290 = vcmask 863792
        %1291 = vst.msk [vmem:[#allocation2 + $0x4] sm:$0xf] %vm1290, 0
        %1292 = vst.msk [vmem:[#allocation2 + $0xc] sm:$0xf] %vm1290, 0
        %1293 = vst.msk [vmem:[#allocation2 + $0x14] sm:$0xf] %vm1290, 0
        %1294 = vst.msk [vmem:[#allocation2 + $0x1c] sm:$0xf] %vm1290, 0
      $region56: #{tpu_custom_call.1} parent=47 // pred_fallthru
        _
      %v1295 = vld [vmem:[%s3] sm:$0xf]
      %v1296 = vld [vmem:[%s3 + $0xc] sm:$0xf]
      %v1297 = vld [vmem:[%s3 + $0x18] sm:$0xf]
      %v1298 = vld [vmem:[%s3 + $0x24] sm:$0xf]
      %v1299 = vld [vmem:[#allocation2] sm:$0xff]
      %v1300 = vld [vmem:[#allocation2 + $0x8] sm:$0xff]
      %v1301 = vld [vmem:[#allocation2 + $0x10] sm:$0xff]
      %v1302 = vld [vmem:[#allocation2 + $0x18] sm:$0xff]
      %v1307 = vunpack.c.l.b16 %v1295
      %v1308 = vunpack.c.l.b16 %v1296
      %v1309 = vunpack.c.l.b16 %v1297
      %v1310 = vunpack.c.l.b16 %v1298
      %v1311 = vpack.c.b16 %v1308, %v1307
      %v1312 = vpack.c.b16 %v1310, %v1309
      %1313 = vrot.lane.b32.xlu0 %v1311, 96
      %v1314 = vpop.permute.xlu0 %1313
      %1315 = vrot.lane.b32.xlu0 %v1312, 96
      %v1316 = vpop.permute.xlu0 %1315
      %v1321 = vunpack.c.l.b16 %v1299
      %v1322 = vunpack.c.h.b16 %v1299
      %v1323 = vunpack.c.l.b16 %v1300
      %v1324 = vunpack.c.h.b16 %v1300
      %v1325 = vunpack.c.l.b16 %v1301
      %v1326 = vunpack.c.h.b16 %v1301
      %v1327 = vunpack.c.l.b16 %v1302
      %v1328 = vunpack.c.h.b16 %v1302
      %v1329 = vpack.c.b16 %v1323, %v1321
      %v1330 = vpack.c.b16 %v1324, %v1322
      %v1331 = vpack.c.b16 %v1327, %v1325
      %v1332 = vpack.c.b16 %v1328, %v1326
      %1333 = vrot.lane.b32.xlu0 %v1329, 110
      %v1334 = vpop.permute.xlu0 %1333
      %1335 = vrot.lane.b32.xlu0 %v1330, 110
      %v1336 = vpop.permute.xlu0 %1335
      %1337 = vrot.lane.b32.xlu0 %v1331, 110
      %v1338 = vpop.permute.xlu0 %1337
      %1339 = vrot.lane.b32.xlu0 %v1332, 110
      %v1340 = vpop.permute.xlu0 %1339
      %v1341 = vsel %vm364, %v1334, %v1336
      %v1342 = vsel %vm364, %v1338, %v1340
      %vm1347 = vcmask 261120
      %v1349 = vsel %vm1347, %v1314, 0
      %v1352 = vsel %vm1347, %v1316, 0
      %1354 = vmatpush.bf16.msra.mxu0 0
      %1355 = vmatpush.bf16.msra.mxu0 0
      %1356 = vmatpush.bf16.msra.mxu0 0
      %1357 = vmatpush.bf16.msra.mxu0 0
      %1358 = vmatpush.bf16.msra.mxu0 0
      %1359 = vmatpush.bf16.msra.mxu0 0
      %1360 = vmatpush.bf16.msra.mxu0 %v1342
      %1361 = vmatpush.bf16.msra.mxu0 %v1341
      %1362 = vmatmul.bf16.gmra.mxu0 %v1349
      %v1363 = vpop.f32.mrf.mxu0
      %v1364 = vadd.f32 0.0, %v1363
      %v1365 = vpop.f32.mrf.mxu0
      %v1366 = vadd.f32 0.0, %v1365
      %1367 = vmatmul.bf16.gmra.mxu0 %v1352
      %v1368 = vpop.f32.mrf.mxu0
      %v1369 = vadd.f32 0.0, %v1368
      %v1370 = vpop.f32.mrf.mxu0
      %v1371 = vadd.f32 0.0, %v1370
      %1372 = vdwg.mxu0
      %1373 = vmatpush.bf16.msra.mxu0 0
      %1374 = vmatpush.bf16.msra.mxu0 0
      %1375 = vmatpush.bf16.msra.mxu0 0
      %1376 = vmatpush.bf16.msra.mxu0 0
      %1377 = vmatpush.bf16.msra.mxu0 0
      %1378 = vmatpush.bf16.msra.mxu0 0
      %1379 = vmatpush.bf16.msra.mxu0 %v1340
      %1380 = vmatpush.bf16.msra.mxu0 %v1336
      %1381 = vmatmul.bf16.gmra.mxu0 %v1349
      %v1382 = vpop.f32.mrf.mxu0
      %v1383 = vadd.f32 0.0, %v1382
      %v1384 = vpop.f32.mrf.mxu0
      %v1385 = vadd.f32 0.0, %v1384
      %1386 = vmatmul.bf16.gmra.mxu0 %v1352
      %v1387 = vpop.f32.mrf.mxu0
      %v1388 = vadd.f32 0.0, %v1387
      %v1389 = vpop.f32.mrf.mxu0
      %v1390 = vadd.f32 0.0, %v1389
      %1391 = vdwg.mxu0
      %1392 = vrot.lane.b32.xlu0 %v1329, 111
      %v1393 = vpop.permute.xlu0 %1392
      %1394 = vrot.lane.b32.xlu0 %v1330, 111
      %v1395 = vpop.permute.xlu0 %1394
      %1396 = vrot.lane.b32.xlu0 %v1331, 111
      %v1397 = vpop.permute.xlu0 %1396
      %1398 = vrot.lane.b32.xlu0 %v1332, 111
      %v1399 = vpop.permute.xlu0 %1398
      %v1400 = vsel %vm430, %v1393, %v1395
      %v1401 = vsel %vm430, %v1397, %v1399
      %v1407 = vsel %vm1347, %v1311, 0
      %v1410 = vsel %vm1347, %v1312, 0
      %1412 = vmatpush.bf16.msra.mxu0 0
      %1413 = vmatpush.bf16.msra.mxu0 0
      %1414 = vmatpush.bf16.msra.mxu0 0
      %1415 = vmatpush.bf16.msra.mxu0 0
      %1416 = vmatpush.bf16.msra.mxu0 0
      %1417 = vmatpush.bf16.msra.mxu0 0
      %1418 = vmatpush.bf16.msra.mxu0 %v1401
      %1419 = vmatpush.bf16.msra.mxu0 %v1400
      %1420 = vmatmul.bf16.gmra.mxu0 %v1407
      %v1421 = vpop.f32.mrf.mxu0
      %v1422 = vadd.f32 %v1364, %v1421
      %v1423 = vpop.f32.mrf.mxu0
      %v1424 = vadd.f32 %v1366, %v1423
      %1425 = vmatmul.bf16.gmra.mxu0 %v1410
      %v1426 = vpop.f32.mrf.mxu0
      %v1427 = vadd.f32 %v1369, %v1426
      %v1428 = vpop.f32.mrf.mxu0
      %v1429 = vadd.f32 %v1371, %v1428
      %1430 = vdwg.mxu0
      %1431 = vmatpush.bf16.msra.mxu0 0
      %1432 = vmatpush.bf16.msra.mxu0 0
      %1433 = vmatpush.bf16.msra.mxu0 0
      %1434 = vmatpush.bf16.msra.mxu0 0
      %1435 = vmatpush.bf16.msra.mxu0 0
      %1436 = vmatpush.bf16.msra.mxu0 0
      %1437 = vmatpush.bf16.msra.mxu0 %v1399
      %1438 = vmatpush.bf16.msra.mxu0 %v1395
      %1439 = vmatmul.bf16.gmra.mxu0 %v1407
      %v1440 = vpop.f32.mrf.mxu0
      %v1441 = vadd.f32 %v1383, %v1440
      %v1442 = vpop.f32.mrf.mxu0
      %v1443 = vadd.f32 %v1385, %v1442
      %1444 = vmatmul.bf16.gmra.mxu0 %v1410
      %v1445 = vpop.f32.mrf.mxu0
      %v1446 = vadd.f32 %v1388, %v1445
      %v1447 = vpop.f32.mrf.mxu0
      %v1448 = vadd.f32 %v1390, %v1447
      %1449 = vdwg.mxu0
      %1450 = vrot.lane.b32.xlu0 %v1311, 64
      %v1451 = vpop.permute.xlu0 %1450
      %1452 = vrot.lane.b32.xlu0 %v1312, 64
      %v1453 = vpop.permute.xlu0 %1452
      %1454 = vrot.lane.b32.xlu0 %v1329, 109
      %v1455 = vpop.permute.xlu0 %1454
      %1456 = vrot.lane.b32.xlu0 %v1330, 109
      %v1457 = vpop.permute.xlu0 %1456
      %1458 = vrot.lane.b32.xlu0 %v1331, 109
      %v1459 = vpop.permute.xlu0 %1458
      %1460 = vrot.lane.b32.xlu0 %v1332, 109
      %v1461 = vpop.permute.xlu0 %1460
      %v1462 = vsel %vm511, %v1455, %v1457
      %v1463 = vsel %vm511, %v1459, %v1461
      %v1469 = vsel %vm1347, %v1451, 0
      %v1472 = vsel %vm1347, %v1453, 0
      %1474 = vmatpush.bf16.msra.mxu0 0
      %1475 = vmatpush.bf16.msra.mxu0 0
      %1476 = vmatpush.bf16.msra.mxu0 0
      %1477 = vmatpush.bf16.msra.mxu0 0
      %1478 = vmatpush.bf16.msra.mxu0 0
      %1479 = vmatpush.bf16.msra.mxu0 0
      %1480 = vmatpush.bf16.msra.mxu0 %v1463
      %1481 = vmatpush.bf16.msra.mxu0 %v1462
      %1482 = vmatmul.bf16.gmra.mxu0 %v1469
      %v1483 = vpop.f32.mrf.mxu0
      %v1484 = vadd.f32 0.0, %v1483
      %v1485 = vpop.f32.mrf.mxu0
      %v1486 = vadd.f32 0.0, %v1485
      %1487 = vmatmul.bf16.gmra.mxu0 %v1472
      %v1488 = vpop.f32.mrf.mxu0
      %v1489 = vadd.f32 0.0, %v1488
      %v1490 = vpop.f32.mrf.mxu0
      %v1491 = vadd.f32 0.0, %v1490
      %1492 = vdwg.mxu0
      %1493 = vmatpush.bf16.msra.mxu0 0
      %1494 = vmatpush.bf16.msra.mxu0 0
      %1495 = vmatpush.bf16.msra.mxu0 0
      %1496 = vmatpush.bf16.msra.mxu0 0
      %1497 = vmatpush.bf16.msra.mxu0 0
      %1498 = vmatpush.bf16.msra.mxu0 0
      %1499 = vmatpush.bf16.msra.mxu0 %v1461
      %1500 = vmatpush.bf16.msra.mxu0 %v1457
      %1501 = vmatmul.bf16.gmra.mxu0 %v1469
      %v1502 = vpop.f32.mrf.mxu0
      %v1503 = vadd.f32 0.0, %v1502
      %v1504 = vpop.f32.mrf.mxu0
      %v1505 = vadd.f32 0.0, %v1504
      %1506 = vmatmul.bf16.gmra.mxu0 %v1472
      %v1507 = vpop.f32.mrf.mxu0
      %v1508 = vadd.f32 0.0, %v1507
      %v1509 = vpop.f32.mrf.mxu0
      %v1510 = vadd.f32 0.0, %v1509
      %1511 = vdwg.mxu0
      %v1512 = vadd.f32 %v1422, %v1484
      %v1513 = vadd.f32 %v1441, %v1503
      %v1514 = vadd.f32 %v1424, %v1486
      %v1515 = vadd.f32 %v1443, %v1505
      %v1516 = vadd.f32 %v1427, %v1489
      %v1517 = vadd.f32 %v1446, %v1508
      %v1518 = vadd.f32 %v1429, %v1491
      %v1519 = vadd.f32 %v1448, %v1510
      %1520 = vrot.lane.b32.xlu0 %v1311, 32
      %v1521 = vpop.permute.xlu0 %1520
      %1522 = vrot.lane.b32.xlu0 %v1312, 32
      %v1523 = vpop.permute.xlu0 %1522
      %1524 = vrot.lane.b32.xlu0 %v1329, 93
      %v1525 = vpop.permute.xlu0 %1524
      %1526 = vrot.lane.b32.xlu0 %v1330, 93
      %v1527 = vpop.permute.xlu0 %1526
      %1528 = vrot.lane.b32.xlu0 %v1331, 93
      %v1529 = vpop.permute.xlu0 %1528
      %1530 = vrot.lane.b32.xlu0 %v1332, 93
      %v1531 = vpop.permute.xlu0 %1530
      %v1532 = vsel %vm600, %v1525, %v1527
      %v1533 = vsel %vm600, %v1529, %v1531
      %v1539 = vsel %vm1347, %v1521, 0
      %v1542 = vsel %vm1347, %v1523, 0
      %1544 = vmatpush.bf16.msra.mxu0 0
      %1545 = vmatpush.bf16.msra.mxu0 0
      %1546 = vmatpush.bf16.msra.mxu0 0
      %1547 = vmatpush.bf16.msra.mxu0 0
      %1548 = vmatpush.bf16.msra.mxu0 0
      %1549 = vmatpush.bf16.msra.mxu0 0
      %1550 = vmatpush.bf16.msra.mxu0 %v1533
      %1551 = vmatpush.bf16.msra.mxu0 %v1532
      %1552 = vmatmul.bf16.gmra.mxu0 %v1539
      %v1553 = vpop.f32.mrf.mxu0
      %v1554 = vadd.f32 0.0, %v1553
      %v1555 = vpop.f32.mrf.mxu0
      %v1556 = vadd.f32 0.0, %v1555
      %1557 = vmatmul.bf16.gmra.mxu0 %v1542
      %v1558 = vpop.f32.mrf.mxu0
      %v1559 = vadd.f32 0.0, %v1558
      %v1560 = vpop.f32.mrf.mxu0
      %v1561 = vadd.f32 0.0, %v1560
      %1562 = vdwg.mxu0
      %1563 = vmatpush.bf16.msra.mxu0 0
      %1564 = vmatpush.bf16.msra.mxu0 0
      %1565 = vmatpush.bf16.msra.mxu0 0
      %1566 = vmatpush.bf16.msra.mxu0 0
      %1567 = vmatpush.bf16.msra.mxu0 0
      %1568 = vmatpush.bf16.msra.mxu0 0
      %1569 = vmatpush.bf16.msra.mxu0 %v1531
      %1570 = vmatpush.bf16.msra.mxu0 %v1527
      %1571 = vmatmul.bf16.gmra.mxu0 %v1539
      %v1572 = vpop.f32.mrf.mxu0
      %v1573 = vadd.f32 0.0, %v1572
      %v1574 = vpop.f32.mrf.mxu0
      %v1575 = vadd.f32 0.0, %v1574
      %1576 = vmatmul.bf16.gmra.mxu0 %v1542
      %v1577 = vpop.f32.mrf.mxu0
      %v1578 = vadd.f32 0.0, %v1577
      %v1579 = vpop.f32.mrf.mxu0
      %v1580 = vadd.f32 0.0, %v1579
      %1581 = vdwg.mxu0
      %v1582 = vadd.f32 %v1512, %v1554
      %v1583 = vadd.f32 %v1513, %v1573
      %v1584 = vadd.f32 %v1514, %v1556
      %v1585 = vadd.f32 %v1515, %v1575
      %v1586 = vadd.f32 %v1516, %v1559
      %v1587 = vadd.f32 %v1517, %v1578
      %v1588 = vadd.f32 %v1518, %v1561
      %v1589 = vadd.f32 %v1519, %v1580
      %v1590 = vld [vmem:[%s3 + $0x4] sm:$0xf]
      %v1591 = vld [vmem:[%s3 + $0x10] sm:$0xf]
      %v1592 = vld [vmem:[%s3 + $0x1c] sm:$0xf]
      %v1593 = vld [vmem:[%s3 + $0x28] sm:$0xf]
      %v1598 = vunpack.c.l.b16 %v1590
      %v1599 = vunpack.c.l.b16 %v1591
      %v1600 = vunpack.c.l.b16 %v1592
      %v1601 = vunpack.c.l.b16 %v1593
      %v1602 = vpack.c.b16 %v1599, %v1598
      %v1603 = vpack.c.b16 %v1601, %v1600
      %1604 = vrot.lane.b32.xlu0 %v1329, 92
      %v1605 = vpop.permute.xlu0 %1604
      %1606 = vrot.lane.b32.xlu0 %v1330, 92
      %v1607 = vpop.permute.xlu0 %1606
      %1608 = vrot.lane.b32.xlu0 %v1331, 92
      %v1609 = vpop.permute.xlu0 %1608
      %1610 = vrot.lane.b32.xlu0 %v1332, 92
      %v1611 = vpop.permute.xlu0 %1610
      %v1612 = vsel %vm689, %v1605, %v1607
      %v1613 = vsel %vm689, %v1609, %v1611
      %v1619 = vsel %vm1347, %v1602, 0
      %v1622 = vsel %vm1347, %v1603, 0
      %1624 = vmatpush.bf16.msra.mxu0 0
      %1625 = vmatpush.bf16.msra.mxu0 0
      %1626 = vmatpush.bf16.msra.mxu0 0
      %1627 = vmatpush.bf16.msra.mxu0 0
      %1628 = vmatpush.bf16.msra.mxu0 0
      %1629 = vmatpush.bf16.msra.mxu0 0
      %1630 = vmatpush.bf16.msra.mxu0 %v1613
      %1631 = vmatpush.bf16.msra.mxu0 %v1612
      %1632 = vmatmul.bf16.gmra.mxu0 %v1619
      %v1633 = vpop.f32.mrf.mxu0
      %v1634 = vadd.f32 0.0, %v1633
      %v1635 = vpop.f32.mrf.mxu0
      %v1636 = vadd.f32 0.0, %v1635
      %1637 = vmatmul.bf16.gmra.mxu0 %v1622
      %v1638 = vpop.f32.mrf.mxu0
      %v1639 = vadd.f32 0.0, %v1638
      %v1640 = vpop.f32.mrf.mxu0
      %v1641 = vadd.f32 0.0, %v1640
      %1642 = vdwg.mxu0
      %1643 = vmatpush.bf16.msra.mxu0 0
      %1644 = vmatpush.bf16.msra.mxu0 0
      %1645 = vmatpush.bf16.msra.mxu0 0
      %1646 = vmatpush.bf16.msra.mxu0 0
      %1647 = vmatpush.bf16.msra.mxu0 0
      %1648 = vmatpush.bf16.msra.mxu0 0
      %1649 = vmatpush.bf16.msra.mxu0 %v1611
      %1650 = vmatpush.bf16.msra.mxu0 %v1607
      %1651 = vmatmul.bf16.gmra.mxu0 %v1619
      %v1652 = vpop.f32.mrf.mxu0
      %v1653 = vadd.f32 0.0, %v1652
      %v1654 = vpop.f32.mrf.mxu0
      %v1655 = vadd.f32 0.0, %v1654
      %1656 = vmatmul.bf16.gmra.mxu0 %v1622
      %v1657 = vpop.f32.mrf.mxu0
      %v1658 = vadd.f32 0.0, %v1657
      %v1659 = vpop.f32.mrf.mxu0
      %v1660 = vadd.f32 0.0, %v1659
      %1661 = vdwg.mxu0
      %v1662 = vadd.f32 %v1582, %v1634
      %v1663 = vadd.f32 %v1583, %v1653
      %v1664 = vadd.f32 %v1584, %v1636
      %v1665 = vadd.f32 %v1585, %v1655
      %v1666 = vadd.f32 %v1586, %v1639
      %v1667 = vadd.f32 %v1587, %v1658
      %v1668 = vadd.f32 %v1588, %v1641
      %v1669 = vadd.f32 %v1589, %v1660
      %1670 = vrot.lane.b32.xlu0 %v1602, 96
      %v1671 = vpop.permute.xlu0 %1670
      %1672 = vrot.lane.b32.xlu0 %v1603, 96
      %v1673 = vpop.permute.xlu0 %1672
      %1674 = vrot.lane.b32.xlu0 %v1329, 91
      %v1675 = vpop.permute.xlu0 %1674
      %1676 = vrot.lane.b32.xlu0 %v1330, 91
      %v1677 = vpop.permute.xlu0 %1676
      %1678 = vrot.lane.b32.xlu0 %v1331, 91
      %v1679 = vpop.permute.xlu0 %1678
      %1680 = vrot.lane.b32.xlu0 %v1332, 91
      %v1681 = vpop.permute.xlu0 %1680
      %v1682 = vsel %vm778, %v1675, %v1677
      %v1683 = vsel %vm778, %v1679, %v1681
      %v1689 = vsel %vm1347, %v1671, 0
      %v1692 = vsel %vm1347, %v1673, 0
      %1694 = vmatpush.bf16.msra.mxu0 0
      %1695 = vmatpush.bf16.msra.mxu0 0
      %1696 = vmatpush.bf16.msra.mxu0 0
      %1697 = vmatpush.bf16.msra.mxu0 0
      %1698 = vmatpush.bf16.msra.mxu0 0
      %1699 = vmatpush.bf16.msra.mxu0 0
      %1700 = vmatpush.bf16.msra.mxu0 %v1683
      %1701 = vmatpush.bf16.msra.mxu0 %v1682
      %1702 = vmatmul.bf16.gmra.mxu0 %v1689
      %v1703 = vpop.f32.mrf.mxu0
      %v1704 = vadd.f32 0.0, %v1703
      %v1705 = vpop.f32.mrf.mxu0
      %v1706 = vadd.f32 0.0, %v1705
      %1707 = vmatmul.bf16.gmra.mxu0 %v1692
      %v1708 = vpop.f32.mrf.mxu0
      %v1709 = vadd.f32 0.0, %v1708
      %v1710 = vpop.f32.mrf.mxu0
      %v1711 = vadd.f32 0.0, %v1710
      %1712 = vdwg.mxu0
      %1713 = vmatpush.bf16.msra.mxu0 0
      %1714 = vmatpush.bf16.msra.mxu0 0
      %1715 = vmatpush.bf16.msra.mxu0 0
      %1716 = vmatpush.bf16.msra.mxu0 0
      %1717 = vmatpush.bf16.msra.mxu0 0
      %1718 = vmatpush.bf16.msra.mxu0 0
      %1719 = vmatpush.bf16.msra.mxu0 %v1681
      %1720 = vmatpush.bf16.msra.mxu0 %v1677
      %1721 = vmatmul.bf16.gmra.mxu0 %v1689
      %v1722 = vpop.f32.mrf.mxu0
      %v1723 = vadd.f32 0.0, %v1722
      %v1724 = vpop.f32.mrf.mxu0
      %v1725 = vadd.f32 0.0, %v1724
      %1726 = vmatmul.bf16.gmra.mxu0 %v1692
      %v1727 = vpop.f32.mrf.mxu0
      %v1728 = vadd.f32 0.0, %v1727
      %v1729 = vpop.f32.mrf.mxu0
      %v1730 = vadd.f32 0.0, %v1729
      %1731 = vdwg.mxu0
      %v1732 = vadd.f32 %v1662, %v1704
      %v1733 = vadd.f32 %v1663, %v1723
      %v1734 = vadd.f32 %v1664, %v1706
      %v1735 = vadd.f32 %v1665, %v1725
      %v1736 = vadd.f32 %v1666, %v1709
      %v1737 = vadd.f32 %v1667, %v1728
      %v1738 = vadd.f32 %v1668, %v1711
      %v1739 = vadd.f32 %v1669, %v1730
      %1740 = vrot.lane.b32.xlu0 %v1602, 64
      %v1741 = vpop.permute.xlu0 %1740
      %1742 = vrot.lane.b32.xlu0 %v1603, 64
      %v1743 = vpop.permute.xlu0 %1742
      %1744 = vrot.lane.b32.xlu0 %v1329, 75
      %v1745 = vpop.permute.xlu0 %1744
      %1746 = vrot.lane.b32.xlu0 %v1330, 75
      %v1747 = vpop.permute.xlu0 %1746
      %1748 = vrot.lane.b32.xlu0 %v1331, 75
      %v1749 = vpop.permute.xlu0 %1748
      %1750 = vrot.lane.b32.xlu0 %v1332, 75
      %v1751 = vpop.permute.xlu0 %1750
      %v1752 = vsel %vm871, %v1745, %v1747
      %v1753 = vsel %vm871, %v1749, %v1751
      %v1759 = vsel %vm1347, %v1741, 0
      %v1762 = vsel %vm1347, %v1743, 0
      %1764 = vmatpush.bf16.msra.mxu0 0
      %1765 = vmatpush.bf16.msra.mxu0 0
      %1766 = vmatpush.bf16.msra.mxu0 0
      %1767 = vmatpush.bf16.msra.mxu0 0
      %1768 = vmatpush.bf16.msra.mxu0 0
      %1769 = vmatpush.bf16.msra.mxu0 0
      %1770 = vmatpush.bf16.msra.mxu0 %v1753
      %1771 = vmatpush.bf16.msra.mxu0 %v1752
      %1772 = vmatmul.bf16.gmra.mxu0 %v1759
      %v1773 = vpop.f32.mrf.mxu0
      %v1774 = vadd.f32 0.0, %v1773
      %v1775 = vpop.f32.mrf.mxu0
      %v1776 = vadd.f32 0.0, %v1775
      %1777 = vmatmul.bf16.gmra.mxu0 %v1762
      %v1778 = vpop.f32.mrf.mxu0
      %v1779 = vadd.f32 0.0, %v1778
      %v1780 = vpop.f32.mrf.mxu0
      %v1781 = vadd.f32 0.0, %v1780
      %1782 = vdwg.mxu0
      %1783 = vmatpush.bf16.msra.mxu0 0
      %1784 = vmatpush.bf16.msra.mxu0 0
      %1785 = vmatpush.bf16.msra.mxu0 0
      %1786 = vmatpush.bf16.msra.mxu0 0
      %1787 = vmatpush.bf16.msra.mxu0 0
      %1788 = vmatpush.bf16.msra.mxu0 0
      %1789 = vmatpush.bf16.msra.mxu0 %v1751
      %1790 = vmatpush.bf16.msra.mxu0 %v1747
      %1791 = vmatmul.bf16.gmra.mxu0 %v1759
      %v1792 = vpop.f32.mrf.mxu0
      %v1793 = vadd.f32 0.0, %v1792
      %v1794 = vpop.f32.mrf.mxu0
      %v1795 = vadd.f32 0.0, %v1794
      %1796 = vmatmul.bf16.gmra.mxu0 %v1762
      %v1797 = vpop.f32.mrf.mxu0
      %v1798 = vadd.f32 0.0, %v1797
      %v1799 = vpop.f32.mrf.mxu0
      %v1800 = vadd.f32 0.0, %v1799
      %1801 = vdwg.mxu0
      %v1802 = vadd.f32 %v1732, %v1774
      %v1803 = vadd.f32 %v1733, %v1793
      %v1804 = vadd.f32 %v1734, %v1776
      %v1805 = vadd.f32 %v1735, %v1795
      %v1806 = vadd.f32 %v1736, %v1779
      %v1807 = vadd.f32 %v1737, %v1798
      %v1808 = vadd.f32 %v1738, %v1781
      %v1809 = vadd.f32 %v1739, %v1800
      %1810 = vrot.lane.b32.xlu0 %v1602, 32
      %v1811 = vpop.permute.xlu0 %1810
      %1812 = vrot.lane.b32.xlu0 %v1603, 32
      %v1813 = vpop.permute.xlu0 %1812
      %1814 = vrot.lane.b32.xlu0 %v1329, 74
      %v1815 = vpop.permute.xlu0 %1814
      %1816 = vrot.lane.b32.xlu0 %v1330, 74
      %v1817 = vpop.permute.xlu0 %1816
      %1818 = vrot.lane.b32.xlu0 %v1331, 74
      %v1819 = vpop.permute.xlu0 %1818
      %1820 = vrot.lane.b32.xlu0 %v1332, 74
      %v1821 = vpop.permute.xlu0 %1820
      %v1822 = vsel %vm965, %v1815, %v1817
      %v1823 = vsel %vm965, %v1819, %v1821
      %v1829 = vsel %vm1347, %v1811, 0
      %v1832 = vsel %vm1347, %v1813, 0
      %1834 = vmatpush.bf16.msra.mxu0 0
      %1835 = vmatpush.bf16.msra.mxu0 0
      %1836 = vmatpush.bf16.msra.mxu0 0
      %1837 = vmatpush.bf16.msra.mxu0 0
      %1838 = vmatpush.bf16.msra.mxu0 0
      %1839 = vmatpush.bf16.msra.mxu0 0
      %1840 = vmatpush.bf16.msra.mxu0 %v1823
      %1841 = vmatpush.bf16.msra.mxu0 %v1822
      %1842 = vmatmul.bf16.gmra.mxu0 %v1829
      %v1843 = vpop.f32.mrf.mxu0
      %v1844 = vadd.f32 0.0, %v1843
      %v1845 = vpop.f32.mrf.mxu0
      %v1846 = vadd.f32 0.0, %v1845
      %1847 = vmatmul.bf16.gmra.mxu0 %v1832
      %v1848 = vpop.f32.mrf.mxu0
      %v1849 = vadd.f32 0.0, %v1848
      %v1850 = vpop.f32.mrf.mxu0
      %v1851 = vadd.f32 0.0, %v1850
      %1852 = vdwg.mxu0
      %1853 = vmatpush.bf16.msra.mxu0 0
      %1854 = vmatpush.bf16.msra.mxu0 0
      %1855 = vmatpush.bf16.msra.mxu0 0
      %1856 = vmatpush.bf16.msra.mxu0 0
      %1857 = vmatpush.bf16.msra.mxu0 0
      %1858 = vmatpush.bf16.msra.mxu0 0
      %1859 = vmatpush.bf16.msra.mxu0 %v1821
      %1860 = vmatpush.bf16.msra.mxu0 %v1817
      %1861 = vmatmul.bf16.gmra.mxu0 %v1829
      %v1862 = vpop.f32.mrf.mxu0
      %v1863 = vadd.f32 0.0, %v1862
      %v1864 = vpop.f32.mrf.mxu0
      %v1865 = vadd.f32 0.0, %v1864
      %1866 = vmatmul.bf16.gmra.mxu0 %v1832
      %v1867 = vpop.f32.mrf.mxu0
      %v1868 = vadd.f32 0.0, %v1867
      %v1869 = vpop.f32.mrf.mxu0
      %v1870 = vadd.f32 0.0, %v1869
      %1871 = vdwg.mxu0
      %v1872 = vadd.f32 %v1802, %v1844
      %v1873 = vadd.f32 %v1803, %v1863
      %v1874 = vadd.f32 %v1804, %v1846
      %v1875 = vadd.f32 %v1805, %v1865
      %v1876 = vadd.f32 %v1806, %v1849
      %v1877 = vadd.f32 %v1807, %v1868
      %v1878 = vadd.f32 %v1808, %v1851
      %v1879 = vadd.f32 %v1809, %v1870
      %v1880 = vld [vmem:[%s3 + $0x8] sm:$0xf]
      %v1881 = vld [vmem:[%s3 + $0x14] sm:$0xf]
      %v1882 = vld [vmem:[%s3 + $0x20] sm:$0xf]
      %v1883 = vld [vmem:[%s3 + $0x2c] sm:$0xf]
      %v1888 = vunpack.c.l.b16 %v1880
      %v1889 = vunpack.c.l.b16 %v1881
      %v1890 = vunpack.c.l.b16 %v1882
      %v1891 = vunpack.c.l.b16 %v1883
      %v1892 = vpack.c.b16 %v1889, %v1888
      %v1893 = vpack.c.b16 %v1891, %v1890
      %1894 = vrot.lane.b32.xlu0 %v1329, 73
      %v1895 = vpop.permute.xlu0 %1894
      %1896 = vrot.lane.b32.xlu0 %v1330, 73
      %v1897 = vpop.permute.xlu0 %1896
      %1898 = vrot.lane.b32.xlu0 %v1331, 73
      %v1899 = vpop.permute.xlu0 %1898
      %1900 = vrot.lane.b32.xlu0 %v1332, 73
      %v1901 = vpop.permute.xlu0 %1900
      %v1902 = vsel %vm1059, %v1895, %v1897
      %v1903 = vsel %vm1059, %v1899, %v1901
      %v1909 = vsel %vm1347, %v1892, 0
      %v1912 = vsel %vm1347, %v1893, 0
      %1914 = vmatpush.bf16.msra.mxu0 0
      %1915 = vmatpush.bf16.msra.mxu0 0
      %1916 = vmatpush.bf16.msra.mxu0 0
      %1917 = vmatpush.bf16.msra.mxu0 0
      %1918 = vmatpush.bf16.msra.mxu0 0
      %1919 = vmatpush.bf16.msra.mxu0 0
      %1920 = vmatpush.bf16.msra.mxu0 %v1903
      %1921 = vmatpush.bf16.msra.mxu0 %v1902
      %1922 = vmatmul.bf16.gmra.mxu0 %v1909
      %v1923 = vpop.f32.mrf.mxu0
      %v1924 = vadd.f32 0.0, %v1923
      %v1925 = vpop.f32.mrf.mxu0
      %v1926 = vadd.f32 0.0, %v1925
      %1927 = vmatmul.bf16.gmra.mxu0 %v1912
      %v1928 = vpop.f32.mrf.mxu0
      %v1929 = vadd.f32 0.0, %v1928
      %v1930 = vpop.f32.mrf.mxu0
      %v1931 = vadd.f32 0.0, %v1930
      %1932 = vdwg.mxu0
      %1933 = vmatpush.bf16.msra.mxu0 0
      %1934 = vmatpush.bf16.msra.mxu0 0
      %1935 = vmatpush.bf16.msra.mxu0 0
      %1936 = vmatpush.bf16.msra.mxu0 0
      %1937 = vmatpush.bf16.msra.mxu0 0
      %1938 = vmatpush.bf16.msra.mxu0 0
      %1939 = vmatpush.bf16.msra.mxu0 %v1901
      %1940 = vmatpush.bf16.msra.mxu0 %v1897
      %1941 = vmatmul.bf16.gmra.mxu0 %v1909
      %v1942 = vpop.f32.mrf.mxu0
      %v1943 = vadd.f32 0.0, %v1942
      %v1944 = vpop.f32.mrf.mxu0
      %v1945 = vadd.f32 0.0, %v1944
      %1946 = vmatmul.bf16.gmra.mxu0 %v1912
      %v1947 = vpop.f32.mrf.mxu0
      %v1948 = vadd.f32 0.0, %v1947
      %v1949 = vpop.f32.mrf.mxu0
      %v1950 = vadd.f32 0.0, %v1949
      %1951 = vdwg.mxu0
      %v1952 = vadd.f32 %v1872, %v1924
      %v1953 = vadd.f32 %v1873, %v1943
      %v1954 = vadd.f32 %v1874, %v1926
      %v1955 = vadd.f32 %v1875, %v1945
      %v1956 = vadd.f32 %v1876, %v1929
      %v1957 = vadd.f32 %v1877, %v1948
      %v1958 = vadd.f32 %v1878, %v1931
      %v1959 = vadd.f32 %v1879, %v1950
      %v1960 = vld [vmem:[%s4] sm:$0xff]
      %v1961 = vld [vmem:[%s4 + $0x8] sm:$0xff]
      %v1962 = vld [vmem:[%s4 + $0x10] sm:$0xff]
      %v1963 = vld [vmem:[%s4 + $0x18] sm:$0xff]
      %1965 = vset.pattern.permute.xlu0 0
      %1966 = vperm.xlu0 %1965, %v1960
      %v1967 = vpop.permute.xlu0 %1966
      %1970 = vset.pattern.permute.xlu0 0
      %1971 = vperm.xlu0 %1970, %v1961
      %v1972 = vpop.permute.xlu0 %1971
      %1975 = vset.pattern.permute.xlu0 0
      %1976 = vperm.xlu0 %1975, %v1962
      %v1977 = vpop.permute.xlu0 %1976
      %1980 = vset.pattern.permute.xlu0 0
      %1981 = vperm.xlu0 %1980, %v1963
      %v1982 = vpop.permute.xlu0 %1981
      %v1984 = vadd.f32 %v1952, %v1967
      %v1985 = vadd.f32 %v1953, %v1967
      %v1986 = vadd.f32 %v1954, %v1972
      %v1987 = vadd.f32 %v1955, %v1972
      %v1988 = vadd.f32 %v1956, %v1977
      %v1989 = vadd.f32 %v1957, %v1977
      %v1990 = vadd.f32 %v1958, %v1982
      %v1991 = vadd.f32 %v1959, %v1982
      %v1992 = vunpack.c.l.bf16 %v1299
      %v1993 = vunpack.c.h.bf16 %v1299
      %v1994 = vunpack.c.l.bf16 %v1300
      %v1995 = vunpack.c.h.bf16 %v1300
      %v1996 = vunpack.c.l.bf16 %v1301
      %v1997 = vunpack.c.h.bf16 %v1301
      %v1998 = vunpack.c.l.bf16 %v1302
      %v1999 = vunpack.c.h.bf16 %v1302
      %2008 = vrot.lane.b32.xlu0 %v1992, 92
      %v2009 = vpop.permute.xlu0 %2008
      %2010 = vrot.lane.b32.xlu0 %v1993, 92
      %v2011 = vpop.permute.xlu0 %2010
      %2012 = vrot.lane.b32.xlu0 %v1994, 92
      %v2013 = vpop.permute.xlu0 %2012
      %2014 = vrot.lane.b32.xlu0 %v1995, 92
      %v2015 = vpop.permute.xlu0 %2014
      %2016 = vrot.lane.b32.xlu0 %v1996, 92
      %v2017 = vpop.permute.xlu0 %2016
      %2018 = vrot.lane.b32.xlu0 %v1997, 92
      %v2019 = vpop.permute.xlu0 %2018
      %2020 = vrot.lane.b32.xlu0 %v1998, 92
      %v2021 = vpop.permute.xlu0 %2020
      %2022 = vrot.lane.b32.xlu0 %v1999, 92
      %v2023 = vpop.permute.xlu0 %2022
      %vm2024 = vcmask 752640
      %v2025 = vsel %vm2024, %v2009, %v2011
      %v2026 = vsel %vm2024, %v2013, %v2015
      %v2027 = vsel %vm2024, %v2017, %v2019
      %v2028 = vsel %vm2024, %v2021, %v2023
      %v2037 = vadd.f32 %v1984, %v2025
      %v2038 = vadd.f32 %v1985, %v2011
      %v2039 = vadd.f32 %v1986, %v2026
      %v2040 = vadd.f32 %v1987, %v2015
      %v2041 = vadd.f32 %v1988, %v2027
      %v2042 = vadd.f32 %v1989, %v2019
      %v2043 = vadd.f32 %v1990, %v2028
      %v2044 = vadd.f32 %v1991, %v2023
      %v2045 = vsel %vm1231, %v2037, 0.0
      %v2046 = vsel %vm1232, %v2038, 0.0
      %v2047 = vsel %vm1231, %v2039, 0.0
      %v2048 = vsel %vm1232, %v2040, 0.0
      %v2049 = vsel %vm1231, %v2041, 0.0
      %v2050 = vsel %vm1232, %v2042, 0.0
      %v2051 = vsel %vm1231, %v2043, 0.0
      %v2052 = vsel %vm1232, %v2044, 0.0
      %v2053 = vpack.c.bf16 %v2046, %v2045
      %v2054 = vpack.c.bf16 %v2048, %v2047
      %v2055 = vpack.c.bf16 %v2050, %v2049
      %v2056 = vpack.c.bf16 %v2052, %v2051
      %2061 = vrot.lane.b32.xlu0 %v2053, 18
      %v2062 = vpop.permute.xlu0 %2061
      %2063 = vrot.lane.b32.xlu0 %v2054, 18
      %v2064 = vpop.permute.xlu0 %2063
      %2065 = vrot.lane.b32.xlu0 %v2055, 18
      %v2066 = vpop.permute.xlu0 %2065
      %2067 = vrot.lane.b32.xlu0 %v2056, 18
      %v2068 = vpop.permute.xlu0 %2067
      %v2069 = vrot.slane %v2062, 4
      %v2070 = vrot.slane %v2064, 4
      %v2071 = vrot.slane %v2066, 4
      %v2072 = vrot.slane %v2068, 4
      %v2073 = vsel %vm1261, %v2069, %v2062
      %v2074 = vsel %vm1261, %v2070, %v2064
      %v2075 = vsel %vm1261, %v2071, %v2066
      %v2076 = vsel %vm1261, %v2072, %v2068
      %vm2081 = vcmask 572420
      %vm2082 = vmor %vm2081, %vm1270
      %2083 = vst.msk [vmem:[#allocation3] sm:$0xff] %vm2082, %v2073
      %2084 = vst.msk [vmem:[#allocation3 + $0x8] sm:$0xff] %vm2082, %v2074
      %2085 = vst.msk [vmem:[#allocation3 + $0x10] sm:$0xff] %vm2082, %v2075
      %2086 = vst.msk [vmem:[#allocation3 + $0x18] sm:$0xff] %vm2082, %v2076
      // Predicated region
      $region57: #{tpu_custom_call.1} parent=47 // pred_check
        %p2087 = pneg %p1277
      $region58: #{tpu_custom_call.1} parent=47 // pred_check_branch
        %2089 = sbr.rel (%p2087) target = $region60
      $region59: #{tpu_custom_call.1} parent=47 // pred_region
        %vm2090 = vcmask 289936
        %2091 = vst.msk [vmem:[#allocation3] sm:$0xf] %vm2090, 0
        %2092 = vst.msk [vmem:[#allocation3 + $0x8] sm:$0xf] %vm2090, 0
        %2093 = vst.msk [vmem:[#allocation3 + $0x10] sm:$0xf] %vm2090, 0
        %2094 = vst.msk [vmem:[#allocation3 + $0x18] sm:$0xf] %vm2090, 0
      $region60: #{tpu_custom_call.1} parent=47 // pred_fallthru
        _
      // Predicated region
      $region61: #{tpu_custom_call.1} parent=47 // pred_check
        %p2095 = pneg %p1286
      $region62: #{tpu_custom_call.1} parent=47 // pred_check_branch
        %2097 = sbr.rel (%p2095) target = $region64
      $region63: #{tpu_custom_call.1} parent=47 // pred_region
        %vm2098 = vcmask 568736
        %2099 = vst.msk [vmem:[#allocation3 + $0x4] sm:$0xf] %vm2098, 0
        %2100 = vst.msk [vmem:[#allocation3 + $0xc] sm:$0xf] %vm2098, 0
        %2101 = vst.msk [vmem:[#allocation3 + $0x14] sm:$0xf] %vm2098, 0
        %2102 = vst.msk [vmem:[#allocation3 + $0x1c] sm:$0xf] %vm2098, 0
      $region64: #{tpu_custom_call.1} parent=47 // pred_fallthru
        _
      %v2103 = vld [vmem:[%s5] sm:$0xf]
      %v2104 = vld [vmem:[%s5 + $0xc] sm:$0x3]
      %v2105 = vld [vmem:[#allocation3] sm:$0xff]
      %v2106 = vld [vmem:[#allocation3 + $0x8] sm:$0xff]
      %v2107 = vld [vmem:[#allocation3 + $0x10] sm:$0xff]
      %v2108 = vld [vmem:[#allocation3 + $0x18] sm:$0xff]
      %v2111 = vunpack.c.l.b16 %v2103
      %v2112 = vunpack.c.l.b16 %v2104
      %v2113 = vpack.c.b16 %v2112, %v2111
      %2114 = vrot.lane.b32.xlu0 %v2113, 96
      %v2115 = vpop.permute.xlu0 %2114
      %v2120 = vunpack.c.l.b16 %v2105
      %v2121 = vunpack.c.h.b16 %v2105
      %v2122 = vunpack.c.l.b16 %v2106
      %v2123 = vunpack.c.h.b16 %v2106
      %v2124 = vunpack.c.l.b16 %v2107
      %v2125 = vunpack.c.h.b16 %v2107
      %v2126 = vunpack.c.l.b16 %v2108
      %v2127 = vunpack.c.h.b16 %v2108
      %v2128 = vpack.c.b16 %v2122, %v2120
      %v2129 = vpack.c.b16 %v2123, %v2121
      %v2130 = vpack.c.b16 %v2126, %v2124
      %v2131 = vpack.c.b16 %v2127, %v2125
      %2132 = vrot.lane.b32.xlu0 %v2128, 110
      %v2133 = vpop.permute.xlu0 %2132
      %2134 = vrot.lane.b32.xlu0 %v2129, 110
      %v2135 = vpop.permute.xlu0 %2134
      %2136 = vrot.lane.b32.xlu0 %v2130, 110
      %v2137 = vpop.permute.xlu0 %2136
      %2138 = vrot.lane.b32.xlu0 %v2131, 110
      %v2139 = vpop.permute.xlu0 %2138
      %v2140 = vsel %vm364, %v2133, %v2135
      %v2141 = vsel %vm364, %v2137, %v2139
      %v2147 = vsel %vm1347, %v2115, 0
      %2149 = vmatpush.bf16.msra.mxu0 0
      %2150 = vmatpush.bf16.msra.mxu0 0
      %2151 = vmatpush.bf16.msra.mxu0 0
      %2152 = vmatpush.bf16.msra.mxu0 0
      %2153 = vmatpush.bf16.msra.mxu0 0
      %2154 = vmatpush.bf16.msra.mxu0 0
      %2155 = vmatpush.bf16.msra.mxu0 %v2141
      %2156 = vmatpush.bf16.msra.mxu0 %v2140
      %2157 = vmatmul.bf16.gmra.mxu0 %v2147
      %v2158 = vpop.f32.mrf.mxu0
      %v2159 = vadd.f32 0.0, %v2158
      %v2160 = vpop.f32.mrf.mxu0
      %v2161 = vadd.f32 0.0, %v2160
      %2162 = vdwg.mxu0
      %2163 = vmatpush.bf16.msra.mxu0 0
      %2164 = vmatpush.bf16.msra.mxu0 0
      %2165 = vmatpush.bf16.msra.mxu0 0
      %2166 = vmatpush.bf16.msra.mxu0 0
      %2167 = vmatpush.bf16.msra.mxu0 0
      %2168 = vmatpush.bf16.msra.mxu0 0
      %2169 = vmatpush.bf16.msra.mxu0 %v2139
      %2170 = vmatpush.bf16.msra.mxu0 %v2135
      %2171 = vmatmul.bf16.gmra.mxu0 %v2147
      %v2172 = vpop.f32.mrf.mxu0
      %v2173 = vadd.f32 0.0, %v2172
      %v2174 = vpop.f32.mrf.mxu0
      %v2175 = vadd.f32 0.0, %v2174
      %2176 = vdwg.mxu0
      %2177 = vrot.lane.b32.xlu0 %v2128, 111
      %v2178 = vpop.permute.xlu0 %2177
      %2179 = vrot.lane.b32.xlu0 %v2129, 111
      %v2180 = vpop.permute.xlu0 %2179
      %2181 = vrot.lane.b32.xlu0 %v2130, 111
      %v2182 = vpop.permute.xlu0 %2181
      %2183 = vrot.lane.b32.xlu0 %v2131, 111
      %v2184 = vpop.permute.xlu0 %2183
      %v2185 = vsel %vm430, %v2178, %v2180
      %v2186 = vsel %vm430, %v2182, %v2184
      %v2192 = vsel %vm1347, %v2113, 0
      %2194 = vmatpush.bf16.msra.mxu0 0
      %2195 = vmatpush.bf16.msra.mxu0 0
      %2196 = vmatpush.bf16.msra.mxu0 0
      %2197 = vmatpush.bf16.msra.mxu0 0
      %2198 = vmatpush.bf16.msra.mxu0 0
      %2199 = vmatpush.bf16.msra.mxu0 0
      %2200 = vmatpush.bf16.msra.mxu0 %v2186
      %2201 = vmatpush.bf16.msra.mxu0 %v2185
      %2202 = vmatmul.bf16.gmra.mxu0 %v2192
      %v2203 = vpop.f32.mrf.mxu0
      %v2204 = vadd.f32 %v2159, %v2203
      %v2205 = vpop.f32.mrf.mxu0
      %v2206 = vadd.f32 %v2161, %v2205
      %2207 = vdwg.mxu0
      %2208 = vmatpush.bf16.msra.mxu0 0
      %2209 = vmatpush.bf16.msra.mxu0 0
      %2210 = vmatpush.bf16.msra.mxu0 0
      %2211 = vmatpush.bf16.msra.mxu0 0
      %2212 = vmatpush.bf16.msra.mxu0 0
      %2213 = vmatpush.bf16.msra.mxu0 0
      %2214 = vmatpush.bf16.msra.mxu0 %v2184
      %2215 = vmatpush.bf16.msra.mxu0 %v2180
      %2216 = vmatmul.bf16.gmra.mxu0 %v2192
      %v2217 = vpop.f32.mrf.mxu0
      %v2218 = vadd.f32 %v2173, %v2217
      %v2219 = vpop.f32.mrf.mxu0
      %v2220 = vadd.f32 %v2175, %v2219
      %2221 = vdwg.mxu0
      %2222 = vrot.lane.b32.xlu0 %v2113, 64
      %v2223 = vpop.permute.xlu0 %2222
      %2224 = vrot.lane.b32.xlu0 %v2128, 109
      %v2225 = vpop.permute.xlu0 %2224
      %2226 = vrot.lane.b32.xlu0 %v2129, 109
      %v2227 = vpop.permute.xlu0 %2226
      %2228 = vrot.lane.b32.xlu0 %v2130, 109
      %v2229 = vpop.permute.xlu0 %2228
      %2230 = vrot.lane.b32.xlu0 %v2131, 109
      %v2231 = vpop.permute.xlu0 %2230
      %v2232 = vsel %vm511, %v2225, %v2227
      %v2233 = vsel %vm511, %v2229, %v2231
      %v2239 = vsel %vm1347, %v2223, 0
      %2241 = vmatpush.bf16.msra.mxu0 0
      %2242 = vmatpush.bf16.msra.mxu0 0
      %2243 = vmatpush.bf16.msra.mxu0 0
      %2244 = vmatpush.bf16.msra.mxu0 0
      %2245 = vmatpush.bf16.msra.mxu0 0
      %2246 = vmatpush.bf16.msra.mxu0 0
      %2247 = vmatpush.bf16.msra.mxu0 %v2233
      %2248 = vmatpush.bf16.msra.mxu0 %v2232
      %2249 = vmatmul.bf16.gmra.mxu0 %v2239
      %v2250 = vpop.f32.mrf.mxu0
      %v2251 = vadd.f32 0.0, %v2250
      %v2252 = vpop.f32.mrf.mxu0
      %v2253 = vadd.f32 0.0, %v2252
      %2254 = vdwg.mxu0
      %2255 = vmatpush.bf16.msra.mxu0 0
      %2256 = vmatpush.bf16.msra.mxu0 0
      %2257 = vmatpush.bf16.msra.mxu0 0
      %2258 = vmatpush.bf16.msra.mxu0 0
      %2259 = vmatpush.bf16.msra.mxu0 0
      %2260 = vmatpush.bf16.msra.mxu0 0
      %2261 = vmatpush.bf16.msra.mxu0 %v2231
      %2262 = vmatpush.bf16.msra.mxu0 %v2227
      %2263 = vmatmul.bf16.gmra.mxu0 %v2239
      %v2264 = vpop.f32.mrf.mxu0
      %v2265 = vadd.f32 0.0, %v2264
      %v2266 = vpop.f32.mrf.mxu0
      %v2267 = vadd.f32 0.0, %v2266
      %2268 = vdwg.mxu0
      %v2269 = vadd.f32 %v2204, %v2251
      %v2270 = vadd.f32 %v2218, %v2265
      %v2271 = vadd.f32 %v2206, %v2253
      %v2272 = vadd.f32 %v2220, %v2267
      %2273 = vrot.lane.b32.xlu0 %v2113, 32
      %v2274 = vpop.permute.xlu0 %2273
      %2275 = vrot.lane.b32.xlu0 %v2128, 93
      %v2276 = vpop.permute.xlu0 %2275
      %2277 = vrot.lane.b32.xlu0 %v2129, 93
      %v2278 = vpop.permute.xlu0 %2277
      %2279 = vrot.lane.b32.xlu0 %v2130, 93
      %v2280 = vpop.permute.xlu0 %2279
      %2281 = vrot.lane.b32.xlu0 %v2131, 93
      %v2282 = vpop.permute.xlu0 %2281
      %v2283 = vsel %vm600, %v2276, %v2278
      %v2284 = vsel %vm600, %v2280, %v2282
      %v2290 = vsel %vm1347, %v2274, 0
      %2292 = vmatpush.bf16.msra.mxu0 0
      %2293 = vmatpush.bf16.msra.mxu0 0
      %2294 = vmatpush.bf16.msra.mxu0 0
      %2295 = vmatpush.bf16.msra.mxu0 0
      %2296 = vmatpush.bf16.msra.mxu0 0
      %2297 = vmatpush.bf16.msra.mxu0 0
      %2298 = vmatpush.bf16.msra.mxu0 %v2284
      %2299 = vmatpush.bf16.msra.mxu0 %v2283
      %2300 = vmatmul.bf16.gmra.mxu0 %v2290
      %v2301 = vpop.f32.mrf.mxu0
      %v2302 = vadd.f32 0.0, %v2301
      %v2303 = vpop.f32.mrf.mxu0
      %v2304 = vadd.f32 0.0, %v2303
      %2305 = vdwg.mxu0
      %2306 = vmatpush.bf16.msra.mxu0 0
      %2307 = vmatpush.bf16.msra.mxu0 0
      %2308 = vmatpush.bf16.msra.mxu0 0
      %2309 = vmatpush.bf16.msra.mxu0 0
      %2310 = vmatpush.bf16.msra.mxu0 0
      %2311 = vmatpush.bf16.msra.mxu0 0
      %2312 = vmatpush.bf16.msra.mxu0 %v2282
      %2313 = vmatpush.bf16.msra.mxu0 %v2278
      %2314 = vmatmul.bf16.gmra.mxu0 %v2290
      %v2315 = vpop.f32.mrf.mxu0
      %v2316 = vadd.f32 0.0, %v2315
      %v2317 = vpop.f32.mrf.mxu0
      %v2318 = vadd.f32 0.0, %v2317
      %2319 = vdwg.mxu0
      %v2320 = vadd.f32 %v2269, %v2302
      %v2321 = vadd.f32 %v2270, %v2316
      %v2322 = vadd.f32 %v2271, %v2304
      %v2323 = vadd.f32 %v2272, %v2318
      %v2324 = vld [vmem:[%s5 + $0x4] sm:$0xf]
      %v2325 = vld [vmem:[%s5 + $0x10] sm:$0x3]
      %v2328 = vunpack.c.l.b16 %v2324
      %v2329 = vunpack.c.l.b16 %v2325
      %v2330 = vpack.c.b16 %v2329, %v2328
      %2331 = vrot.lane.b32.xlu0 %v2128, 92
      %v2332 = vpop.permute.xlu0 %2331
      %2333 = vrot.lane.b32.xlu0 %v2129, 92
      %v2334 = vpop.permute.xlu0 %2333
      %2335 = vrot.lane.b32.xlu0 %v2130, 92
      %v2336 = vpop.permute.xlu0 %2335
      %2337 = vrot.lane.b32.xlu0 %v2131, 92
      %v2338 = vpop.permute.xlu0 %2337
      %v2339 = vsel %vm689, %v2332, %v2334
      %v2340 = vsel %vm689, %v2336, %v2338
      %v2346 = vsel %vm1347, %v2330, 0
      %2348 = vmatpush.bf16.msra.mxu0 0
      %2349 = vmatpush.bf16.msra.mxu0 0
      %2350 = vmatpush.bf16.msra.mxu0 0
      %2351 = vmatpush.bf16.msra.mxu0 0
      %2352 = vmatpush.bf16.msra.mxu0 0
      %2353 = vmatpush.bf16.msra.mxu0 0
      %2354 = vmatpush.bf16.msra.mxu0 %v2340
      %2355 = vmatpush.bf16.msra.mxu0 %v2339
      %2356 = vmatmul.bf16.gmra.mxu0 %v2346
      %v2357 = vpop.f32.mrf.mxu0
      %v2358 = vadd.f32 0.0, %v2357
      %v2359 = vpop.f32.mrf.mxu0
      %v2360 = vadd.f32 0.0, %v2359
      %2361 = vdwg.mxu0
      %2362 = vmatpush.bf16.msra.mxu0 0
      %2363 = vmatpush.bf16.msra.mxu0 0
      %2364 = vmatpush.bf16.msra.mxu0 0
      %2365 = vmatpush.bf16.msra.mxu0 0
      %2366 = vmatpush.bf16.msra.mxu0 0
      %2367 = vmatpush.bf16.msra.mxu0 0
      %2368 = vmatpush.bf16.msra.mxu0 %v2338
      %2369 = vmatpush.bf16.msra.mxu0 %v2334
      %2370 = vmatmul.bf16.gmra.mxu0 %v2346
      %v2371 = vpop.f32.mrf.mxu0
      %v2372 = vadd.f32 0.0, %v2371
      %v2373 = vpop.f32.mrf.mxu0
      %v2374 = vadd.f32 0.0, %v2373
      %2375 = vdwg.mxu0
      %v2376 = vadd.f32 %v2320, %v2358
      %v2377 = vadd.f32 %v2321, %v2372
      %v2378 = vadd.f32 %v2322, %v2360
      %v2379 = vadd.f32 %v2323, %v2374
      %2380 = vrot.lane.b32.xlu0 %v2330, 96
      %v2381 = vpop.permute.xlu0 %2380
      %2382 = vrot.lane.b32.xlu0 %v2128, 91
      %v2383 = vpop.permute.xlu0 %2382
      %2384 = vrot.lane.b32.xlu0 %v2129, 91
      %v2385 = vpop.permute.xlu0 %2384
      %2386 = vrot.lane.b32.xlu0 %v2130, 91
      %v2387 = vpop.permute.xlu0 %2386
      %2388 = vrot.lane.b32.xlu0 %v2131, 91
      %v2389 = vpop.permute.xlu0 %2388
      %v2390 = vsel %vm778, %v2383, %v2385
      %v2391 = vsel %vm778, %v2387, %v2389
      %v2397 = vsel %vm1347, %v2381, 0
      %2399 = vmatpush.bf16.msra.mxu0 0
      %2400 = vmatpush.bf16.msra.mxu0 0
      %2401 = vmatpush.bf16.msra.mxu0 0
      %2402 = vmatpush.bf16.msra.mxu0 0
      %2403 = vmatpush.bf16.msra.mxu0 0
      %2404 = vmatpush.bf16.msra.mxu0 0
      %2405 = vmatpush.bf16.msra.mxu0 %v2391
      %2406 = vmatpush.bf16.msra.mxu0 %v2390
      %2407 = vmatmul.bf16.gmra.mxu0 %v2397
      %v2408 = vpop.f32.mrf.mxu0
      %v2409 = vadd.f32 0.0, %v2408
      %v2410 = vpop.f32.mrf.mxu0
      %v2411 = vadd.f32 0.0, %v2410
      %2412 = vdwg.mxu0
      %2413 = vmatpush.bf16.msra.mxu0 0
      %2414 = vmatpush.bf16.msra.mxu0 0
      %2415 = vmatpush.bf16.msra.mxu0 0
      %2416 = vmatpush.bf16.msra.mxu0 0
      %2417 = vmatpush.bf16.msra.mxu0 0
      %2418 = vmatpush.bf16.msra.mxu0 0
      %2419 = vmatpush.bf16.msra.mxu0 %v2389
      %2420 = vmatpush.bf16.msra.mxu0 %v2385
      %2421 = vmatmul.bf16.gmra.mxu0 %v2397
      %v2422 = vpop.f32.mrf.mxu0
      %v2423 = vadd.f32 0.0, %v2422
      %v2424 = vpop.f32.mrf.mxu0
      %v2425 = vadd.f32 0.0, %v2424
      %2426 = vdwg.mxu0
      %v2427 = vadd.f32 %v2376, %v2409
      %v2428 = vadd.f32 %v2377, %v2423
      %v2429 = vadd.f32 %v2378, %v2411
      %v2430 = vadd.f32 %v2379, %v2425
      %2431 = vrot.lane.b32.xlu0 %v2330, 64
      %v2432 = vpop.permute.xlu0 %2431
      %2433 = vrot.lane.b32.xlu0 %v2128, 75
      %v2434 = vpop.permute.xlu0 %2433
      %2435 = vrot.lane.b32.xlu0 %v2129, 75
      %v2436 = vpop.permute.xlu0 %2435
      %2437 = vrot.lane.b32.xlu0 %v2130, 75
      %v2438 = vpop.permute.xlu0 %2437
      %2439 = vrot.lane.b32.xlu0 %v2131, 75
      %v2440 = vpop.permute.xlu0 %2439
      %v2441 = vsel %vm871, %v2434, %v2436
      %v2442 = vsel %vm871, %v2438, %v2440
      %v2448 = vsel %vm1347, %v2432, 0
      %2450 = vmatpush.bf16.msra.mxu0 0
      %2451 = vmatpush.bf16.msra.mxu0 0
      %2452 = vmatpush.bf16.msra.mxu0 0
      %2453 = vmatpush.bf16.msra.mxu0 0
      %2454 = vmatpush.bf16.msra.mxu0 0
      %2455 = vmatpush.bf16.msra.mxu0 0
      %2456 = vmatpush.bf16.msra.mxu0 %v2442
      %2457 = vmatpush.bf16.msra.mxu0 %v2441
      %2458 = vmatmul.bf16.gmra.mxu0 %v2448
      %v2459 = vpop.f32.mrf.mxu0
      %v2460 = vadd.f32 0.0, %v2459
      %v2461 = vpop.f32.mrf.mxu0
      %v2462 = vadd.f32 0.0, %v2461
      %2463 = vdwg.mxu0
      %2464 = vmatpush.bf16.msra.mxu0 0
      %2465 = vmatpush.bf16.msra.mxu0 0
      %2466 = vmatpush.bf16.msra.mxu0 0
      %2467 = vmatpush.bf16.msra.mxu0 0
      %2468 = vmatpush.bf16.msra.mxu0 0
      %2469 = vmatpush.bf16.msra.mxu0 0
      %2470 = vmatpush.bf16.msra.mxu0 %v2440
      %2471 = vmatpush.bf16.msra.mxu0 %v2436
      %2472 = vmatmul.bf16.gmra.mxu0 %v2448
      %v2473 = vpop.f32.mrf.mxu0
      %v2474 = vadd.f32 0.0, %v2473
      %v2475 = vpop.f32.mrf.mxu0
      %v2476 = vadd.f32 0.0, %v2475
      %2477 = vdwg.mxu0
      %v2478 = vadd.f32 %v2427, %v2460
      %v2479 = vadd.f32 %v2428, %v2474
      %v2480 = vadd.f32 %v2429, %v2462
      %v2481 = vadd.f32 %v2430, %v2476
      %2482 = vrot.lane.b32.xlu0 %v2330, 32
      %v2483 = vpop.permute.xlu0 %2482
      %2484 = vrot.lane.b32.xlu0 %v2128, 74
      %v2485 = vpop.permute.xlu0 %2484
      %2486 = vrot.lane.b32.xlu0 %v2129, 74
      %v2487 = vpop.permute.xlu0 %2486
      %2488 = vrot.lane.b32.xlu0 %v2130, 74
      %v2489 = vpop.permute.xlu0 %2488
      %2490 = vrot.lane.b32.xlu0 %v2131, 74
      %v2491 = vpop.permute.xlu0 %2490
      %v2492 = vsel %vm965, %v2485, %v2487
      %v2493 = vsel %vm965, %v2489, %v2491
      %v2499 = vsel %vm1347, %v2483, 0
      %2501 = vmatpush.bf16.msra.mxu0 0
      %2502 = vmatpush.bf16.msra.mxu0 0
      %2503 = vmatpush.bf16.msra.mxu0 0
      %2504 = vmatpush.bf16.msra.mxu0 0
      %2505 = vmatpush.bf16.msra.mxu0 0
      %2506 = vmatpush.bf16.msra.mxu0 0
      %2507 = vmatpush.bf16.msra.mxu0 %v2493
      %2508 = vmatpush.bf16.msra.mxu0 %v2492
      %2509 = vmatmul.bf16.gmra.mxu0 %v2499
      %v2510 = vpop.f32.mrf.mxu0
      %v2511 = vadd.f32 0.0, %v2510
      %v2512 = vpop.f32.mrf.mxu0
      %v2513 = vadd.f32 0.0, %v2512
      %2514 = vdwg.mxu0
      %2515 = vmatpush.bf16.msra.mxu0 0
      %2516 = vmatpush.bf16.msra.mxu0 0
      %2517 = vmatpush.bf16.msra.mxu0 0
      %2518 = vmatpush.bf16.msra.mxu0 0
      %2519 = vmatpush.bf16.msra.mxu0 0
      %2520 = vmatpush.bf16.msra.mxu0 0
      %2521 = vmatpush.bf16.msra.mxu0 %v2491
      %2522 = vmatpush.bf16.msra.mxu0 %v2487
      %2523 = vmatmul.bf16.gmra.mxu0 %v2499
      %v2524 = vpop.f32.mrf.mxu0
      %v2525 = vadd.f32 0.0, %v2524
      %v2526 = vpop.f32.mrf.mxu0
      %v2527 = vadd.f32 0.0, %v2526
      %2528 = vdwg.mxu0
      %v2529 = vadd.f32 %v2478, %v2511
      %v2530 = vadd.f32 %v2479, %v2525
      %v2531 = vadd.f32 %v2480, %v2513
      %v2532 = vadd.f32 %v2481, %v2527
      %v2533 = vld [vmem:[%s5 + $0x8] sm:$0xf]
      %v2534 = vld [vmem:[%s5 + $0x14] sm:$0x3]
      %v2537 = vunpack.c.l.b16 %v2533
      %v2538 = vunpack.c.l.b16 %v2534
      %v2539 = vpack.c.b16 %v2538, %v2537
      %2540 = vrot.lane.b32.xlu0 %v2128, 73
      %v2541 = vpop.permute.xlu0 %2540
      %2542 = vrot.lane.b32.xlu0 %v2129, 73
      %v2543 = vpop.permute.xlu0 %2542
      %2544 = vrot.lane.b32.xlu0 %v2130, 73
      %v2545 = vpop.permute.xlu0 %2544
      %2546 = vrot.lane.b32.xlu0 %v2131, 73
      %v2547 = vpop.permute.xlu0 %2546
      %v2548 = vsel %vm1059, %v2541, %v2543
      %v2549 = vsel %vm1059, %v2545, %v2547
      %v2555 = vsel %vm1347, %v2539, 0
      %2557 = vmatpush.bf16.msra.mxu0 0
      %2558 = vmatpush.bf16.msra.mxu0 0
      %2559 = vmatpush.bf16.msra.mxu0 0
      %2560 = vmatpush.bf16.msra.mxu0 0
      %2561 = vmatpush.bf16.msra.mxu0 0
      %2562 = vmatpush.bf16.msra.mxu0 0
      %2563 = vmatpush.bf16.msra.mxu0 %v2549
      %2564 = vmatpush.bf16.msra.mxu0 %v2548
      %2565 = vmatmul.bf16.gmra.mxu0 %v2555
      %v2566 = vpop.f32.mrf.mxu0
      %v2567 = vadd.f32 0.0, %v2566
      %v2568 = vpop.f32.mrf.mxu0
      %v2569 = vadd.f32 0.0, %v2568
      %2570 = vdwg.mxu0
      %2571 = vmatpush.bf16.msra.mxu0 0
      %2572 = vmatpush.bf16.msra.mxu0 0
      %2573 = vmatpush.bf16.msra.mxu0 0
      %2574 = vmatpush.bf16.msra.mxu0 0
      %2575 = vmatpush.bf16.msra.mxu0 0
      %2576 = vmatpush.bf16.msra.mxu0 0
      %2577 = vmatpush.bf16.msra.mxu0 %v2547
      %2578 = vmatpush.bf16.msra.mxu0 %v2543
      %2579 = vmatmul.bf16.gmra.mxu0 %v2555
      %v2580 = vpop.f32.mrf.mxu0
      %v2581 = vadd.f32 0.0, %v2580
      %v2582 = vpop.f32.mrf.mxu0
      %v2583 = vadd.f32 0.0, %v2582
      %2584 = vdwg.mxu0
      %v2585 = vadd.f32 %v2529, %v2567
      %v2586 = vadd.f32 %v2530, %v2581
      %v2587 = vadd.f32 %v2531, %v2569
      %v2588 = vadd.f32 %v2532, %v2583
      %v2589 = vld [vmem:[%s6] sm:$0xff]
      %v2590 = vld [vmem:[%s6 + $0x8] sm:$0xf]
      %2592 = vset.pattern.permute.xlu0 0
      %2593 = vperm.xlu0 %2592, %v2589
      %v2594 = vpop.permute.xlu0 %2593
      %2597 = vset.pattern.permute.xlu0 0
      %2598 = vperm.xlu0 %2597, %v2590
      %v2599 = vpop.permute.xlu0 %2598
      %v2601 = vadd.f32 %v2585, %v2594
      %v2602 = vadd.f32 %v2586, %v2594
      %v2603 = vadd.f32 %v2587, %v2599
      %v2604 = vadd.f32 %v2588, %v2599
      %2605 = vst [vmem:[%s314] sm:$0xff] %v2601
      %vm2606 = vcmask 130048
      %2607 = vst.msk [vmem:[%s314 + $0x8] sm:$0xff] %vm2606, %v2602
      %2608 = vst [vmem:[%s314 + $0x10] sm:$0xf] %v2603
      %vm2609 = vcmask 125952
      %2610 = vst.msk [vmem:[%s314 + $0x18] sm:$0xf] %vm2609, %v2604
      %p2611 = scmp.lt.s32.totalorder %s22, 1
      %s2612 = scalar_select %p2611, %s22, 1
      %p2613 = scmp.lt.s32.totalorder %s23, 1
      %s2614 = scalar_select %p2613, %s23, 1
      %s2615 = smul.addr %s2614, 4
      %s2616 = smul.addr %s2612, 8
      %s2617 = sadd.s32 %s2615, %s2616
      %s2618 = smul.addr %s2617, 8
      %s2619 = scalar_lea.vmem %s7, %s2618
      // Predicated region
      $region65: #{tpu_custom_call.1} parent=47 // pred_check
        %p2620 = pneg %p204
      $region66: #{tpu_custom_call.1} parent=47 // pred_check_branch
        %2622 = sbr.rel (%p2620) target = $region68
      $region67: #{tpu_custom_call.1} parent=47 // pred_region
        _
      $region68: #{tpu_custom_call.1} parent=47 // pred_fallthru
        _
    $region48: #{tpu_custom_call.1} parent=5 // pred_fallthru
      _
    %p2623 = scmp.le.s32.totalorder 2, %s13
    // Predicated region
    $region69: #{tpu_custom_call.1} parent=5 // pred_check
      %p2624 = pneg %p2623
    $region70: #{tpu_custom_call.1} parent=5 // pred_check_branch
      %2626 = sbr.rel (%p2624) target = $region72
    $region71: #{tpu_custom_call.1} parent=5 // pred_region
      %s2627 = ssub.s32 %s13, 2
      // Predicated region
      $region73: #{tpu_custom_call.1} parent=71 // pred_check
        %p2628 = pneg %p210
      $region74: #{tpu_custom_call.1} parent=71 // pred_check_branch
        %2630 = sbr.rel (%p2628) target = $region76
      $region75: #{tpu_custom_call.1} parent=71 // pred_region
        %p2631 = scmp.lt.s32.totalorder %s24, 1
        %s2632 = scalar_select %p2631, %s24, 1
        %p2633 = scmp.lt.s32.totalorder %s25, 1
        %s2634 = scalar_select %p2633, %s25, 1
        %s2635 = smul.addr %s2634, 4
        %s2636 = smul.addr %s2632, 8
        %s2637 = sadd.s32 %s2635, %s2636
        %s2638 = smul.addr %s2637, 8
        %s2639 = scalar_lea.vmem %s7, %s2638
      $region76: #{tpu_custom_call.1} parent=71 // pred_fallthru
        _
    $region72: #{tpu_custom_call.1} parent=5 // pred_fallthru
      _
  $region6: #{tpu_custom_call.1} parent=0 // loop_footer
    %s17 = sadd.s32 1, %s13
  $region7: #{tpu_custom_call.1} parent=0 // loop_footer_branch
    %12 = sbr.rel target = $region3
  $region8: #{tpu_custom_call.1} parent=0 // loop_exit
    _

</llo_original>
